<compile_context>
chip_gen: v7x
topology: tpu7x:2x2x1
jax: 0.10.0
libtpu: 0.0.40
codegen_flags: <defaults>
</compile_context>

<pallas_src>
import functools

import jax
import jax.numpy as jnp
from jax.experimental import pallas as pl
from jax.experimental.pallas import tpu as pltpu

HIDDEN_FFN = 3072          # fixed by the module (nn.Linear(D, 3072))
LN_EPS = 1e-5              # nn.LayerNorm default eps
_INV_SQRT2 = 0.7071067811865476


def encoder_layer_kernel(x_ref, w1_ref, b1_ref, w2_ref, b2_ref,
                         gamma_ref, beta_ref, o_ref):
    # x: (tm, D) f32; w1: (D, H) bf16; b1: (1, H) f32;
    # w2: (H, D) bf16; b2/gamma/beta: (1, D) f32; o: (tm, D) f32.
    x = x_ref[...].astype(jnp.bfloat16)

    # --- ffn: Linear(D -> 3072), bf16 inputs / f32 accumulation (MXU) ---
    h = jnp.dot(x, w1_ref[...], preferred_element_type=jnp.float32) + b1_ref[...]

    # --- GELU (exact erf form, matches nn.GELU() default), f32 math ---
    # TODO(synk): tanh-approx GELU would move the transcendental onto the EUP
    #             slot (helps VALU-bound v6e/v7x) at the cost of small drift.
    h = 0.5 * h * (1.0 + jax.lax.erf(h * jnp.float32(_INV_SQRT2)))

    # --- output: Linear(3072 -> D), bf16 inputs / f32 accumulation ---
    y = jnp.dot(h.astype(jnp.bfloat16), w2_ref[...],
                preferred_element_type=jnp.float32) + b2_ref[...]

    # --- LayerNorm over last dim D, single-pass fused statistics ---
    d_inv = jnp.float32(1.0 / y.shape[-1])
    mean = jnp.sum(y, axis=-1, keepdims=True) * d_inv
    var = jnp.maximum(jnp.sum(y * y, axis=-1, keepdims=True) * d_inv
                      - mean * mean, 0.0)
    out = (y - mean) * jax.lax.rsqrt(var + LN_EPS) * gamma_ref[...] + beta_ref[...]

    # --- Dropout(0.1): identity in eval mode ---
    # TODO(synk): training-mode dropout (pltpu.prng_*) intentionally omitted;
    #             forward matches model.eval().
    o_ref[...] = out.astype(o_ref.dtype)


def _round_up(n, m):
    return ((n + m - 1) // m) * m


def _pick_vmem_limit():
    # 3/4 of physical per-TensorCore VMEM, capped: ~48 MiB on v7x (64 MiB
    # physical), ~96 MiB on v5e/v6e (128 MiB physical).  Falls back to a
    # v7x-safe 48 MiB if the hardware query is unavailable.
    cap = 64 << 20
    try:
        cap = int(pltpu.get_tpu_info().vmem_capacity_bytes)
    except Exception:
        pass
    return min((cap * 3) // 4, 112 << 20)


def _pick_tm(M, tm_max=256):
    # Multiple of 16 (bf16 sublane packing), no larger than the padded M, and
    # halved (down to 64) until there are >=4 grid steps so both v7x TCs get
    # work and the x/out DMAs pipeline.
    tm = min(tm_max, _round_up(M, 16))
    while tm > 64 and pl.cdiv(M, tm) < 4:
        tm //= 2
    return max(tm, 16)


@functools.partial(jax.jit, static_argnames=("tm",))
def encoder_layer(x, w1, b1, w2, b2, gamma, beta, *, tm=None):
    """x: (M, D) float32; w1: (D, 3072); w2: (3072, D).  Returns (M, D) f32."""
    M, D = x.shape
    H = w1.shape[1]
    if tm is None:
        tm = _pick_tm(M)

    # Pad rows so the grid tiles M exactly; padded rows are sliced off below.
    M_pad = _round_up(M, tm)
    if M_pad != M:
        x = jnp.pad(x, ((0, M_pad - M), (0, 0)))

    # bf16 weights: native MXU input rate + half the resident VMEM / DMA.
    w1_bf = w1.astype(jnp.bfloat16)
    w2_bf = w2.astype(jnp.bfloat16)

    grid = (M_pad // tm,)
    out = pl.pallas_call(
        encoder_layer_kernel,
        out_shape=jax.ShapeDtypeStruct((M_pad, D), x.dtype),
        grid_spec=pltpu.PrefetchScalarGridSpec(
            num_scalar_prefetch=0,
            grid=grid,
            in_specs=[
                pl.BlockSpec((tm, D), lambda i: (i, 0)),   # x tile (streamed)
                # Constant index_map: Pallas fetches these once and keeps
                # them resident across grid steps.
                pl.BlockSpec((D, H), lambda i: (0, 0)),    # W1 (bf16, resident)
                pl.BlockSpec((1, H), lambda i: (0, 0)),    # b1
                pl.BlockSpec((H, D), lambda i: (0, 0)),    # W2 (bf16, resident)
                pl.BlockSpec((1, D), lambda i: (0, 0)),    # b2
                pl.BlockSpec((1, D), lambda i: (0, 0)),    # LN gamma
                pl.BlockSpec((1, D), lambda i: (0, 0)),    # LN beta
            ],
            out_specs=pl.BlockSpec((tm, D), lambda i: (i, 0)),
        ),
        compiler_params=pltpu.CompilerParams(
            dimension_semantics=("parallel",),
            vmem_limit_bytes=_pick_vmem_limit(),
        ),
    )(x, w1_bf, b1, w2_bf, b2, gamma, beta)

    if M_pad != M:
        out = out[:M]
    return out


def init_params(key, d_model):
    """Deterministic PyTorch-Linear-style init (uniform in +-1/sqrt(fan_in))."""
    k1, k2, k3, k4 = jax.random.split(key, 4)
    bound1 = 1.0 / jnp.sqrt(d_model)
    bound2 = 1.0 / jnp.sqrt(HIDDEN_FFN)
    w1 = jax.random.uniform(k1, (d_model, HIDDEN_FFN), jnp.float32, -bound1, bound1)
    b1 = jax.random.uniform(k2, (1, HIDDEN_FFN), jnp.float32, -bound1, bound1)
    w2 = jax.random.uniform(k3, (HIDDEN_FFN, d_model), jnp.float32, -bound2, bound2)
    b2 = jax.random.uniform(k4, (1, d_model), jnp.float32, -bound2, bound2)
    gamma = jnp.ones((1, d_model), jnp.float32)   # nn.LayerNorm weight init
    beta = jnp.zeros((1, d_model), jnp.float32)   # nn.LayerNorm bias init
    return w1, b1, w2, b2, gamma, beta


def reference(x, w1, b1, w2, b2, gamma, beta):
    """Pure-f32 JAX reference of the PyTorch forward (eval mode)."""
    h = x @ w1 + b1
    h = 0.5 * h * (1.0 + jax.lax.erf(h / jnp.sqrt(2.0)))
    y = h @ w2 + b2
    mean = jnp.mean(y, axis=-1, keepdims=True)
    var = jnp.mean((y - mean) ** 2, axis=-1, keepdims=True)
    return (y - mean) * jax.lax.rsqrt(var + LN_EPS) * gamma + beta


if __name__ == "__main__":
    d_model = 128  # args.bert_feature_dim
    key = jax.random.PRNGKey(0)
    kx1, kx2, kp = jax.random.split(key, 3)
    params = init_params(kp, d_model)

    # Case 1: tiny module-consistent shape (batch=2, seq=8).
    x1 = jax.random.normal(kx1, (2, 8, d_model), jnp.float32)
    out1 = encoder_layer(x1.reshape(-1, d_model), *params)
    jax.block_until_ready(out1)
    ref1 = reference(x1.reshape(-1, d_model), *params)

    # Case 2: larger M not divisible by the row tile (exercises the padding
    # path and a multi-step "parallel" grid).
    x2 = jax.random.normal(kx2, (4, 100, d_model), jnp.float32)
    out2 = encoder_layer(x2.reshape(-1, d_model), *params)
    jax.block_until_ready(out2)
    ref2 = reference(x2.reshape(-1, d_model), *params)

    # bf16 matmul inputs (with f32 accumulation) give ~0.5% relative error on
    # the pre-LayerNorm activations; LayerNorm rescales by ~1/std, so compare
    # against the pure-f32 reference with a correspondingly loose bound.
    for o, r in ((out1, ref1), (out2, ref2)):
        max_err = float(jnp.max(jnp.abs(o - r)))
        assert max_err < 1e-1, f"mismatch vs reference: max_err={max_err}"

    print("KERNEL_OK")
</pallas_src>

<mosaic_0001>
module attributes {stable_mosaic.version = 11 : i64} {
  func.func @encoder_layer_kernel(%arg0: i32, %arg1: memref<16x128xf32, #tpu.memory_space<vmem>>, %arg2: memref<128x3072xbf16, #tpu.memory_space<vmem>>, %arg3: memref<1x3072xf32, #tpu.memory_space<vmem>>, %arg4: memref<3072x128xbf16, #tpu.memory_space<vmem>>, %arg5: memref<1x128xf32, #tpu.memory_space<vmem>>, %arg6: memref<1x128xf32, #tpu.memory_space<vmem>>, %arg7: memref<1x128xf32, #tpu.memory_space<vmem>>, %arg8: memref<16x128xf32, #tpu.memory_space<vmem>>) attributes {dimension_semantics = [#tpu.dimension_semantics<parallel>], iteration_bounds = array<i64: 1>, scalar_prefetch = 0 : i64, scratch_operands = 0 : i64, tpu.core_type = #tpu.core_type<tc>, window_params = [{transform_indices = @transform_0, window_bounds = array<i64: 16, 128>}, {pipeline_mode = #tpu.pipeline_mode<synchronous>, transform_indices = @transform_1, window_bounds = array<i64: 128, 3072>}, {pipeline_mode = #tpu.pipeline_mode<synchronous>, transform_indices = @transform_2, window_bounds = array<i64: 1, 3072>}, {pipeline_mode = #tpu.pipeline_mode<synchronous>, transform_indices = @transform_3, window_bounds = array<i64: 3072, 128>}, {pipeline_mode = #tpu.pipeline_mode<synchronous>, transform_indices = @transform_4, window_bounds = array<i64: 1, 128>}, {pipeline_mode = #tpu.pipeline_mode<synchronous>, transform_indices = @transform_5, window_bounds = array<i64: 1, 128>}, {pipeline_mode = #tpu.pipeline_mode<synchronous>, transform_indices = @transform_6, window_bounds = array<i64: 1, 128>}, {transform_indices = @transform_7, window_bounds = array<i64: 16, 128>}]} {
    %c0 = arith.constant 0 : index
    %c0_0 = arith.constant 0 : index
    %0 = vector.load %arg1[%c0, %c0_0] : memref<16x128xf32, #tpu.memory_space<vmem>>, vector<16x128xf32>
    %1 = arith.truncf %0 : vector<16x128xf32> to vector<16x128xbf16>
    %c0_1 = arith.constant 0 : index
    %c0_2 = arith.constant 0 : index
    %2 = vector.load %arg2[%c0_1, %c0_2] : memref<128x3072xbf16, #tpu.memory_space<vmem>>, vector<128x3072xbf16>
    %cst = arith.constant dense<0.000000e+00> : vector<16x3072xf32>
    %3 = tpu.matmul %1, %2, %cst {dimension_numbers = #tpu.dot_dimension_numbers<[1], [0], [0], [1], [0, 0, 1, 1], [], []>} : vector<16x128xbf16>, vector<128x3072xbf16>, vector<16x3072xf32> -> vector<16x3072xf32>
    %c0_3 = arith.constant 0 : index
    %c0_4 = arith.constant 0 : index
    %4 = vector.load %arg3[%c0_3, %c0_4] : memref<1x3072xf32, #tpu.memory_space<vmem>>, vector<1x3072xf32>
    %5 = vector.broadcast %4 : vector<1x3072xf32> to vector<16x3072xf32>
    %6 = arith.addf %3, %5 : vector<16x3072xf32>
    %cst_5 = arith.constant 5.000000e-01 : f32
    %7 = vector.broadcast %cst_5 : f32 to vector<16x3072xf32>
    %8 = arith.mulf %7, %6 : vector<16x3072xf32>
    %cst_6 = arith.constant 0.707106769 : f32
    %9 = vector.broadcast %cst_6 : f32 to vector<16x3072xf32>
    %10 = arith.mulf %6, %9 : vector<16x3072xf32>
    %11 = math.erf %10 : vector<16x3072xf32>
    %cst_7 = arith.constant 1.000000e+00 : f32
    %12 = vector.broadcast %cst_7 : f32 to vector<16x3072xf32>
    %13 = arith.addf %12, %11 : vector<16x3072xf32>
    %14 = arith.mulf %8, %13 : vector<16x3072xf32>
    %15 = arith.truncf %14 : vector<16x3072xf32> to vector<16x3072xbf16>
    %c0_8 = arith.constant 0 : index
    %c0_9 = arith.constant 0 : index
    %16 = vector.load %arg4[%c0_8, %c0_9] : memref<3072x128xbf16, #tpu.memory_space<vmem>>, vector<3072x128xbf16>
    %cst_10 = arith.constant dense<0.000000e+00> : vector<16x128xf32>
    %17 = tpu.matmul %15, %16, %cst_10 {dimension_numbers = #tpu.dot_dimension_numbers<[1], [0], [0], [1], [0, 0, 1, 1], [], []>} : vector<16x3072xbf16>, vector<3072x128xbf16>, vector<16x128xf32> -> vector<16x128xf32>
    %c0_11 = arith.constant 0 : index
    %c0_12 = arith.constant 0 : index
    %18 = vector.load %arg5[%c0_11, %c0_12] : memref<1x128xf32, #tpu.memory_space<vmem>>, vector<1x128xf32>
    %19 = vector.broadcast %18 : vector<1x128xf32> to vector<16x128xf32>
    %20 = arith.addf %17, %19 : vector<16x128xf32>
    %cst_13 = arith.constant dense<0.000000e+00> : vector<16xf32>
    %21 = vector.multi_reduction <add>, %20, %cst_13 [1] : vector<16x128xf32> to vector<16xf32>
    %22 = vector.shape_cast %21 : vector<16xf32> to vector<16x1xf32>
    %cst_14 = arith.constant 7.812500e-03 : f32
    %23 = vector.broadcast %cst_14 : f32 to vector<16x1xf32>
    %24 = arith.mulf %22, %23 : vector<16x1xf32>
    %25 = arith.mulf %20, %20 : vector<16x128xf32>
    %cst_15 = arith.constant dense<0.000000e+00> : vector<16xf32>
    %26 = vector.multi_reduction <add>, %25, %cst_15 [1] : vector<16x128xf32> to vector<16xf32>
    %27 = vector.shape_cast %26 : vector<16xf32> to vector<16x1xf32>
    %cst_16 = arith.constant 7.812500e-03 : f32
    %28 = vector.broadcast %cst_16 : f32 to vector<16x1xf32>
    %29 = arith.mulf %27, %28 : vector<16x1xf32>
    %30 = arith.mulf %24, %24 : vector<16x1xf32>
    %31 = arith.subf %29, %30 : vector<16x1xf32>
    %cst_17 = arith.constant 0.000000e+00 : f32
    %32 = vector.broadcast %cst_17 : f32 to vector<16x1xf32>
    %33 = arith.maximumf %31, %32 : vector<16x1xf32>
    %34 = vector.broadcast %24 : vector<16x1xf32> to vector<16x128xf32>
    %35 = arith.subf %20, %34 : vector<16x128xf32>
    %cst_18 = arith.constant 9.99999974E-6 : f32
    %36 = vector.broadcast %cst_18 : f32 to vector<16x1xf32>
    %37 = arith.addf %33, %36 : vector<16x1xf32>
    %38 = math.rsqrt %37 : vector<16x1xf32>
    %39 = vector.broadcast %38 : vector<16x1xf32> to vector<16x128xf32>
    %40 = arith.mulf %35, %39 : vector<16x128xf32>
    %c0_19 = arith.constant 0 : index
    %c0_20 = arith.constant 0 : index
    %41 = vector.load %arg6[%c0_19, %c0_20] : memref<1x128xf32, #tpu.memory_space<vmem>>, vector<1x128xf32>
    %42 = vector.broadcast %41 : vector<1x128xf32> to vector<16x128xf32>
    %43 = arith.mulf %40, %42 : vector<16x128xf32>
    %c0_21 = arith.constant 0 : index
    %c0_22 = arith.constant 0 : index
    %44 = vector.load %arg7[%c0_21, %c0_22] : memref<1x128xf32, #tpu.memory_space<vmem>>, vector<1x128xf32>
    %45 = vector.broadcast %44 : vector<1x128xf32> to vector<16x128xf32>
    %46 = arith.addf %43, %45 : vector<16x128xf32>
    %c0_23 = arith.constant 0 : index
    %c0_24 = arith.constant 0 : index
    %47 = vector.load %arg8[%c0_23, %c0_24] : memref<16x128xf32, #tpu.memory_space<vmem>>, vector<16x128xf32>
    tpu.vector_store %arg8[%c0_23, %c0_24], %46 {strides = array<i32>} : memref<16x128xf32, #tpu.memory_space<vmem>>, vector<16x128xf32>,
    return
  }
  func.func @transform_0(%arg0: i32) -> (i32, i32) {
    %c0_i32 = arith.constant 0 : i32
    %c0_i32_0 = arith.constant 0 : i32
    return %arg0, %c0_i32 : i32, i32
  }
  func.func @transform_1(%arg0: i32) -> (i32, i32) {
    %c0_i32 = arith.constant 0 : i32
    %c0_i32_0 = arith.constant 0 : i32
    %c0_i32_1 = arith.constant 0 : i32
    return %c0_i32, %c0_i32_0 : i32, i32
  }
  func.func @transform_2(%arg0: i32) -> (i32, i32) {
    %c0_i32 = arith.constant 0 : i32
    %c0_i32_0 = arith.constant 0 : i32
    %c0_i32_1 = arith.constant 0 : i32
    return %c0_i32, %c0_i32_0 : i32, i32
  }
  func.func @transform_3(%arg0: i32) -> (i32, i32) {
    %c0_i32 = arith.constant 0 : i32
    %c0_i32_0 = arith.constant 0 : i32
    %c0_i32_1 = arith.constant 0 : i32
    return %c0_i32, %c0_i32_0 : i32, i32
  }
  func.func @transform_4(%arg0: i32) -> (i32, i32) {
    %c0_i32 = arith.constant 0 : i32
    %c0_i32_0 = arith.constant 0 : i32
    %c0_i32_1 = arith.constant 0 : i32
    return %c0_i32, %c0_i32_0 : i32, i32
  }
  func.func @transform_5(%arg0: i32) -> (i32, i32) {
    %c0_i32 = arith.constant 0 : i32
    %c0_i32_0 = arith.constant 0 : i32
    %c0_i32_1 = arith.constant 0 : i32
    return %c0_i32, %c0_i32_0 : i32, i32
  }
  func.func @transform_6(%arg0: i32) -> (i32, i32) {
    %c0_i32 = arith.constant 0 : i32
    %c0_i32_0 = arith.constant 0 : i32
    %c0_i32_1 = arith.constant 0 : i32
    return %c0_i32, %c0_i32_0 : i32, i32
  }
  func.func @transform_7(%arg0: i32) -> (i32, i32) {
    %c0_i32 = arith.constant 0 : i32
    %c0_i32_0 = arith.constant 0 : i32
    return %arg0, %c0_i32 : i32, i32
  }
}

</mosaic_0001>

<llo_original>
// kernel: encoder_layer.1
$region0: #{encoder_layer.1}
  #allocation0 [shape = 'u32[]', space=smem, size = 0x4, offset = 0x4, fixed_abs, tag = 'smem constant byte address 0x4 - core index']
  #allocation1 [shape = 'u32[144,128]{1,0:T(1,128)}', space=vmem, size = 0x12000, scoped, tag = 'internal scratch']
  %s0 = inlined_call_operand.vmem [shape: f32[16,128], index: 0, kind: input, shape index: {}]
  %s1 = inlined_call_operand.vmem [shape: bf16[128,3072], index: 1, kind: input, shape index: {}]
  %s2 = inlined_call_operand.vmem [shape: f32[1,3072], index: 2, kind: input, shape index: {}]
  %s3 = inlined_call_operand.vmem [shape: bf16[3072,128], index: 3, kind: input, shape index: {}]
  %s4 = inlined_call_operand.vmem [shape: f32[1,128], index: 4, kind: input, shape index: {}]
  %s5 = inlined_call_operand.vmem [shape: f32[1,128], index: 5, kind: input, shape index: {}]
  %s6 = inlined_call_operand.vmem [shape: f32[1,128], index: 6, kind: input, shape index: {}]
  %s7 = inlined_call_operand.hbm [shape: f32[16,128], index: 7, kind: output, shape index: {}]
  %s8 = sld [smem:[#allocation0]]
  $region38: #{encoder_layer.1} parent=0
    _
  %s10 = ssub.s32 1, %s8
  %s11 = scalar_select 0, %s10, %s8
  $region1: #{encoder_layer.1} parent=0
    #allocation2 [shape = 'u8[8192]{0}', space=vmem, size = 0x2000, scoped, tag = 'output window, operand 0, single buffered']
    #allocation3 [shape = 's32[1]{0}', space=sflag, size = 0x4, scoped, tag = 'scoped memory for encoder_layer.1']
    %12 = vsyncpa [#allocation3], 0
    // Predicated region
    $region2: #{encoder_layer.1} parent=1 // pred_check
      _
    $region3: #{encoder_layer.1} parent=1 // pred_check_branch
      %14 = sbr.rel (0) target = $region5
    $region4: #{encoder_layer.1} parent=1 // pred_region
      _
    $region5: #{encoder_layer.1} parent=1 // pred_fallthru
      _
    // Predicated region
    $region6: #{encoder_layer.1} parent=1 // pred_check
      _
    $region7: #{encoder_layer.1} parent=1 // pred_check_branch
      %16 = sbr.rel (0) target = $region9
    $region8: #{encoder_layer.1} parent=1 // pred_region
      _
    $region9: #{encoder_layer.1} parent=1 // pred_fallthru
      _
    // Predicated region
    $region10: #{encoder_layer.1} parent=1 // pred_check
      _
    $region11: #{encoder_layer.1} parent=1 // pred_check_branch
      %18 = sbr.rel (0) target = $region13
    $region12: #{encoder_layer.1} parent=1 // pred_region
      _
    $region13: #{encoder_layer.1} parent=1 // pred_fallthru
      _
    // Predicated region
    $region14: #{encoder_layer.1} parent=1 // pred_check
      _
    $region15: #{encoder_layer.1} parent=1 // pred_check_branch
      %20 = sbr.rel (0) target = $region17
    $region16: #{encoder_layer.1} parent=1 // pred_region
      _
    $region17: #{encoder_layer.1} parent=1 // pred_fallthru
      _
    // Predicated region
    $region18: #{encoder_layer.1} parent=1 // pred_check
      _
    $region19: #{encoder_layer.1} parent=1 // pred_check_branch
      %22 = sbr.rel (0) target = $region21
    $region20: #{encoder_layer.1} parent=1 // pred_region
      _
    $region21: #{encoder_layer.1} parent=1 // pred_fallthru
      _
    // Predicated region
    $region22: #{encoder_layer.1} parent=1 // pred_check
      _
    $region23: #{encoder_layer.1} parent=1 // pred_check_branch
      %24 = sbr.rel (0) target = $region25
    $region24: #{encoder_layer.1} parent=1 // pred_region
      _
    $region25: #{encoder_layer.1} parent=1 // pred_fallthru
      _
    // Predicated region
    $region26: #{encoder_layer.1} parent=1 // pred_check
      _
    $region27: #{encoder_layer.1} parent=1 // pred_check_branch
      %26 = sbr.rel (0) target = $region29
    $region28: #{encoder_layer.1} parent=1 // pred_region
      _
    $region29: #{encoder_layer.1} parent=1 // pred_fallthru
      _
    %v28 = vld [vmem:[%s0] sm:$0xff]
    %v29 = vld [vmem:[%s0 + $0x8] sm:$0xff]
    %v30 = vpack.c.bf16 %v29, %v28
    %v31 = vld [vmem:[%s1] sm:$0xff]
    %v32 = vld [vmem:[%s1 + $0x8] sm:$0xff]
    %v33 = vld [vmem:[%s1 + $0x10] sm:$0xff]
    %v34 = vld [vmem:[%s1 + $0x18] sm:$0xff]
    %v35 = vld [vmem:[%s1 + $0x20] sm:$0xff]
    %v36 = vld [vmem:[%s1 + $0x28] sm:$0xff]
    %v37 = vld [vmem:[%s1 + $0x30] sm:$0xff]
    %v38 = vld [vmem:[%s1 + $0x38] sm:$0xff]
    %v39 = vld [vmem:[%s1 + $0x40] sm:$0xff]
    %v40 = vld [vmem:[%s1 + $0x48] sm:$0xff]
    %v41 = vld [vmem:[%s1 + $0x50] sm:$0xff]
    %v42 = vld [vmem:[%s1 + $0x58] sm:$0xff]
    %v43 = vld [vmem:[%s1 + $0x60] sm:$0xff]
    %v44 = vld [vmem:[%s1 + $0x68] sm:$0xff]
    %v45 = vld [vmem:[%s1 + $0x70] sm:$0xff]
    %v46 = vld [vmem:[%s1 + $0x78] sm:$0xff]
    %v47 = vld [vmem:[%s1 + $0x80] sm:$0xff]
    %v48 = vld [vmem:[%s1 + $0x88] sm:$0xff]
    %v49 = vld [vmem:[%s1 + $0x90] sm:$0xff]
    %v50 = vld [vmem:[%s1 + $0x98] sm:$0xff]
    %v51 = vld [vmem:[%s1 + $0xa0] sm:$0xff]
    %v52 = vld [vmem:[%s1 + $0xa8] sm:$0xff]
    %v53 = vld [vmem:[%s1 + $0xb0] sm:$0xff]
    %v54 = vld [vmem:[%s1 + $0xb8] sm:$0xff]
    %v55 = vld [vmem:[%s1 + $0xc0] sm:$0xff]
    %v56 = vld [vmem:[%s1 + $0xc8] sm:$0xff]
    %v57 = vld [vmem:[%s1 + $0xd0] sm:$0xff]
    %v58 = vld [vmem:[%s1 + $0xd8] sm:$0xff]
    %v59 = vld [vmem:[%s1 + $0xe0] sm:$0xff]
    %v60 = vld [vmem:[%s1 + $0xe8] sm:$0xff]
    %v61 = vld [vmem:[%s1 + $0xf0] sm:$0xff]
    %v62 = vld [vmem:[%s1 + $0xf8] sm:$0xff]
    %v63 = vld [vmem:[%s1 + $0x100] sm:$0xff]
    %v64 = vld [vmem:[%s1 + $0x108] sm:$0xff]
    %v65 = vld [vmem:[%s1 + $0x110] sm:$0xff]
    %v66 = vld [vmem:[%s1 + $0x118] sm:$0xff]
    %v67 = vld [vmem:[%s1 + $0x120] sm:$0xff]
    %v68 = vld [vmem:[%s1 + $0x128] sm:$0xff]
    %v69 = vld [vmem:[%s1 + $0x130] sm:$0xff]
    %v70 = vld [vmem:[%s1 + $0x138] sm:$0xff]
    %v71 = vld [vmem:[%s1 + $0x140] sm:$0xff]
    %v72 = vld [vmem:[%s1 + $0x148] sm:$0xff]
    %v73 = vld [vmem:[%s1 + $0x150] sm:$0xff]
    %v74 = vld [vmem:[%s1 + $0x158] sm:$0xff]
    %v75 = vld [vmem:[%s1 + $0x160] sm:$0xff]
    %v76 = vld [vmem:[%s1 + $0x168] sm:$0xff]
    %v77 = vld [vmem:[%s1 + $0x170] sm:$0xff]
    %v78 = vld [vmem:[%s1 + $0x178] sm:$0xff]
    %v79 = vld [vmem:[%s1 + $0x180] sm:$0xff]
    %v80 = vld [vmem:[%s1 + $0x188] sm:$0xff]
    %v81 = vld [vmem:[%s1 + $0x190] sm:$0xff]
    %v82 = vld [vmem:[%s1 + $0x198] sm:$0xff]
    %v83 = vld [vmem:[%s1 + $0x1a0] sm:$0xff]
    %v84 = vld [vmem:[%s1 + $0x1a8] sm:$0xff]
    %v85 = vld [vmem:[%s1 + $0x1b0] sm:$0xff]
    %v86 = vld [vmem:[%s1 + $0x1b8] sm:$0xff]
    %v87 = vld [vmem:[%s1 + $0x1c0] sm:$0xff]
    %v88 = vld [vmem:[%s1 + $0x1c8] sm:$0xff]
    %v89 = vld [vmem:[%s1 + $0x1d0] sm:$0xff]
    %v90 = vld [vmem:[%s1 + $0x1d8] sm:$0xff]
    %v91 = vld [vmem:[%s1 + $0x1e0] sm:$0xff]
    %v92 = vld [vmem:[%s1 + $0x1e8] sm:$0xff]
    %v93 = vld [vmem:[%s1 + $0x1f0] sm:$0xff]
    %v94 = vld [vmem:[%s1 + $0x1f8] sm:$0xff]
    %v95 = vld [vmem:[%s1 + $0x200] sm:$0xff]
    %v96 = vld [vmem:[%s1 + $0x208] sm:$0xff]
    %v97 = vld [vmem:[%s1 + $0x210] sm:$0xff]
    %v98 = vld [vmem:[%s1 + $0x218] sm:$0xff]
    %v99 = vld [vmem:[%s1 + $0x220] sm:$0xff]
    %v100 = vld [vmem:[%s1 + $0x228] sm:$0xff]
    %v101 = vld [vmem:[%s1 + $0x230] sm:$0xff]
    %v102 = vld [vmem:[%s1 + $0x238] sm:$0xff]
    %v103 = vld [vmem:[%s1 + $0x240] sm:$0xff]
    %v104 = vld [vmem:[%s1 + $0x248] sm:$0xff]
    %v105 = vld [vmem:[%s1 + $0x250] sm:$0xff]
    %v106 = vld [vmem:[%s1 + $0x258] sm:$0xff]
    %v107 = vld [vmem:[%s1 + $0x260] sm:$0xff]
    %v108 = vld [vmem:[%s1 + $0x268] sm:$0xff]
    %v109 = vld [vmem:[%s1 + $0x270] sm:$0xff]
    %v110 = vld [vmem:[%s1 + $0x278] sm:$0xff]
    %v111 = vld [vmem:[%s1 + $0x280] sm:$0xff]
    %v112 = vld [vmem:[%s1 + $0x288] sm:$0xff]
    %v113 = vld [vmem:[%s1 + $0x290] sm:$0xff]
    %v114 = vld [vmem:[%s1 + $0x298] sm:$0xff]
    %v115 = vld [vmem:[%s1 + $0x2a0] sm:$0xff]
    %v116 = vld [vmem:[%s1 + $0x2a8] sm:$0xff]
    %v117 = vld [vmem:[%s1 + $0x2b0] sm:$0xff]
    %v118 = vld [vmem:[%s1 + $0x2b8] sm:$0xff]
    %v119 = vld [vmem:[%s1 + $0x2c0] sm:$0xff]
    %v120 = vld [vmem:[%s1 + $0x2c8] sm:$0xff]
    %v121 = vld [vmem:[%s1 + $0x2d0] sm:$0xff]
    %v122 = vld [vmem:[%s1 + $0x2d8] sm:$0xff]
    %v123 = vld [vmem:[%s1 + $0x2e0] sm:$0xff]
    %v124 = vld [vmem:[%s1 + $0x2e8] sm:$0xff]
    %v125 = vld [vmem:[%s1 + $0x2f0] sm:$0xff]
    %v126 = vld [vmem:[%s1 + $0x2f8] sm:$0xff]
    %v127 = vld [vmem:[%s1 + $0x300] sm:$0xff]
    %v128 = vld [vmem:[%s1 + $0x308] sm:$0xff]
    %v129 = vld [vmem:[%s1 + $0x310] sm:$0xff]
    %v130 = vld [vmem:[%s1 + $0x318] sm:$0xff]
    %v131 = vld [vmem:[%s1 + $0x320] sm:$0xff]
    %v132 = vld [vmem:[%s1 + $0x328] sm:$0xff]
    %v133 = vld [vmem:[%s1 + $0x330] sm:$0xff]
    %v134 = vld [vmem:[%s1 + $0x338] sm:$0xff]
    %v135 = vld [vmem:[%s1 + $0x340] sm:$0xff]
    %v136 = vld [vmem:[%s1 + $0x348] sm:$0xff]
    %v137 = vld [vmem:[%s1 + $0x350] sm:$0xff]
    %v138 = vld [vmem:[%s1 + $0x358] sm:$0xff]
    %v139 = vld [vmem:[%s1 + $0x360] sm:$0xff]
    %v140 = vld [vmem:[%s1 + $0x368] sm:$0xff]
    %v141 = vld [vmem:[%s1 + $0x370] sm:$0xff]
    %v142 = vld [vmem:[%s1 + $0x378] sm:$0xff]
    %v143 = vld [vmem:[%s1 + $0x380] sm:$0xff]
    %v144 = vld [vmem:[%s1 + $0x388] sm:$0xff]
    %v145 = vld [vmem:[%s1 + $0x390] sm:$0xff]
    %v146 = vld [vmem:[%s1 + $0x398] sm:$0xff]
    %v147 = vld [vmem:[%s1 + $0x3a0] sm:$0xff]
    %v148 = vld [vmem:[%s1 + $0x3a8] sm:$0xff]
    %v149 = vld [vmem:[%s1 + $0x3b0] sm:$0xff]
    %v150 = vld [vmem:[%s1 + $0x3b8] sm:$0xff]
    %v151 = vld [vmem:[%s1 + $0x3c0] sm:$0xff]
    %v152 = vld [vmem:[%s1 + $0x3c8] sm:$0xff]
    %v153 = vld [vmem:[%s1 + $0x3d0] sm:$0xff]
    %v154 = vld [vmem:[%s1 + $0x3d8] sm:$0xff]
    %v155 = vld [vmem:[%s1 + $0x3e0] sm:$0xff]
    %v156 = vld [vmem:[%s1 + $0x3e8] sm:$0xff]
    %v157 = vld [vmem:[%s1 + $0x3f0] sm:$0xff]
    %v158 = vld [vmem:[%s1 + $0x3f8] sm:$0xff]
    %v159 = vld [vmem:[%s1 + $0x400] sm:$0xff]
    %v160 = vld [vmem:[%s1 + $0x408] sm:$0xff]
    %v161 = vld [vmem:[%s1 + $0x410] sm:$0xff]
    %v162 = vld [vmem:[%s1 + $0x418] sm:$0xff]
    %v163 = vld [vmem:[%s1 + $0x420] sm:$0xff]
    %v164 = vld [vmem:[%s1 + $0x428] sm:$0xff]
    %v165 = vld [vmem:[%s1 + $0x430] sm:$0xff]
    %v166 = vld [vmem:[%s1 + $0x438] sm:$0xff]
    %v167 = vld [vmem:[%s1 + $0x440] sm:$0xff]
    %v168 = vld [vmem:[%s1 + $0x448] sm:$0xff]
    %v169 = vld [vmem:[%s1 + $0x450] sm:$0xff]
    %v170 = vld [vmem:[%s1 + $0x458] sm:$0xff]
    %v171 = vld [vmem:[%s1 + $0x460] sm:$0xff]
    %v172 = vld [vmem:[%s1 + $0x468] sm:$0xff]
    %v173 = vld [vmem:[%s1 + $0x470] sm:$0xff]
    %v174 = vld [vmem:[%s1 + $0x478] sm:$0xff]
    %v175 = vld [vmem:[%s1 + $0x480] sm:$0xff]
    %v176 = vld [vmem:[%s1 + $0x488] sm:$0xff]
    %v177 = vld [vmem:[%s1 + $0x490] sm:$0xff]
    %v178 = vld [vmem:[%s1 + $0x498] sm:$0xff]
    %v179 = vld [vmem:[%s1 + $0x4a0] sm:$0xff]
    %v180 = vld [vmem:[%s1 + $0x4a8] sm:$0xff]
    %v181 = vld [vmem:[%s1 + $0x4b0] sm:$0xff]
    %v182 = vld [vmem:[%s1 + $0x4b8] sm:$0xff]
    %v183 = vld [vmem:[%s1 + $0x4c0] sm:$0xff]
    %v184 = vld [vmem:[%s1 + $0x4c8] sm:$0xff]
    %v185 = vld [vmem:[%s1 + $0x4d0] sm:$0xff]
    %v186 = vld [vmem:[%s1 + $0x4d8] sm:$0xff]
    %v187 = vld [vmem:[%s1 + $0x4e0] sm:$0xff]
    %v188 = vld [vmem:[%s1 + $0x4e8] sm:$0xff]
    %v189 = vld [vmem:[%s1 + $0x4f0] sm:$0xff]
    %v190 = vld [vmem:[%s1 + $0x4f8] sm:$0xff]
    %v191 = vld [vmem:[%s1 + $0x500] sm:$0xff]
    %v192 = vld [vmem:[%s1 + $0x508] sm:$0xff]
    %v193 = vld [vmem:[%s1 + $0x510] sm:$0xff]
    %v194 = vld [vmem:[%s1 + $0x518] sm:$0xff]
    %v195 = vld [vmem:[%s1 + $0x520] sm:$0xff]
    %v196 = vld [vmem:[%s1 + $0x528] sm:$0xff]
    %v197 = vld [vmem:[%s1 + $0x530] sm:$0xff]
    %v198 = vld [vmem:[%s1 + $0x538] sm:$0xff]
    %v199 = vld [vmem:[%s1 + $0x540] sm:$0xff]
    %v200 = vld [vmem:[%s1 + $0x548] sm:$0xff]
    %v201 = vld [vmem:[%s1 + $0x550] sm:$0xff]
    %v202 = vld [vmem:[%s1 + $0x558] sm:$0xff]
    %v203 = vld [vmem:[%s1 + $0x560] sm:$0xff]
    %v204 = vld [vmem:[%s1 + $0x568] sm:$0xff]
    %v205 = vld [vmem:[%s1 + $0x570] sm:$0xff]
    %v206 = vld [vmem:[%s1 + $0x578] sm:$0xff]
    %v207 = vld [vmem:[%s1 + $0x580] sm:$0xff]
    %v208 = vld [vmem:[%s1 + $0x588] sm:$0xff]
    %v209 = vld [vmem:[%s1 + $0x590] sm:$0xff]
    %v210 = vld [vmem:[%s1 + $0x598] sm:$0xff]
    %v211 = vld [vmem:[%s1 + $0x5a0] sm:$0xff]
    %v212 = vld [vmem:[%s1 + $0x5a8] sm:$0xff]
    %v213 = vld [vmem:[%s1 + $0x5b0] sm:$0xff]
    %v214 = vld [vmem:[%s1 + $0x5b8] sm:$0xff]
    %v215 = vld [vmem:[%s1 + $0x5c0] sm:$0xff]
    %v216 = vld [vmem:[%s1 + $0x5c8] sm:$0xff]
    %v217 = vld [vmem:[%s1 + $0x5d0] sm:$0xff]
    %v218 = vld [vmem:[%s1 + $0x5d8] sm:$0xff]
    %v219 = vld [vmem:[%s1 + $0x5e0] sm:$0xff]
    %v220 = vld [vmem:[%s1 + $0x5e8] sm:$0xff]
    %v221 = vld [vmem:[%s1 + $0x5f0] sm:$0xff]
    %v222 = vld [vmem:[%s1 + $0x5f8] sm:$0xff]
    %v223 = vld [vmem:[%s2] sm:$0xff]
    %v224 = vld [vmem:[%s2 + $0x8] sm:$0xff]
    %v225 = vld [vmem:[%s2 + $0x10] sm:$0xff]
    %v229 = vlaneseq
    %v230 = vshrl.u32 %v229, 7
    %v231 = vsub.s32 0, %v230
    %v232 = vrot.slane %v223, %v231
    %v233 = vlaneseq
    %v234 = vshrl.u32 %v233, 7
    %v235 = vsub.s32 1, %v234
    %v236 = vrot.slane %v223, %v235
    %v237 = vlaneseq
    %v238 = vshrl.u32 %v237, 7
    %v239 = vsub.s32 2, %v238
    %v240 = vrot.slane %v223, %v239
    %v241 = vlaneseq
    %v242 = vshrl.u32 %v241, 7
    %v243 = vsub.s32 3, %v242
    %v244 = vrot.slane %v223, %v243
    %v245 = vlaneseq
    %v246 = vshrl.u32 %v245, 7
    %v247 = vsub.s32 4, %v246
    %v248 = vrot.slane %v223, %v247
    %v249 = vlaneseq
    %v250 = vshrl.u32 %v249, 7
    %v251 = vsub.s32 5, %v250
    %v252 = vrot.slane %v223, %v251
    %v253 = vlaneseq
    %v254 = vshrl.u32 %v253, 7
    %v255 = vsub.s32 6, %v254
    %v256 = vrot.slane %v223, %v255
    %v257 = vlaneseq
    %v258 = vshrl.u32 %v257, 7
    %v259 = vsub.s32 7, %v258
    %v260 = vrot.slane %v223, %v259
    %v261 = vlaneseq
    %v262 = vshrl.u32 %v261, 7
    %v263 = vsub.s32 0, %v262
    %v264 = vrot.slane %v224, %v263
    %v265 = vlaneseq
    %v266 = vshrl.u32 %v265, 7
    %v267 = vsub.s32 1, %v266
    %v268 = vrot.slane %v224, %v267
    %v269 = vlaneseq
    %v270 = vshrl.u32 %v269, 7
    %v271 = vsub.s32 2, %v270
    %v272 = vrot.slane %v224, %v271
    %v273 = vlaneseq
    %v274 = vshrl.u32 %v273, 7
    %v275 = vsub.s32 3, %v274
    %v276 = vrot.slane %v224, %v275
    %v277 = vlaneseq
    %v278 = vshrl.u32 %v277, 7
    %v279 = vsub.s32 4, %v278
    %v280 = vrot.slane %v224, %v279
    %v281 = vlaneseq
    %v282 = vshrl.u32 %v281, 7
    %v283 = vsub.s32 5, %v282
    %v284 = vrot.slane %v224, %v283
    %v285 = vlaneseq
    %v286 = vshrl.u32 %v285, 7
    %v287 = vsub.s32 6, %v286
    %v288 = vrot.slane %v224, %v287
    %v289 = vlaneseq
    %v290 = vshrl.u32 %v289, 7
    %v291 = vsub.s32 7, %v290
    %v292 = vrot.slane %v224, %v291
    %v293 = vlaneseq
    %v294 = vshrl.u32 %v293, 7
    %v295 = vsub.s32 0, %v294
    %v296 = vrot.slane %v225, %v295
    %v297 = vlaneseq
    %v298 = vshrl.u32 %v297, 7
    %v299 = vsub.s32 1, %v298
    %v300 = vrot.slane %v225, %v299
    %v301 = vlaneseq
    %v302 = vshrl.u32 %v301, 7
    %v303 = vsub.s32 2, %v302
    %v304 = vrot.slane %v225, %v303
    %v305 = vlaneseq
    %v306 = vshrl.u32 %v305, 7
    %v307 = vsub.s32 3, %v306
    %v308 = vrot.slane %v225, %v307
    %v309 = vlaneseq
    %v310 = vshrl.u32 %v309, 7
    %v311 = vsub.s32 4, %v310
    %v312 = vrot.slane %v225, %v311
    %v313 = vlaneseq
    %v314 = vshrl.u32 %v313, 7
    %v315 = vsub.s32 5, %v314
    %v316 = vrot.slane %v225, %v315
    %v317 = vlaneseq
    %v318 = vshrl.u32 %v317, 7
    %v319 = vsub.s32 6, %v318
    %v320 = vrot.slane %v225, %v319
    %v321 = vlaneseq
    %v322 = vshrl.u32 %v321, 7
    %v323 = vsub.s32 7, %v322
    %v324 = vrot.slane %v225, %v323
    %v541 = vunpack.c.l.b16 %v31
    %v542 = vunpack.c.h.b16 %v31
    %v543 = vunpack.c.l.b16 %v32
    %v544 = vunpack.c.h.b16 %v32
    %v545 = vunpack.c.l.b16 %v33
    %v546 = vunpack.c.h.b16 %v33
    %v547 = vunpack.c.l.b16 %v34
    %v548 = vunpack.c.h.b16 %v34
    %v549 = vunpack.c.l.b16 %v35
    %v550 = vunpack.c.h.b16 %v35
    %v551 = vunpack.c.l.b16 %v36
    %v552 = vunpack.c.h.b16 %v36
    %v553 = vunpack.c.l.b16 %v37
    %v554 = vunpack.c.h.b16 %v37
    %v555 = vunpack.c.l.b16 %v38
    %v556 = vunpack.c.h.b16 %v38
    %v557 = vunpack.c.l.b16 %v39
    %v558 = vunpack.c.h.b16 %v39
    %v559 = vunpack.c.l.b16 %v40
    %v560 = vunpack.c.h.b16 %v40
    %v561 = vunpack.c.l.b16 %v41
    %v562 = vunpack.c.h.b16 %v41
    %v563 = vunpack.c.l.b16 %v42
    %v564 = vunpack.c.h.b16 %v42
    %v565 = vunpack.c.l.b16 %v43
    %v566 = vunpack.c.h.b16 %v43
    %v567 = vunpack.c.l.b16 %v44
    %v568 = vunpack.c.h.b16 %v44
    %v569 = vunpack.c.l.b16 %v45
    %v570 = vunpack.c.h.b16 %v45
    %v571 = vunpack.c.l.b16 %v46
    %v572 = vunpack.c.h.b16 %v46
    %v573 = vunpack.c.l.b16 %v47
    %v574 = vunpack.c.h.b16 %v47
    %v575 = vunpack.c.l.b16 %v48
    %v576 = vunpack.c.h.b16 %v48
    %v577 = vunpack.c.l.b16 %v49
    %v578 = vunpack.c.h.b16 %v49
    %v579 = vunpack.c.l.b16 %v50
    %v580 = vunpack.c.h.b16 %v50
    %v581 = vunpack.c.l.b16 %v51
    %v582 = vunpack.c.h.b16 %v51
    %v583 = vunpack.c.l.b16 %v52
    %v584 = vunpack.c.h.b16 %v52
    %v585 = vunpack.c.l.b16 %v53
    %v586 = vunpack.c.h.b16 %v53
    %v587 = vunpack.c.l.b16 %v54
    %v588 = vunpack.c.h.b16 %v54
    %v589 = vunpack.c.l.b16 %v55
    %v590 = vunpack.c.h.b16 %v55
    %v591 = vunpack.c.l.b16 %v56
    %v592 = vunpack.c.h.b16 %v56
    %v593 = vunpack.c.l.b16 %v57
    %v594 = vunpack.c.h.b16 %v57
    %v595 = vunpack.c.l.b16 %v58
    %v596 = vunpack.c.h.b16 %v58
    %v597 = vunpack.c.l.b16 %v59
    %v598 = vunpack.c.h.b16 %v59
    %v599 = vunpack.c.l.b16 %v60
    %v600 = vunpack.c.h.b16 %v60
    %v601 = vunpack.c.l.b16 %v61
    %v602 = vunpack.c.h.b16 %v61
    %v603 = vunpack.c.l.b16 %v62
    %v604 = vunpack.c.h.b16 %v62
    %v605 = vunpack.c.l.b16 %v63
    %v606 = vunpack.c.h.b16 %v63
    %v607 = vunpack.c.l.b16 %v64
    %v608 = vunpack.c.h.b16 %v64
    %v609 = vunpack.c.l.b16 %v65
    %v610 = vunpack.c.h.b16 %v65
    %v611 = vunpack.c.l.b16 %v66
    %v612 = vunpack.c.h.b16 %v66
    %v613 = vunpack.c.l.b16 %v67
    %v614 = vunpack.c.h.b16 %v67
    %v615 = vunpack.c.l.b16 %v68
    %v616 = vunpack.c.h.b16 %v68
    %v617 = vunpack.c.l.b16 %v69
    %v618 = vunpack.c.h.b16 %v69
    %v619 = vunpack.c.l.b16 %v70
    %v620 = vunpack.c.h.b16 %v70
    %v621 = vunpack.c.l.b16 %v71
    %v622 = vunpack.c.h.b16 %v71
    %v623 = vunpack.c.l.b16 %v72
    %v624 = vunpack.c.h.b16 %v72
    %v625 = vunpack.c.l.b16 %v73
    %v626 = vunpack.c.h.b16 %v73
    %v627 = vunpack.c.l.b16 %v74
    %v628 = vunpack.c.h.b16 %v74
    %v629 = vunpack.c.l.b16 %v75
    %v630 = vunpack.c.h.b16 %v75
    %v631 = vunpack.c.l.b16 %v76
    %v632 = vunpack.c.h.b16 %v76
    %v633 = vunpack.c.l.b16 %v77
    %v634 = vunpack.c.h.b16 %v77
    %v635 = vunpack.c.l.b16 %v78
    %v636 = vunpack.c.h.b16 %v78
    %v637 = vunpack.c.l.b16 %v79
    %v638 = vunpack.c.h.b16 %v79
    %v639 = vunpack.c.l.b16 %v80
    %v640 = vunpack.c.h.b16 %v80
    %v641 = vunpack.c.l.b16 %v81
    %v642 = vunpack.c.h.b16 %v81
    %v643 = vunpack.c.l.b16 %v82
    %v644 = vunpack.c.h.b16 %v82
    %v645 = vunpack.c.l.b16 %v83
    %v646 = vunpack.c.h.b16 %v83
    %v647 = vunpack.c.l.b16 %v84
    %v648 = vunpack.c.h.b16 %v84
    %v649 = vunpack.c.l.b16 %v85
    %v650 = vunpack.c.h.b16 %v85
    %v651 = vunpack.c.l.b16 %v86
    %v652 = vunpack.c.h.b16 %v86
    %v653 = vunpack.c.l.b16 %v87
    %v654 = vunpack.c.h.b16 %v87
    %v655 = vunpack.c.l.b16 %v88
    %v656 = vunpack.c.h.b16 %v88
    %v657 = vunpack.c.l.b16 %v89
    %v658 = vunpack.c.h.b16 %v89
    %v659 = vunpack.c.l.b16 %v90
    %v660 = vunpack.c.h.b16 %v90
    %v661 = vunpack.c.l.b16 %v91
    %v662 = vunpack.c.h.b16 %v91
    %v663 = vunpack.c.l.b16 %v92
    %v664 = vunpack.c.h.b16 %v92
    %v665 = vunpack.c.l.b16 %v93
    %v666 = vunpack.c.h.b16 %v93
    %v667 = vunpack.c.l.b16 %v94
    %v668 = vunpack.c.h.b16 %v94
    %v669 = vunpack.c.l.b16 %v95
    %v670 = vunpack.c.h.b16 %v95
    %v671 = vunpack.c.l.b16 %v96
    %v672 = vunpack.c.h.b16 %v96
    %v673 = vunpack.c.l.b16 %v97
    %v674 = vunpack.c.h.b16 %v97
    %v675 = vunpack.c.l.b16 %v98
    %v676 = vunpack.c.h.b16 %v98
    %v677 = vunpack.c.l.b16 %v99
    %v678 = vunpack.c.h.b16 %v99
    %v679 = vunpack.c.l.b16 %v100
    %v680 = vunpack.c.h.b16 %v100
    %v681 = vunpack.c.l.b16 %v101
    %v682 = vunpack.c.h.b16 %v101
    %v683 = vunpack.c.l.b16 %v102
    %v684 = vunpack.c.h.b16 %v102
    %v685 = vunpack.c.l.b16 %v103
    %v686 = vunpack.c.h.b16 %v103
    %v687 = vunpack.c.l.b16 %v104
    %v688 = vunpack.c.h.b16 %v104
    %v689 = vunpack.c.l.b16 %v105
    %v690 = vunpack.c.h.b16 %v105
    %v691 = vunpack.c.l.b16 %v106
    %v692 = vunpack.c.h.b16 %v106
    %v693 = vunpack.c.l.b16 %v107
    %v694 = vunpack.c.h.b16 %v107
    %v695 = vunpack.c.l.b16 %v108
    %v696 = vunpack.c.h.b16 %v108
    %v697 = vunpack.c.l.b16 %v109
    %v698 = vunpack.c.h.b16 %v109
    %v699 = vunpack.c.l.b16 %v110
    %v700 = vunpack.c.h.b16 %v110
    %v701 = vunpack.c.l.b16 %v111
    %v702 = vunpack.c.h.b16 %v111
    %v703 = vunpack.c.l.b16 %v112
    %v704 = vunpack.c.h.b16 %v112
    %v705 = vunpack.c.l.b16 %v113
    %v706 = vunpack.c.h.b16 %v113
    %v707 = vunpack.c.l.b16 %v114
    %v708 = vunpack.c.h.b16 %v114
    %v709 = vunpack.c.l.b16 %v115
    %v710 = vunpack.c.h.b16 %v115
    %v711 = vunpack.c.l.b16 %v116
    %v712 = vunpack.c.h.b16 %v116
    %v713 = vunpack.c.l.b16 %v117
    %v714 = vunpack.c.h.b16 %v117
    %v715 = vunpack.c.l.b16 %v118
    %v716 = vunpack.c.h.b16 %v118
    %v717 = vunpack.c.l.b16 %v119
    %v718 = vunpack.c.h.b16 %v119
    %v719 = vunpack.c.l.b16 %v120
    %v720 = vunpack.c.h.b16 %v120
    %v721 = vunpack.c.l.b16 %v121
    %v722 = vunpack.c.h.b16 %v121
    %v723 = vunpack.c.l.b16 %v122
    %v724 = vunpack.c.h.b16 %v122
    %v725 = vunpack.c.l.b16 %v123
    %v726 = vunpack.c.h.b16 %v123
    %v727 = vunpack.c.l.b16 %v124
    %v728 = vunpack.c.h.b16 %v124
    %v729 = vunpack.c.l.b16 %v125
    %v730 = vunpack.c.h.b16 %v125
    %v731 = vunpack.c.l.b16 %v126
    %v732 = vunpack.c.h.b16 %v126
    %v733 = vunpack.c.l.b16 %v127
    %v734 = vunpack.c.h.b16 %v127
    %v735 = vunpack.c.l.b16 %v128
    %v736 = vunpack.c.h.b16 %v128
    %v737 = vunpack.c.l.b16 %v129
    %v738 = vunpack.c.h.b16 %v129
    %v739 = vunpack.c.l.b16 %v130
    %v740 = vunpack.c.h.b16 %v130
    %v741 = vunpack.c.l.b16 %v131
    %v742 = vunpack.c.h.b16 %v131
    %v743 = vunpack.c.l.b16 %v132
    %v744 = vunpack.c.h.b16 %v132
    %v745 = vunpack.c.l.b16 %v133
    %v746 = vunpack.c.h.b16 %v133
    %v747 = vunpack.c.l.b16 %v134
    %v748 = vunpack.c.h.b16 %v134
    %v749 = vunpack.c.l.b16 %v135
    %v750 = vunpack.c.h.b16 %v135
    %v751 = vunpack.c.l.b16 %v136
    %v752 = vunpack.c.h.b16 %v136
    %v753 = vunpack.c.l.b16 %v137
    %v754 = vunpack.c.h.b16 %v137
    %v755 = vunpack.c.l.b16 %v138
    %v756 = vunpack.c.h.b16 %v138
    %v757 = vunpack.c.l.b16 %v139
    %v758 = vunpack.c.h.b16 %v139
    %v759 = vunpack.c.l.b16 %v140
    %v760 = vunpack.c.h.b16 %v140
    %v761 = vunpack.c.l.b16 %v141
    %v762 = vunpack.c.h.b16 %v141
    %v763 = vunpack.c.l.b16 %v142
    %v764 = vunpack.c.h.b16 %v142
    %v765 = vunpack.c.l.b16 %v143
    %v766 = vunpack.c.h.b16 %v143
    %v767 = vunpack.c.l.b16 %v144
    %v768 = vunpack.c.h.b16 %v144
    %v769 = vunpack.c.l.b16 %v145
    %v770 = vunpack.c.h.b16 %v145
    %v771 = vunpack.c.l.b16 %v146
    %v772 = vunpack.c.h.b16 %v146
    %v773 = vunpack.c.l.b16 %v147
    %v774 = vunpack.c.h.b16 %v147
    %v775 = vunpack.c.l.b16 %v148
    %v776 = vunpack.c.h.b16 %v148
    %v777 = vunpack.c.l.b16 %v149
    %v778 = vunpack.c.h.b16 %v149
    %v779 = vunpack.c.l.b16 %v150
    %v780 = vunpack.c.h.b16 %v150
    %v781 = vunpack.c.l.b16 %v151
    %v782 = vunpack.c.h.b16 %v151
    %v783 = vunpack.c.l.b16 %v152
    %v784 = vunpack.c.h.b16 %v152
    %v785 = vunpack.c.l.b16 %v153
    %v786 = vunpack.c.h.b16 %v153
    %v787 = vunpack.c.l.b16 %v154
    %v788 = vunpack.c.h.b16 %v154
    %v789 = vunpack.c.l.b16 %v155
    %v790 = vunpack.c.h.b16 %v155
    %v791 = vunpack.c.l.b16 %v156
    %v792 = vunpack.c.h.b16 %v156
    %v793 = vunpack.c.l.b16 %v157
    %v794 = vunpack.c.h.b16 %v157
    %v795 = vunpack.c.l.b16 %v158
    %v796 = vunpack.c.h.b16 %v158
    %v797 = vunpack.c.l.b16 %v159
    %v798 = vunpack.c.h.b16 %v159
    %v799 = vunpack.c.l.b16 %v160
    %v800 = vunpack.c.h.b16 %v160
    %v801 = vunpack.c.l.b16 %v161
    %v802 = vunpack.c.h.b16 %v161
    %v803 = vunpack.c.l.b16 %v162
    %v804 = vunpack.c.h.b16 %v162
    %v805 = vunpack.c.l.b16 %v163
    %v806 = vunpack.c.h.b16 %v163
    %v807 = vunpack.c.l.b16 %v164
    %v808 = vunpack.c.h.b16 %v164
    %v809 = vunpack.c.l.b16 %v165
    %v810 = vunpack.c.h.b16 %v165
    %v811 = vunpack.c.l.b16 %v166
    %v812 = vunpack.c.h.b16 %v166
    %v813 = vunpack.c.l.b16 %v167
    %v814 = vunpack.c.h.b16 %v167
    %v815 = vunpack.c.l.b16 %v168
    %v816 = vunpack.c.h.b16 %v168
    %v817 = vunpack.c.l.b16 %v169
    %v818 = vunpack.c.h.b16 %v169
    %v819 = vunpack.c.l.b16 %v170
    %v820 = vunpack.c.h.b16 %v170
    %v821 = vunpack.c.l.b16 %v171
    %v822 = vunpack.c.h.b16 %v171
    %v823 = vunpack.c.l.b16 %v172
    %v824 = vunpack.c.h.b16 %v172
    %v825 = vunpack.c.l.b16 %v173
    %v826 = vunpack.c.h.b16 %v173
    %v827 = vunpack.c.l.b16 %v174
    %v828 = vunpack.c.h.b16 %v174
    %v829 = vunpack.c.l.b16 %v175
    %v830 = vunpack.c.h.b16 %v175
    %v831 = vunpack.c.l.b16 %v176
    %v832 = vunpack.c.h.b16 %v176
    %v833 = vunpack.c.l.b16 %v177
    %v834 = vunpack.c.h.b16 %v177
    %v835 = vunpack.c.l.b16 %v178
    %v836 = vunpack.c.h.b16 %v178
    %v837 = vunpack.c.l.b16 %v179
    %v838 = vunpack.c.h.b16 %v179
    %v839 = vunpack.c.l.b16 %v180
    %v840 = vunpack.c.h.b16 %v180
    %v841 = vunpack.c.l.b16 %v181
    %v842 = vunpack.c.h.b16 %v181
    %v843 = vunpack.c.l.b16 %v182
    %v844 = vunpack.c.h.b16 %v182
    %v845 = vunpack.c.l.b16 %v183
    %v846 = vunpack.c.h.b16 %v183
    %v847 = vunpack.c.l.b16 %v184
    %v848 = vunpack.c.h.b16 %v184
    %v849 = vunpack.c.l.b16 %v185
    %v850 = vunpack.c.h.b16 %v185
    %v851 = vunpack.c.l.b16 %v186
    %v852 = vunpack.c.h.b16 %v186
    %v853 = vunpack.c.l.b16 %v187
    %v854 = vunpack.c.h.b16 %v187
    %v855 = vunpack.c.l.b16 %v188
    %v856 = vunpack.c.h.b16 %v188
    %v857 = vunpack.c.l.b16 %v189
    %v858 = vunpack.c.h.b16 %v189
    %v859 = vunpack.c.l.b16 %v190
    %v860 = vunpack.c.h.b16 %v190
    %v861 = vunpack.c.l.b16 %v191
    %v862 = vunpack.c.h.b16 %v191
    %v863 = vunpack.c.l.b16 %v192
    %v864 = vunpack.c.h.b16 %v192
    %v865 = vunpack.c.l.b16 %v193
    %v866 = vunpack.c.h.b16 %v193
    %v867 = vunpack.c.l.b16 %v194
    %v868 = vunpack.c.h.b16 %v194
    %v869 = vunpack.c.l.b16 %v195
    %v870 = vunpack.c.h.b16 %v195
    %v871 = vunpack.c.l.b16 %v196
    %v872 = vunpack.c.h.b16 %v196
    %v873 = vunpack.c.l.b16 %v197
    %v874 = vunpack.c.h.b16 %v197
    %v875 = vunpack.c.l.b16 %v198
    %v876 = vunpack.c.h.b16 %v198
    %v877 = vunpack.c.l.b16 %v199
    %v878 = vunpack.c.h.b16 %v199
    %v879 = vunpack.c.l.b16 %v200
    %v880 = vunpack.c.h.b16 %v200
    %v881 = vunpack.c.l.b16 %v201
    %v882 = vunpack.c.h.b16 %v201
    %v883 = vunpack.c.l.b16 %v202
    %v884 = vunpack.c.h.b16 %v202
    %v885 = vunpack.c.l.b16 %v203
    %v886 = vunpack.c.h.b16 %v203
    %v887 = vunpack.c.l.b16 %v204
    %v888 = vunpack.c.h.b16 %v204
    %v889 = vunpack.c.l.b16 %v205
    %v890 = vunpack.c.h.b16 %v205
    %v891 = vunpack.c.l.b16 %v206
    %v892 = vunpack.c.h.b16 %v206
    %v893 = vunpack.c.l.b16 %v207
    %v894 = vunpack.c.h.b16 %v207
    %v895 = vunpack.c.l.b16 %v208
    %v896 = vunpack.c.h.b16 %v208
    %v897 = vunpack.c.l.b16 %v209
    %v898 = vunpack.c.h.b16 %v209
    %v899 = vunpack.c.l.b16 %v210
    %v900 = vunpack.c.h.b16 %v210
    %v901 = vunpack.c.l.b16 %v211
    %v902 = vunpack.c.h.b16 %v211
    %v903 = vunpack.c.l.b16 %v212
    %v904 = vunpack.c.h.b16 %v212
    %v905 = vunpack.c.l.b16 %v213
    %v906 = vunpack.c.h.b16 %v213
    %v907 = vunpack.c.l.b16 %v214
    %v908 = vunpack.c.h.b16 %v214
    %v909 = vunpack.c.l.b16 %v215
    %v910 = vunpack.c.h.b16 %v215
    %v911 = vunpack.c.l.b16 %v216
    %v912 = vunpack.c.h.b16 %v216
    %v913 = vunpack.c.l.b16 %v217
    %v914 = vunpack.c.h.b16 %v217
    %v915 = vunpack.c.l.b16 %v218
    %v916 = vunpack.c.h.b16 %v218
    %v917 = vunpack.c.l.b16 %v219
    %v918 = vunpack.c.h.b16 %v219
    %v919 = vunpack.c.l.b16 %v220
    %v920 = vunpack.c.h.b16 %v220
    %v921 = vunpack.c.l.b16 %v221
    %v922 = vunpack.c.h.b16 %v221
    %v923 = vunpack.c.l.b16 %v222
    %v924 = vunpack.c.h.b16 %v222
    %v925 = vpack.c.b16 %v565, %v541
    %v926 = vpack.c.b16 %v566, %v542
    %v927 = vpack.c.b16 %v567, %v543
    %v928 = vpack.c.b16 %v568, %v544
    %v929 = vpack.c.b16 %v569, %v545
    %v930 = vpack.c.b16 %v570, %v546
    %v931 = vpack.c.b16 %v571, %v547
    %v932 = vpack.c.b16 %v572, %v548
    %v933 = vpack.c.b16 %v573, %v549
    %v934 = vpack.c.b16 %v574, %v550
    %v935 = vpack.c.b16 %v575, %v551
    %v936 = vpack.c.b16 %v576, %v552
    %v937 = vpack.c.b16 %v577, %v553
    %v938 = vpack.c.b16 %v578, %v554
    %v939 = vpack.c.b16 %v579, %v555
    %v940 = vpack.c.b16 %v580, %v556
    %v941 = vpack.c.b16 %v581, %v557
    %v942 = vpack.c.b16 %v582, %v558
    %v943 = vpack.c.b16 %v583, %v559
    %v944 = vpack.c.b16 %v584, %v560
    %v945 = vpack.c.b16 %v585, %v561
    %v946 = vpack.c.b16 %v586, %v562
    %v947 = vpack.c.b16 %v587, %v563
    %v948 = vpack.c.b16 %v588, %v564
    %v949 = vpack.c.b16 %v613, %v589
    %v950 = vpack.c.b16 %v614, %v590
    %v951 = vpack.c.b16 %v615, %v591
    %v952 = vpack.c.b16 %v616, %v592
    %v953 = vpack.c.b16 %v617, %v593
    %v954 = vpack.c.b16 %v618, %v594
    %v955 = vpack.c.b16 %v619, %v595
    %v956 = vpack.c.b16 %v620, %v596
    %v957 = vpack.c.b16 %v621, %v597
    %v958 = vpack.c.b16 %v622, %v598
    %v959 = vpack.c.b16 %v623, %v599
    %v960 = vpack.c.b16 %v624, %v600
    %v961 = vpack.c.b16 %v625, %v601
    %v962 = vpack.c.b16 %v626, %v602
    %v963 = vpack.c.b16 %v627, %v603
    %v964 = vpack.c.b16 %v628, %v604
    %v965 = vpack.c.b16 %v629, %v605
    %v966 = vpack.c.b16 %v630, %v606
    %v967 = vpack.c.b16 %v631, %v607
    %v968 = vpack.c.b16 %v632, %v608
    %v969 = vpack.c.b16 %v633, %v609
    %v970 = vpack.c.b16 %v634, %v610
    %v971 = vpack.c.b16 %v635, %v611
    %v972 = vpack.c.b16 %v636, %v612
    %v973 = vpack.c.b16 %v661, %v637
    %v974 = vpack.c.b16 %v662, %v638
    %v975 = vpack.c.b16 %v663, %v639
    %v976 = vpack.c.b16 %v664, %v640
    %v977 = vpack.c.b16 %v665, %v641
    %v978 = vpack.c.b16 %v666, %v642
    %v979 = vpack.c.b16 %v667, %v643
    %v980 = vpack.c.b16 %v668, %v644
    %v981 = vpack.c.b16 %v669, %v645
    %v982 = vpack.c.b16 %v670, %v646
    %v983 = vpack.c.b16 %v671, %v647
    %v984 = vpack.c.b16 %v672, %v648
    %v985 = vpack.c.b16 %v673, %v649
    %v986 = vpack.c.b16 %v674, %v650
    %v987 = vpack.c.b16 %v675, %v651
    %v988 = vpack.c.b16 %v676, %v652
    %v989 = vpack.c.b16 %v677, %v653
    %v990 = vpack.c.b16 %v678, %v654
    %v991 = vpack.c.b16 %v679, %v655
    %v992 = vpack.c.b16 %v680, %v656
    %v993 = vpack.c.b16 %v681, %v657
    %v994 = vpack.c.b16 %v682, %v658
    %v995 = vpack.c.b16 %v683, %v659
    %v996 = vpack.c.b16 %v684, %v660
    %v997 = vpack.c.b16 %v709, %v685
    %v998 = vpack.c.b16 %v710, %v686
    %v999 = vpack.c.b16 %v711, %v687
    %v1000 = vpack.c.b16 %v712, %v688
    %v1001 = vpack.c.b16 %v713, %v689
    %v1002 = vpack.c.b16 %v714, %v690
    %v1003 = vpack.c.b16 %v715, %v691
    %v1004 = vpack.c.b16 %v716, %v692
    %v1005 = vpack.c.b16 %v717, %v693
    %v1006 = vpack.c.b16 %v718, %v694
    %v1007 = vpack.c.b16 %v719, %v695
    %v1008 = vpack.c.b16 %v720, %v696
    %v1009 = vpack.c.b16 %v721, %v697
    %v1010 = vpack.c.b16 %v722, %v698
    %v1011 = vpack.c.b16 %v723, %v699
    %v1012 = vpack.c.b16 %v724, %v700
    %v1013 = vpack.c.b16 %v725, %v701
    %v1014 = vpack.c.b16 %v726, %v702
    %v1015 = vpack.c.b16 %v727, %v703
    %v1016 = vpack.c.b16 %v728, %v704
    %v1017 = vpack.c.b16 %v729, %v705
    %v1018 = vpack.c.b16 %v730, %v706
    %v1019 = vpack.c.b16 %v731, %v707
    %v1020 = vpack.c.b16 %v732, %v708
    %v1021 = vpack.c.b16 %v757, %v733
    %v1022 = vpack.c.b16 %v758, %v734
    %v1023 = vpack.c.b16 %v759, %v735
    %v1024 = vpack.c.b16 %v760, %v736
    %v1025 = vpack.c.b16 %v761, %v737
    %v1026 = vpack.c.b16 %v762, %v738
    %v1027 = vpack.c.b16 %v763, %v739
    %v1028 = vpack.c.b16 %v764, %v740
    %v1029 = vpack.c.b16 %v765, %v741
    %v1030 = vpack.c.b16 %v766, %v742
    %v1031 = vpack.c.b16 %v767, %v743
    %v1032 = vpack.c.b16 %v768, %v744
    %v1033 = vpack.c.b16 %v769, %v745
    %v1034 = vpack.c.b16 %v770, %v746
    %v1035 = vpack.c.b16 %v771, %v747
    %v1036 = vpack.c.b16 %v772, %v748
    %v1037 = vpack.c.b16 %v773, %v749
    %v1038 = vpack.c.b16 %v774, %v750
    %v1039 = vpack.c.b16 %v775, %v751
    %v1040 = vpack.c.b16 %v776, %v752
    %v1041 = vpack.c.b16 %v777, %v753
    %v1042 = vpack.c.b16 %v778, %v754
    %v1043 = vpack.c.b16 %v779, %v755
    %v1044 = vpack.c.b16 %v780, %v756
    %v1045 = vpack.c.b16 %v805, %v781
    %v1046 = vpack.c.b16 %v806, %v782
    %v1047 = vpack.c.b16 %v807, %v783
    %v1048 = vpack.c.b16 %v808, %v784
    %v1049 = vpack.c.b16 %v809, %v785
    %v1050 = vpack.c.b16 %v810, %v786
    %v1051 = vpack.c.b16 %v811, %v787
    %v1052 = vpack.c.b16 %v812, %v788
    %v1053 = vpack.c.b16 %v813, %v789
    %v1054 = vpack.c.b16 %v814, %v790
    %v1055 = vpack.c.b16 %v815, %v791
    %v1056 = vpack.c.b16 %v816, %v792
    %v1057 = vpack.c.b16 %v817, %v793
    %v1058 = vpack.c.b16 %v818, %v794
    %v1059 = vpack.c.b16 %v819, %v795
    %v1060 = vpack.c.b16 %v820, %v796
    %v1061 = vpack.c.b16 %v821, %v797
    %v1062 = vpack.c.b16 %v822, %v798
    %v1063 = vpack.c.b16 %v823, %v799
    %v1064 = vpack.c.b16 %v824, %v800
    %v1065 = vpack.c.b16 %v825, %v801
    %v1066 = vpack.c.b16 %v826, %v802
    %v1067 = vpack.c.b16 %v827, %v803
    %v1068 = vpack.c.b16 %v828, %v804
    %v1069 = vpack.c.b16 %v853, %v829
    %v1070 = vpack.c.b16 %v854, %v830
    %v1071 = vpack.c.b16 %v855, %v831
    %v1072 = vpack.c.b16 %v856, %v832
    %v1073 = vpack.c.b16 %v857, %v833
    %v1074 = vpack.c.b16 %v858, %v834
    %v1075 = vpack.c.b16 %v859, %v835
    %v1076 = vpack.c.b16 %v860, %v836
    %v1077 = vpack.c.b16 %v861, %v837
    %v1078 = vpack.c.b16 %v862, %v838
    %v1079 = vpack.c.b16 %v863, %v839
    %v1080 = vpack.c.b16 %v864, %v840
    %v1081 = vpack.c.b16 %v865, %v841
    %v1082 = vpack.c.b16 %v866, %v842
    %v1083 = vpack.c.b16 %v867, %v843
    %v1084 = vpack.c.b16 %v868, %v844
    %v1085 = vpack.c.b16 %v869, %v845
    %v1086 = vpack.c.b16 %v870, %v846
    %v1087 = vpack.c.b16 %v871, %v847
    %v1088 = vpack.c.b16 %v872, %v848
    %v1089 = vpack.c.b16 %v873, %v849
    %v1090 = vpack.c.b16 %v874, %v850
    %v1091 = vpack.c.b16 %v875, %v851
    %v1092 = vpack.c.b16 %v876, %v852
    %v1093 = vpack.c.b16 %v901, %v877
    %v1094 = vpack.c.b16 %v902, %v878
    %v1095 = vpack.c.b16 %v903, %v879
    %v1096 = vpack.c.b16 %v904, %v880
    %v1097 = vpack.c.b16 %v905, %v881
    %v1098 = vpack.c.b16 %v906, %v882
    %v1099 = vpack.c.b16 %v907, %v883
    %v1100 = vpack.c.b16 %v908, %v884
    %v1101 = vpack.c.b16 %v909, %v885
    %v1102 = vpack.c.b16 %v910, %v886
    %v1103 = vpack.c.b16 %v911, %v887
    %v1104 = vpack.c.b16 %v912, %v888
    %v1105 = vpack.c.b16 %v913, %v889
    %v1106 = vpack.c.b16 %v914, %v890
    %v1107 = vpack.c.b16 %v915, %v891
    %v1108 = vpack.c.b16 %v916, %v892
    %v1109 = vpack.c.b16 %v917, %v893
    %v1110 = vpack.c.b16 %v918, %v894
    %v1111 = vpack.c.b16 %v919, %v895
    %v1112 = vpack.c.b16 %v920, %v896
    %v1113 = vpack.c.b16 %v921, %v897
    %v1114 = vpack.c.b16 %v922, %v898
    %v1115 = vpack.c.b16 %v923, %v899
    %v1116 = vpack.c.b16 %v924, %v900
    %1309 = vmatprep.subr.bf16.mxu0 %v926
    %1310 = vmatpush1.bf16.msra.mxu0 %v925
    %1311 = vmatprep.subr.bf16.mxu0 %v950
    %1312 = vmatpush1.bf16.msra.mxu0 %v949
    %1313 = vmatprep.subr.bf16.mxu0 %v974
    %1314 = vmatpush1.bf16.msra.mxu0 %v973
    %1315 = vmatprep.subr.bf16.mxu0 %v998
    %1316 = vmatpush1.bf16.msra.mxu0 %v997
    %1317 = vmatprep.subr.bf16.mxu0 %v1022
    %1318 = vmatpush1.bf16.msra.mxu0 %v1021
    %1319 = vmatprep.subr.bf16.mxu0 %v1046
    %1320 = vmatpush1.bf16.msra.mxu0 %v1045
    %1321 = vmatprep.subr.bf16.mxu0 %v1070
    %1322 = vmatpush1.bf16.msra.mxu0 %v1069
    %1323 = vmatprep.subr.bf16.mxu0 %v1094
    %1324 = vmatpush1.bf16.msra.mxu0 %v1093
    %1325 = vmatprep.subr.bf16.mxu0 0
    %1326 = vmatpush1.bf16.msra.mxu0 0
    %1327 = vmatprep.subr.bf16.mxu0 0
    %1328 = vmatpush1.bf16.msra.mxu0 0
    %1329 = vmatprep.subr.bf16.mxu0 0
    %1330 = vmatpush1.bf16.msra.mxu0 0
    %1331 = vmatprep.subr.bf16.mxu0 0
    %1332 = vmatpush1.bf16.msra.mxu0 0
    %1333 = vmatprep.subr.bf16.mxu0 0
    %1334 = vmatpush1.bf16.msra.mxu0 0
    %1335 = vmatprep.subr.bf16.mxu0 0
    %1336 = vmatpush1.bf16.msra.mxu0 0
    %1337 = vmatprep.subr.bf16.mxu0 0
    %1338 = vmatpush1.bf16.msra.mxu0 0
    %1339 = vmatprep.subr.bf16.mxu0 0
    %1340 = vmatpush1.bf16.msra.mxu0 0
    %1341 = vmatprep.mubr.bf16.mxu0 0
    %1342 = vmatmul.mubr.bf16.gmra.mrb[0].mxu0 %v30
    %v1343 = vpop.f32.mrb[0].mxu0
    %v1344 = vadd.f32 %v232, %v1343
    %v1345 = vpop.f32.mrb[0].mxu0
    %v1346 = vadd.f32 %v236, %v1345
    %v1347 = vpop.f32.mrb[0].mxu0
    %v1348 = vadd.f32 %v232, %v1347
    %v1349 = vpop.f32.mrb[0].mxu0
    %v1350 = vadd.f32 %v236, %v1349
    %1351 = vdwg.mxu0
    %1352 = vmatprep.subr.bf16.mxu0 %v928
    %1353 = vmatpush1.bf16.msra.mxu0 %v927
    %1354 = vmatprep.subr.bf16.mxu0 %v952
    %1355 = vmatpush1.bf16.msra.mxu0 %v951
    %1356 = vmatprep.subr.bf16.mxu0 %v976
    %1357 = vmatpush1.bf16.msra.mxu0 %v975
    %1358 = vmatprep.subr.bf16.mxu0 %v1000
    %1359 = vmatpush1.bf16.msra.mxu0 %v999
    %1360 = vmatprep.subr.bf16.mxu0 %v1024
    %1361 = vmatpush1.bf16.msra.mxu0 %v1023
    %1362 = vmatprep.subr.bf16.mxu0 %v1048
    %1363 = vmatpush1.bf16.msra.mxu0 %v1047
    %1364 = vmatprep.subr.bf16.mxu0 %v1072
    %1365 = vmatpush1.bf16.msra.mxu0 %v1071
    %1366 = vmatprep.subr.bf16.mxu0 %v1096
    %1367 = vmatpush1.bf16.msra.mxu0 %v1095
    %1368 = vmatprep.subr.bf16.mxu0 0
    %1369 = vmatpush1.bf16.msra.mxu0 0
    %1370 = vmatprep.subr.bf16.mxu0 0
    %1371 = vmatpush1.bf16.msra.mxu0 0
    %1372 = vmatprep.subr.bf16.mxu0 0
    %1373 = vmatpush1.bf16.msra.mxu0 0
    %1374 = vmatprep.subr.bf16.mxu0 0
    %1375 = vmatpush1.bf16.msra.mxu0 0
    %1376 = vmatprep.subr.bf16.mxu0 0
    %1377 = vmatpush1.bf16.msra.mxu0 0
    %1378 = vmatprep.subr.bf16.mxu0 0
    %1379 = vmatpush1.bf16.msra.mxu0 0
    %1380 = vmatprep.subr.bf16.mxu0 0
    %1381 = vmatpush1.bf16.msra.mxu0 0
    %1382 = vmatprep.subr.bf16.mxu0 0
    %1383 = vmatpush1.bf16.msra.mxu0 0
    %1384 = vmatprep.mubr.bf16.mxu0 0
    %1385 = vmatmul.mubr.bf16.gmra.mrb[0].mxu0 %v30
    %v1386 = vpop.f32.mrb[0].mxu0
    %v1387 = vadd.f32 %v240, %v1386
    %v1388 = vpop.f32.mrb[0].mxu0
    %v1389 = vadd.f32 %v244, %v1388
    %v1390 = vpop.f32.mrb[0].mxu0
    %v1391 = vadd.f32 %v240, %v1390
    %v1392 = vpop.f32.mrb[0].mxu0
    %v1393 = vadd.f32 %v244, %v1392
    %1394 = vdwg.mxu0
    %1395 = vmatprep.subr.bf16.mxu0 %v930
    %1396 = vmatpush1.bf16.msra.mxu0 %v929
    %1397 = vmatprep.subr.bf16.mxu0 %v954
    %1398 = vmatpush1.bf16.msra.mxu0 %v953
    %1399 = vmatprep.subr.bf16.mxu0 %v978
    %1400 = vmatpush1.bf16.msra.mxu0 %v977
    %1401 = vmatprep.subr.bf16.mxu0 %v1002
    %1402 = vmatpush1.bf16.msra.mxu0 %v1001
    %1403 = vmatprep.subr.bf16.mxu0 %v1026
    %1404 = vmatpush1.bf16.msra.mxu0 %v1025
    %1405 = vmatprep.subr.bf16.mxu0 %v1050
    %1406 = vmatpush1.bf16.msra.mxu0 %v1049
    %1407 = vmatprep.subr.bf16.mxu0 %v1074
    %1408 = vmatpush1.bf16.msra.mxu0 %v1073
    %1409 = vmatprep.subr.bf16.mxu0 %v1098
    %1410 = vmatpush1.bf16.msra.mxu0 %v1097
    %1411 = vmatprep.subr.bf16.mxu0 0
    %1412 = vmatpush1.bf16.msra.mxu0 0
    %1413 = vmatprep.subr.bf16.mxu0 0
    %1414 = vmatpush1.bf16.msra.mxu0 0
    %1415 = vmatprep.subr.bf16.mxu0 0
    %1416 = vmatpush1.bf16.msra.mxu0 0
    %1417 = vmatprep.subr.bf16.mxu0 0
    %1418 = vmatpush1.bf16.msra.mxu0 0
    %1419 = vmatprep.subr.bf16.mxu0 0
    %1420 = vmatpush1.bf16.msra.mxu0 0
    %1421 = vmatprep.subr.bf16.mxu0 0
    %1422 = vmatpush1.bf16.msra.mxu0 0
    %1423 = vmatprep.subr.bf16.mxu0 0
    %1424 = vmatpush1.bf16.msra.mxu0 0
    %1425 = vmatprep.subr.bf16.mxu0 0
    %1426 = vmatpush1.bf16.msra.mxu0 0
    %1427 = vmatprep.mubr.bf16.mxu0 0
    %1428 = vmatmul.mubr.bf16.gmra.mrb[0].mxu0 %v30
    %v1429 = vpop.f32.mrb[0].mxu0
    %v1430 = vadd.f32 %v248, %v1429
    %v1431 = vpop.f32.mrb[0].mxu0
    %v1432 = vadd.f32 %v252, %v1431
    %v1433 = vpop.f32.mrb[0].mxu0
    %v1434 = vadd.f32 %v248, %v1433
    %v1435 = vpop.f32.mrb[0].mxu0
    %v1436 = vadd.f32 %v252, %v1435
    %1437 = vdwg.mxu0
    %1438 = vmatprep.subr.bf16.mxu0 %v932
    %1439 = vmatpush1.bf16.msra.mxu0 %v931
    %1440 = vmatprep.subr.bf16.mxu0 %v956
    %1441 = vmatpush1.bf16.msra.mxu0 %v955
    %1442 = vmatprep.subr.bf16.mxu0 %v980
    %1443 = vmatpush1.bf16.msra.mxu0 %v979
    %1444 = vmatprep.subr.bf16.mxu0 %v1004
    %1445 = vmatpush1.bf16.msra.mxu0 %v1003
    %1446 = vmatprep.subr.bf16.mxu0 %v1028
    %1447 = vmatpush1.bf16.msra.mxu0 %v1027
    %1448 = vmatprep.subr.bf16.mxu0 %v1052
    %1449 = vmatpush1.bf16.msra.mxu0 %v1051
    %1450 = vmatprep.subr.bf16.mxu0 %v1076
    %1451 = vmatpush1.bf16.msra.mxu0 %v1075
    %1452 = vmatprep.subr.bf16.mxu0 %v1100
    %1453 = vmatpush1.bf16.msra.mxu0 %v1099
    %1454 = vmatprep.subr.bf16.mxu0 0
    %1455 = vmatpush1.bf16.msra.mxu0 0
    %1456 = vmatprep.subr.bf16.mxu0 0
    %1457 = vmatpush1.bf16.msra.mxu0 0
    %1458 = vmatprep.subr.bf16.mxu0 0
    %1459 = vmatpush1.bf16.msra.mxu0 0
    %1460 = vmatprep.subr.bf16.mxu0 0
    %1461 = vmatpush1.bf16.msra.mxu0 0
    %1462 = vmatprep.subr.bf16.mxu0 0
    %1463 = vmatpush1.bf16.msra.mxu0 0
    %1464 = vmatprep.subr.bf16.mxu0 0
    %1465 = vmatpush1.bf16.msra.mxu0 0
    %1466 = vmatprep.subr.bf16.mxu0 0
    %1467 = vmatpush1.bf16.msra.mxu0 0
    %1468 = vmatprep.subr.bf16.mxu0 0
    %1469 = vmatpush1.bf16.msra.mxu0 0
    %1470 = vmatprep.mubr.bf16.mxu0 0
    %1471 = vmatmul.mubr.bf16.gmra.mrb[0].mxu0 %v30
    %v1472 = vpop.f32.mrb[0].mxu0
    %v1473 = vadd.f32 %v256, %v1472
    %v1474 = vpop.f32.mrb[0].mxu0
    %v1475 = vadd.f32 %v260, %v1474
    %v1476 = vpop.f32.mrb[0].mxu0
    %v1477 = vadd.f32 %v256, %v1476
    %v1478 = vpop.f32.mrb[0].mxu0
    %v1479 = vadd.f32 %v260, %v1478
    %1480 = vdwg.mxu0
    %1481 = vmatprep.subr.bf16.mxu0 %v934
    %1482 = vmatpush1.bf16.msra.mxu0 %v933
    %1483 = vmatprep.subr.bf16.mxu0 %v958
    %1484 = vmatpush1.bf16.msra.mxu0 %v957
    %1485 = vmatprep.subr.bf16.mxu0 %v982
    %1486 = vmatpush1.bf16.msra.mxu0 %v981
    %1487 = vmatprep.subr.bf16.mxu0 %v1006
    %1488 = vmatpush1.bf16.msra.mxu0 %v1005
    %1489 = vmatprep.subr.bf16.mxu0 %v1030
    %1490 = vmatpush1.bf16.msra.mxu0 %v1029
    %1491 = vmatprep.subr.bf16.mxu0 %v1054
    %1492 = vmatpush1.bf16.msra.mxu0 %v1053
    %1493 = vmatprep.subr.bf16.mxu0 %v1078
    %1494 = vmatpush1.bf16.msra.mxu0 %v1077
    %1495 = vmatprep.subr.bf16.mxu0 %v1102
    %1496 = vmatpush1.bf16.msra.mxu0 %v1101
    %1497 = vmatprep.subr.bf16.mxu0 0
    %1498 = vmatpush1.bf16.msra.mxu0 0
    %1499 = vmatprep.subr.bf16.mxu0 0
    %1500 = vmatpush1.bf16.msra.mxu0 0
    %1501 = vmatprep.subr.bf16.mxu0 0
    %1502 = vmatpush1.bf16.msra.mxu0 0
    %1503 = vmatprep.subr.bf16.mxu0 0
    %1504 = vmatpush1.bf16.msra.mxu0 0
    %1505 = vmatprep.subr.bf16.mxu0 0
    %1506 = vmatpush1.bf16.msra.mxu0 0
    %1507 = vmatprep.subr.bf16.mxu0 0
    %1508 = vmatpush1.bf16.msra.mxu0 0
    %1509 = vmatprep.subr.bf16.mxu0 0
    %1510 = vmatpush1.bf16.msra.mxu0 0
    %1511 = vmatprep.subr.bf16.mxu0 0
    %1512 = vmatpush1.bf16.msra.mxu0 0
    %1513 = vmatprep.mubr.bf16.mxu0 0
    %1514 = vmatmul.mubr.bf16.gmra.mrb[0].mxu0 %v30
    %v1515 = vpop.f32.mrb[0].mxu0
    %v1516 = vadd.f32 %v264, %v1515
    %v1517 = vpop.f32.mrb[0].mxu0
    %v1518 = vadd.f32 %v268, %v1517
    %v1519 = vpop.f32.mrb[0].mxu0
    %v1520 = vadd.f32 %v264, %v1519
    %v1521 = vpop.f32.mrb[0].mxu0
    %v1522 = vadd.f32 %v268, %v1521
    %1523 = vdwg.mxu0
    %1524 = vmatprep.subr.bf16.mxu0 %v936
    %1525 = vmatpush1.bf16.msra.mxu0 %v935
    %1526 = vmatprep.subr.bf16.mxu0 %v960
    %1527 = vmatpush1.bf16.msra.mxu0 %v959
    %1528 = vmatprep.subr.bf16.mxu0 %v984
    %1529 = vmatpush1.bf16.msra.mxu0 %v983
    %1530 = vmatprep.subr.bf16.mxu0 %v1008
    %1531 = vmatpush1.bf16.msra.mxu0 %v1007
    %1532 = vmatprep.subr.bf16.mxu0 %v1032
    %1533 = vmatpush1.bf16.msra.mxu0 %v1031
    %1534 = vmatprep.subr.bf16.mxu0 %v1056
    %1535 = vmatpush1.bf16.msra.mxu0 %v1055
    %1536 = vmatprep.subr.bf16.mxu0 %v1080
    %1537 = vmatpush1.bf16.msra.mxu0 %v1079
    %1538 = vmatprep.subr.bf16.mxu0 %v1104
    %1539 = vmatpush1.bf16.msra.mxu0 %v1103
    %1540 = vmatprep.subr.bf16.mxu0 0
    %1541 = vmatpush1.bf16.msra.mxu0 0
    %1542 = vmatprep.subr.bf16.mxu0 0
    %1543 = vmatpush1.bf16.msra.mxu0 0
    %1544 = vmatprep.subr.bf16.mxu0 0
    %1545 = vmatpush1.bf16.msra.mxu0 0
    %1546 = vmatprep.subr.bf16.mxu0 0
    %1547 = vmatpush1.bf16.msra.mxu0 0
    %1548 = vmatprep.subr.bf16.mxu0 0
    %1549 = vmatpush1.bf16.msra.mxu0 0
    %1550 = vmatprep.subr.bf16.mxu0 0
    %1551 = vmatpush1.bf16.msra.mxu0 0
    %1552 = vmatprep.subr.bf16.mxu0 0
    %1553 = vmatpush1.bf16.msra.mxu0 0
    %1554 = vmatprep.subr.bf16.mxu0 0
    %1555 = vmatpush1.bf16.msra.mxu0 0
    %1556 = vmatprep.mubr.bf16.mxu0 0
    %1557 = vmatmul.mubr.bf16.gmra.mrb[0].mxu0 %v30
    %v1558 = vpop.f32.mrb[0].mxu0
    %v1559 = vadd.f32 %v272, %v1558
    %v1560 = vpop.f32.mrb[0].mxu0
    %v1561 = vadd.f32 %v276, %v1560
    %v1562 = vpop.f32.mrb[0].mxu0
    %v1563 = vadd.f32 %v272, %v1562
    %v1564 = vpop.f32.mrb[0].mxu0
    %v1565 = vadd.f32 %v276, %v1564
    %1566 = vdwg.mxu0
    %1567 = vmatprep.subr.bf16.mxu0 %v938
    %1568 = vmatpush1.bf16.msra.mxu0 %v937
    %1569 = vmatprep.subr.bf16.mxu0 %v962
    %1570 = vmatpush1.bf16.msra.mxu0 %v961
    %1571 = vmatprep.subr.bf16.mxu0 %v986
    %1572 = vmatpush1.bf16.msra.mxu0 %v985
    %1573 = vmatprep.subr.bf16.mxu0 %v1010
    %1574 = vmatpush1.bf16.msra.mxu0 %v1009
    %1575 = vmatprep.subr.bf16.mxu0 %v1034
    %1576 = vmatpush1.bf16.msra.mxu0 %v1033
    %1577 = vmatprep.subr.bf16.mxu0 %v1058
    %1578 = vmatpush1.bf16.msra.mxu0 %v1057
    %1579 = vmatprep.subr.bf16.mxu0 %v1082
    %1580 = vmatpush1.bf16.msra.mxu0 %v1081
    %1581 = vmatprep.subr.bf16.mxu0 %v1106
    %1582 = vmatpush1.bf16.msra.mxu0 %v1105
    %1583 = vmatprep.subr.bf16.mxu0 0
    %1584 = vmatpush1.bf16.msra.mxu0 0
    %1585 = vmatprep.subr.bf16.mxu0 0
    %1586 = vmatpush1.bf16.msra.mxu0 0
    %1587 = vmatprep.subr.bf16.mxu0 0
    %1588 = vmatpush1.bf16.msra.mxu0 0
    %1589 = vmatprep.subr.bf16.mxu0 0
    %1590 = vmatpush1.bf16.msra.mxu0 0
    %1591 = vmatprep.subr.bf16.mxu0 0
    %1592 = vmatpush1.bf16.msra.mxu0 0
    %1593 = vmatprep.subr.bf16.mxu0 0
    %1594 = vmatpush1.bf16.msra.mxu0 0
    %1595 = vmatprep.subr.bf16.mxu0 0
    %1596 = vmatpush1.bf16.msra.mxu0 0
    %1597 = vmatprep.subr.bf16.mxu0 0
    %1598 = vmatpush1.bf16.msra.mxu0 0
    %1599 = vmatprep.mubr.bf16.mxu0 0
    %1600 = vmatmul.mubr.bf16.gmra.mrb[0].mxu0 %v30
    %v1601 = vpop.f32.mrb[0].mxu0
    %v1602 = vadd.f32 %v280, %v1601
    %v1603 = vpop.f32.mrb[0].mxu0
    %v1604 = vadd.f32 %v284, %v1603
    %v1605 = vpop.f32.mrb[0].mxu0
    %v1606 = vadd.f32 %v280, %v1605
    %v1607 = vpop.f32.mrb[0].mxu0
    %v1608 = vadd.f32 %v284, %v1607
    %1609 = vdwg.mxu0
    %1610 = vmatprep.subr.bf16.mxu0 %v940
    %1611 = vmatpush1.bf16.msra.mxu0 %v939
    %1612 = vmatprep.subr.bf16.mxu0 %v964
    %1613 = vmatpush1.bf16.msra.mxu0 %v963
    %1614 = vmatprep.subr.bf16.mxu0 %v988
    %1615 = vmatpush1.bf16.msra.mxu0 %v987
    %1616 = vmatprep.subr.bf16.mxu0 %v1012
    %1617 = vmatpush1.bf16.msra.mxu0 %v1011
    %1618 = vmatprep.subr.bf16.mxu0 %v1036
    %1619 = vmatpush1.bf16.msra.mxu0 %v1035
    %1620 = vmatprep.subr.bf16.mxu0 %v1060
    %1621 = vmatpush1.bf16.msra.mxu0 %v1059
    %1622 = vmatprep.subr.bf16.mxu0 %v1084
    %1623 = vmatpush1.bf16.msra.mxu0 %v1083
    %1624 = vmatprep.subr.bf16.mxu0 %v1108
    %1625 = vmatpush1.bf16.msra.mxu0 %v1107
    %1626 = vmatprep.subr.bf16.mxu0 0
    %1627 = vmatpush1.bf16.msra.mxu0 0
    %1628 = vmatprep.subr.bf16.mxu0 0
    %1629 = vmatpush1.bf16.msra.mxu0 0
    %1630 = vmatprep.subr.bf16.mxu0 0
    %1631 = vmatpush1.bf16.msra.mxu0 0
    %1632 = vmatprep.subr.bf16.mxu0 0
    %1633 = vmatpush1.bf16.msra.mxu0 0
    %1634 = vmatprep.subr.bf16.mxu0 0
    %1635 = vmatpush1.bf16.msra.mxu0 0
    %1636 = vmatprep.subr.bf16.mxu0 0
    %1637 = vmatpush1.bf16.msra.mxu0 0
    %1638 = vmatprep.subr.bf16.mxu0 0
    %1639 = vmatpush1.bf16.msra.mxu0 0
    %1640 = vmatprep.subr.bf16.mxu0 0
    %1641 = vmatpush1.bf16.msra.mxu0 0
    %1642 = vmatprep.mubr.bf16.mxu0 0
    %1643 = vmatmul.mubr.bf16.gmra.mrb[0].mxu0 %v30
    %v1644 = vpop.f32.mrb[0].mxu0
    %v1645 = vadd.f32 %v288, %v1644
    %v1646 = vpop.f32.mrb[0].mxu0
    %v1647 = vadd.f32 %v292, %v1646
    %v1648 = vpop.f32.mrb[0].mxu0
    %v1649 = vadd.f32 %v288, %v1648
    %v1650 = vpop.f32.mrb[0].mxu0
    %v1651 = vadd.f32 %v292, %v1650
    %1652 = vdwg.mxu0
    %1653 = vmatprep.subr.bf16.mxu0 %v942
    %1654 = vmatpush1.bf16.msra.mxu0 %v941
    %1655 = vmatprep.subr.bf16.mxu0 %v966
    %1656 = vmatpush1.bf16.msra.mxu0 %v965
    %1657 = vmatprep.subr.bf16.mxu0 %v990
    %1658 = vmatpush1.bf16.msra.mxu0 %v989
    %1659 = vmatprep.subr.bf16.mxu0 %v1014
    %1660 = vmatpush1.bf16.msra.mxu0 %v1013
    %1661 = vmatprep.subr.bf16.mxu0 %v1038
    %1662 = vmatpush1.bf16.msra.mxu0 %v1037
    %1663 = vmatprep.subr.bf16.mxu0 %v1062
    %1664 = vmatpush1.bf16.msra.mxu0 %v1061
    %1665 = vmatprep.subr.bf16.mxu0 %v1086
    %1666 = vmatpush1.bf16.msra.mxu0 %v1085
    %1667 = vmatprep.subr.bf16.mxu0 %v1110
    %1668 = vmatpush1.bf16.msra.mxu0 %v1109
    %1669 = vmatprep.subr.bf16.mxu0 0
    %1670 = vmatpush1.bf16.msra.mxu0 0
    %1671 = vmatprep.subr.bf16.mxu0 0
    %1672 = vmatpush1.bf16.msra.mxu0 0
    %1673 = vmatprep.subr.bf16.mxu0 0
    %1674 = vmatpush1.bf16.msra.mxu0 0
    %1675 = vmatprep.subr.bf16.mxu0 0
    %1676 = vmatpush1.bf16.msra.mxu0 0
    %1677 = vmatprep.subr.bf16.mxu0 0
    %1678 = vmatpush1.bf16.msra.mxu0 0
    %1679 = vmatprep.subr.bf16.mxu0 0
    %1680 = vmatpush1.bf16.msra.mxu0 0
    %1681 = vmatprep.subr.bf16.mxu0 0
    %1682 = vmatpush1.bf16.msra.mxu0 0
    %1683 = vmatprep.subr.bf16.mxu0 0
    %1684 = vmatpush1.bf16.msra.mxu0 0
    %1685 = vmatprep.mubr.bf16.mxu0 0
    %1686 = vmatmul.mubr.bf16.gmra.mrb[0].mxu0 %v30
    %v1687 = vpop.f32.mrb[0].mxu0
    %v1688 = vadd.f32 %v296, %v1687
    %v1689 = vpop.f32.mrb[0].mxu0
    %v1690 = vadd.f32 %v300, %v1689
    %v1691 = vpop.f32.mrb[0].mxu0
    %v1692 = vadd.f32 %v296, %v1691
    %v1693 = vpop.f32.mrb[0].mxu0
    %v1694 = vadd.f32 %v300, %v1693
    %1695 = vdwg.mxu0
    %1696 = vmatprep.subr.bf16.mxu0 %v944
    %1697 = vmatpush1.bf16.msra.mxu0 %v943
    %1698 = vmatprep.subr.bf16.mxu0 %v968
    %1699 = vmatpush1.bf16.msra.mxu0 %v967
    %1700 = vmatprep.subr.bf16.mxu0 %v992
    %1701 = vmatpush1.bf16.msra.mxu0 %v991
    %1702 = vmatprep.subr.bf16.mxu0 %v1016
    %1703 = vmatpush1.bf16.msra.mxu0 %v1015
    %1704 = vmatprep.subr.bf16.mxu0 %v1040
    %1705 = vmatpush1.bf16.msra.mxu0 %v1039
    %1706 = vmatprep.subr.bf16.mxu0 %v1064
    %1707 = vmatpush1.bf16.msra.mxu0 %v1063
    %1708 = vmatprep.subr.bf16.mxu0 %v1088
    %1709 = vmatpush1.bf16.msra.mxu0 %v1087
    %1710 = vmatprep.subr.bf16.mxu0 %v1112
    %1711 = vmatpush1.bf16.msra.mxu0 %v1111
    %1712 = vmatprep.subr.bf16.mxu0 0
    %1713 = vmatpush1.bf16.msra.mxu0 0
    %1714 = vmatprep.subr.bf16.mxu0 0
    %1715 = vmatpush1.bf16.msra.mxu0 0
    %1716 = vmatprep.subr.bf16.mxu0 0
    %1717 = vmatpush1.bf16.msra.mxu0 0
    %1718 = vmatprep.subr.bf16.mxu0 0
    %1719 = vmatpush1.bf16.msra.mxu0 0
    %1720 = vmatprep.subr.bf16.mxu0 0
    %1721 = vmatpush1.bf16.msra.mxu0 0
    %1722 = vmatprep.subr.bf16.mxu0 0
    %1723 = vmatpush1.bf16.msra.mxu0 0
    %1724 = vmatprep.subr.bf16.mxu0 0
    %1725 = vmatpush1.bf16.msra.mxu0 0
    %1726 = vmatprep.subr.bf16.mxu0 0
    %1727 = vmatpush1.bf16.msra.mxu0 0
    %1728 = vmatprep.mubr.bf16.mxu0 0
    %1729 = vmatmul.mubr.bf16.gmra.mrb[0].mxu0 %v30
    %v1730 = vpop.f32.mrb[0].mxu0
    %v1731 = vadd.f32 %v304, %v1730
    %v1732 = vpop.f32.mrb[0].mxu0
    %v1733 = vadd.f32 %v308, %v1732
    %v1734 = vpop.f32.mrb[0].mxu0
    %v1735 = vadd.f32 %v304, %v1734
    %v1736 = vpop.f32.mrb[0].mxu0
    %v1737 = vadd.f32 %v308, %v1736
    %1738 = vdwg.mxu0
    %1739 = vmatprep.subr.bf16.mxu0 %v946
    %1740 = vmatpush1.bf16.msra.mxu0 %v945
    %1741 = vmatprep.subr.bf16.mxu0 %v970
    %1742 = vmatpush1.bf16.msra.mxu0 %v969
    %1743 = vmatprep.subr.bf16.mxu0 %v994
    %1744 = vmatpush1.bf16.msra.mxu0 %v993
    %1745 = vmatprep.subr.bf16.mxu0 %v1018
    %1746 = vmatpush1.bf16.msra.mxu0 %v1017
    %1747 = vmatprep.subr.bf16.mxu0 %v1042
    %1748 = vmatpush1.bf16.msra.mxu0 %v1041
    %1749 = vmatprep.subr.bf16.mxu0 %v1066
    %1750 = vmatpush1.bf16.msra.mxu0 %v1065
    %1751 = vmatprep.subr.bf16.mxu0 %v1090
    %1752 = vmatpush1.bf16.msra.mxu0 %v1089
    %1753 = vmatprep.subr.bf16.mxu0 %v1114
    %1754 = vmatpush1.bf16.msra.mxu0 %v1113
    %1755 = vmatprep.subr.bf16.mxu0 0
    %1756 = vmatpush1.bf16.msra.mxu0 0
    %1757 = vmatprep.subr.bf16.mxu0 0
    %1758 = vmatpush1.bf16.msra.mxu0 0
    %1759 = vmatprep.subr.bf16.mxu0 0
    %1760 = vmatpush1.bf16.msra.mxu0 0
    %1761 = vmatprep.subr.bf16.mxu0 0
    %1762 = vmatpush1.bf16.msra.mxu0 0
    %1763 = vmatprep.subr.bf16.mxu0 0
    %1764 = vmatpush1.bf16.msra.mxu0 0
    %1765 = vmatprep.subr.bf16.mxu0 0
    %1766 = vmatpush1.bf16.msra.mxu0 0
    %1767 = vmatprep.subr.bf16.mxu0 0
    %1768 = vmatpush1.bf16.msra.mxu0 0
    %1769 = vmatprep.subr.bf16.mxu0 0
    %1770 = vmatpush1.bf16.msra.mxu0 0
    %1771 = vmatprep.mubr.bf16.mxu0 0
    %1772 = vmatmul.mubr.bf16.gmra.mrb[0].mxu0 %v30
    %v1773 = vpop.f32.mrb[0].mxu0
    %v1774 = vadd.f32 %v312, %v1773
    %v1775 = vpop.f32.mrb[0].mxu0
    %v1776 = vadd.f32 %v316, %v1775
    %v1777 = vpop.f32.mrb[0].mxu0
    %v1778 = vadd.f32 %v312, %v1777
    %v1779 = vpop.f32.mrb[0].mxu0
    %v1780 = vadd.f32 %v316, %v1779
    %1781 = vdwg.mxu0
    %1782 = vmatprep.subr.bf16.mxu0 %v948
    %1783 = vmatpush1.bf16.msra.mxu0 %v947
    %1784 = vmatprep.subr.bf16.mxu0 %v972
    %1785 = vmatpush1.bf16.msra.mxu0 %v971
    %1786 = vmatprep.subr.bf16.mxu0 %v996
    %1787 = vmatpush1.bf16.msra.mxu0 %v995
    %1788 = vmatprep.subr.bf16.mxu0 %v1020
    %1789 = vmatpush1.bf16.msra.mxu0 %v1019
    %1790 = vmatprep.subr.bf16.mxu0 %v1044
    %1791 = vmatpush1.bf16.msra.mxu0 %v1043
    %1792 = vmatprep.subr.bf16.mxu0 %v1068
    %1793 = vmatpush1.bf16.msra.mxu0 %v1067
    %1794 = vmatprep.subr.bf16.mxu0 %v1092
    %1795 = vmatpush1.bf16.msra.mxu0 %v1091
    %1796 = vmatprep.subr.bf16.mxu0 %v1116
    %1797 = vmatpush1.bf16.msra.mxu0 %v1115
    %1798 = vmatprep.subr.bf16.mxu0 0
    %1799 = vmatpush1.bf16.msra.mxu0 0
    %1800 = vmatprep.subr.bf16.mxu0 0
    %1801 = vmatpush1.bf16.msra.mxu0 0
    %1802 = vmatprep.subr.bf16.mxu0 0
    %1803 = vmatpush1.bf16.msra.mxu0 0
    %1804 = vmatprep.subr.bf16.mxu0 0
    %1805 = vmatpush1.bf16.msra.mxu0 0
    %1806 = vmatprep.subr.bf16.mxu0 0
    %1807 = vmatpush1.bf16.msra.mxu0 0
    %1808 = vmatprep.subr.bf16.mxu0 0
    %1809 = vmatpush1.bf16.msra.mxu0 0
    %1810 = vmatprep.subr.bf16.mxu0 0
    %1811 = vmatpush1.bf16.msra.mxu0 0
    %1812 = vmatprep.subr.bf16.mxu0 0
    %1813 = vmatpush1.bf16.msra.mxu0 0
    %1814 = vmatprep.mubr.bf16.mxu0 0
    %1815 = vmatmul.mubr.bf16.gmra.mrb[0].mxu0 %v30
    %v1816 = vpop.f32.mrb[0].mxu0
    %v1817 = vadd.f32 %v320, %v1816
    %v1818 = vpop.f32.mrb[0].mxu0
    %v1819 = vadd.f32 %v324, %v1818
    %v1820 = vpop.f32.mrb[0].mxu0
    %v1821 = vadd.f32 %v320, %v1820
    %v1822 = vpop.f32.mrb[0].mxu0
    %v1823 = vadd.f32 %v324, %v1822
    %1824 = vdwg.mxu0
    %v1825 = vmul.f32 %v1344, 0.5
    %v1826 = vmul.f32 %v1346, 0.5
    %v1827 = vmul.f32 %v1387, 0.5
    %v1828 = vmul.f32 %v1389, 0.5
    %v1829 = vmul.f32 %v1430, 0.5
    %v1830 = vmul.f32 %v1432, 0.5
    %v1831 = vmul.f32 %v1473, 0.5
    %v1832 = vmul.f32 %v1475, 0.5
    %v1833 = vmul.f32 %v1516, 0.5
    %v1834 = vmul.f32 %v1518, 0.5
    %v1835 = vmul.f32 %v1559, 0.5
    %v1836 = vmul.f32 %v1561, 0.5
    %v1837 = vmul.f32 %v1602, 0.5
    %v1838 = vmul.f32 %v1604, 0.5
    %v1839 = vmul.f32 %v1645, 0.5
    %v1840 = vmul.f32 %v1647, 0.5
    %v1841 = vmul.f32 %v1688, 0.5
    %v1842 = vmul.f32 %v1690, 0.5
    %v1843 = vmul.f32 %v1731, 0.5
    %v1844 = vmul.f32 %v1733, 0.5
    %v1845 = vmul.f32 %v1774, 0.5
    %v1846 = vmul.f32 %v1776, 0.5
    %v1847 = vmul.f32 %v1817, 0.5
    %v1848 = vmul.f32 %v1819, 0.5
    %v1849 = vmul.f32 %v1348, 0.5
    %v1850 = vmul.f32 %v1350, 0.5
    %v1851 = vmul.f32 %v1391, 0.5
    %v1852 = vmul.f32 %v1393, 0.5
    %v1853 = vmul.f32 %v1434, 0.5
    %v1854 = vmul.f32 %v1436, 0.5
    %v1855 = vmul.f32 %v1477, 0.5
    %v1856 = vmul.f32 %v1479, 0.5
    %v1857 = vmul.f32 %v1520, 0.5
    %v1858 = vmul.f32 %v1522, 0.5
    %v1859 = vmul.f32 %v1563, 0.5
    %v1860 = vmul.f32 %v1565, 0.5
    %v1861 = vmul.f32 %v1606, 0.5
    %v1862 = vmul.f32 %v1608, 0.5
    %v1863 = vmul.f32 %v1649, 0.5
    %v1864 = vmul.f32 %v1651, 0.5
    %v1865 = vmul.f32 %v1692, 0.5
    %v1866 = vmul.f32 %v1694, 0.5
    %v1867 = vmul.f32 %v1735, 0.5
    %v1868 = vmul.f32 %v1737, 0.5
    %v1869 = vmul.f32 %v1778, 0.5
    %v1870 = vmul.f32 %v1780, 0.5
    %v1871 = vmul.f32 %v1821, 0.5
    %v1872 = vmul.f32 %v1823, 0.5
    %v1873 = vmul.f32 %v1344, 0.70710677
    %v1874 = vmul.f32 %v1346, 0.70710677
    %v1875 = vmul.f32 %v1387, 0.70710677
    %v1876 = vmul.f32 %v1389, 0.70710677
    %v1877 = vmul.f32 %v1430, 0.70710677
    %v1878 = vmul.f32 %v1432, 0.70710677
    %v1879 = vmul.f32 %v1473, 0.70710677
    %v1880 = vmul.f32 %v1475, 0.70710677
    %v1881 = vmul.f32 %v1516, 0.70710677
    %v1882 = vmul.f32 %v1518, 0.70710677
    %v1883 = vmul.f32 %v1559, 0.70710677
    %v1884 = vmul.f32 %v1561, 0.70710677
    %v1885 = vmul.f32 %v1602, 0.70710677
    %v1886 = vmul.f32 %v1604, 0.70710677
    %v1887 = vmul.f32 %v1645, 0.70710677
    %v1888 = vmul.f32 %v1647, 0.70710677
    %v1889 = vmul.f32 %v1688, 0.70710677
    %v1890 = vmul.f32 %v1690, 0.70710677
    %v1891 = vmul.f32 %v1731, 0.70710677
    %v1892 = vmul.f32 %v1733, 0.70710677
    %v1893 = vmul.f32 %v1774, 0.70710677
    %v1894 = vmul.f32 %v1776, 0.70710677
    %v1895 = vmul.f32 %v1817, 0.70710677
    %v1896 = vmul.f32 %v1819, 0.70710677
    %v1897 = vmul.f32 %v1348, 0.70710677
    %v1898 = vmul.f32 %v1350, 0.70710677
    %v1899 = vmul.f32 %v1391, 0.70710677
    %v1900 = vmul.f32 %v1393, 0.70710677
    %v1901 = vmul.f32 %v1434, 0.70710677
    %v1902 = vmul.f32 %v1436, 0.70710677
    %v1903 = vmul.f32 %v1477, 0.70710677
    %v1904 = vmul.f32 %v1479, 0.70710677
    %v1905 = vmul.f32 %v1520, 0.70710677
    %v1906 = vmul.f32 %v1522, 0.70710677
    %v1907 = vmul.f32 %v1563, 0.70710677
    %v1908 = vmul.f32 %v1565, 0.70710677
    %v1909 = vmul.f32 %v1606, 0.70710677
    %v1910 = vmul.f32 %v1608, 0.70710677
    %v1911 = vmul.f32 %v1649, 0.70710677
    %v1912 = vmul.f32 %v1651, 0.70710677
    %v1913 = vmul.f32 %v1692, 0.70710677
    %v1914 = vmul.f32 %v1694, 0.70710677
    %v1915 = vmul.f32 %v1735, 0.70710677
    %v1916 = vmul.f32 %v1737, 0.70710677
    %v1917 = vmul.f32 %v1778, 0.70710677
    %v1918 = vmul.f32 %v1780, 0.70710677
    %v1919 = vmul.f32 %v1821, 0.70710677
    %v1920 = vmul.f32 %v1823, 0.70710677
    %v1921 = verf.f32.pop %v1873
    %v1922 = verf.f32.pop %v1874
    %v1923 = verf.f32.pop %v1875
    %v1924 = verf.f32.pop %v1876
    %v1925 = verf.f32.pop %v1877
    %v1926 = verf.f32.pop %v1878
    %v1927 = verf.f32.pop %v1879
    %v1928 = verf.f32.pop %v1880
    %v1929 = verf.f32.pop %v1881
    %v1930 = verf.f32.pop %v1882
    %v1931 = verf.f32.pop %v1883
    %v1932 = verf.f32.pop %v1884
    %v1933 = verf.f32.pop %v1885
    %v1934 = verf.f32.pop %v1886
    %v1935 = verf.f32.pop %v1887
    %v1936 = verf.f32.pop %v1888
    %v1937 = verf.f32.pop %v1889
    %v1938 = verf.f32.pop %v1890
    %v1939 = verf.f32.pop %v1891
    %v1940 = verf.f32.pop %v1892
    %v1941 = verf.f32.pop %v1893
    %v1942 = verf.f32.pop %v1894
    %v1943 = verf.f32.pop %v1895
    %v1944 = verf.f32.pop %v1896
    %v1945 = verf.f32.pop %v1897
    %v1946 = verf.f32.pop %v1898
    %v1947 = verf.f32.pop %v1899
    %v1948 = verf.f32.pop %v1900
    %v1949 = verf.f32.pop %v1901
    %v1950 = verf.f32.pop %v1902
    %v1951 = verf.f32.pop %v1903
    %v1952 = verf.f32.pop %v1904
    %v1953 = verf.f32.pop %v1905
    %v1954 = verf.f32.pop %v1906
    %v1955 = verf.f32.pop %v1907
    %v1956 = verf.f32.pop %v1908
    %v1957 = verf.f32.pop %v1909
    %v1958 = verf.f32.pop %v1910
    %v1959 = verf.f32.pop %v1911
    %v1960 = verf.f32.pop %v1912
    %v1961 = verf.f32.pop %v1913
    %v1962 = verf.f32.pop %v1914
    %v1963 = verf.f32.pop %v1915
    %v1964 = verf.f32.pop %v1916
    %v1965 = verf.f32.pop %v1917
    %v1966 = verf.f32.pop %v1918
    %v1967 = verf.f32.pop %v1919
    %v1968 = verf.f32.pop %v1920
    %v1969 = vadd.f32 %v1921, 1.0
    %v1970 = vadd.f32 %v1922, 1.0
    %v1971 = vadd.f32 %v1923, 1.0
    %v1972 = vadd.f32 %v1924, 1.0
    %v1973 = vadd.f32 %v1925, 1.0
    %v1974 = vadd.f32 %v1926, 1.0
    %v1975 = vadd.f32 %v1927, 1.0
    %v1976 = vadd.f32 %v1928, 1.0
    %v1977 = vadd.f32 %v1929, 1.0
    %v1978 = vadd.f32 %v1930, 1.0
    %v1979 = vadd.f32 %v1931, 1.0
    %v1980 = vadd.f32 %v1932, 1.0
    %v1981 = vadd.f32 %v1933, 1.0
    %v1982 = vadd.f32 %v1934, 1.0
    %v1983 = vadd.f32 %v1935, 1.0
    %v1984 = vadd.f32 %v1936, 1.0
    %v1985 = vadd.f32 %v1937, 1.0
    %v1986 = vadd.f32 %v1938, 1.0
    %v1987 = vadd.f32 %v1939, 1.0
    %v1988 = vadd.f32 %v1940, 1.0
    %v1989 = vadd.f32 %v1941, 1.0
    %v1990 = vadd.f32 %v1942, 1.0
    %v1991 = vadd.f32 %v1943, 1.0
    %v1992 = vadd.f32 %v1944, 1.0
    %v1993 = vadd.f32 %v1945, 1.0
    %v1994 = vadd.f32 %v1946, 1.0
    %v1995 = vadd.f32 %v1947, 1.0
    %v1996 = vadd.f32 %v1948, 1.0
    %v1997 = vadd.f32 %v1949, 1.0
    %v1998 = vadd.f32 %v1950, 1.0
    %v1999 = vadd.f32 %v1951, 1.0
    %v2000 = vadd.f32 %v1952, 1.0
    %v2001 = vadd.f32 %v1953, 1.0
    %v2002 = vadd.f32 %v1954, 1.0
    %v2003 = vadd.f32 %v1955, 1.0
    %v2004 = vadd.f32 %v1956, 1.0
    %v2005 = vadd.f32 %v1957, 1.0
    %v2006 = vadd.f32 %v1958, 1.0
    %v2007 = vadd.f32 %v1959, 1.0
    %v2008 = vadd.f32 %v1960, 1.0
    %v2009 = vadd.f32 %v1961, 1.0
    %v2010 = vadd.f32 %v1962, 1.0
    %v2011 = vadd.f32 %v1963, 1.0
    %v2012 = vadd.f32 %v1964, 1.0
    %v2013 = vadd.f32 %v1965, 1.0
    %v2014 = vadd.f32 %v1966, 1.0
    %v2015 = vadd.f32 %v1967, 1.0
    %v2016 = vadd.f32 %v1968, 1.0
    %v2017 = vmul.f32 %v1825, %v1969
    %v2018 = vmul.f32 %v1826, %v1970
    %v2019 = vmul.f32 %v1827, %v1971
    %v2020 = vmul.f32 %v1828, %v1972
    %v2021 = vmul.f32 %v1829, %v1973
    %v2022 = vmul.f32 %v1830, %v1974
    %v2023 = vmul.f32 %v1831, %v1975
    %v2024 = vmul.f32 %v1832, %v1976
    %v2025 = vmul.f32 %v1833, %v1977
    %v2026 = vmul.f32 %v1834, %v1978
    %v2027 = vmul.f32 %v1835, %v1979
    %v2028 = vmul.f32 %v1836, %v1980
    %v2029 = vmul.f32 %v1837, %v1981
    %v2030 = vmul.f32 %v1838, %v1982
    %v2031 = vmul.f32 %v1839, %v1983
    %v2032 = vmul.f32 %v1840, %v1984
    %v2033 = vmul.f32 %v1841, %v1985
    %v2034 = vmul.f32 %v1842, %v1986
    %v2035 = vmul.f32 %v1843, %v1987
    %v2036 = vmul.f32 %v1844, %v1988
    %v2037 = vmul.f32 %v1845, %v1989
    %v2038 = vmul.f32 %v1846, %v1990
    %v2039 = vmul.f32 %v1847, %v1991
    %v2040 = vmul.f32 %v1848, %v1992
    %v2041 = vmul.f32 %v1849, %v1993
    %v2042 = vmul.f32 %v1850, %v1994
    %v2043 = vmul.f32 %v1851, %v1995
    %v2044 = vmul.f32 %v1852, %v1996
    %v2045 = vmul.f32 %v1853, %v1997
    %v2046 = vmul.f32 %v1854, %v1998
    %v2047 = vmul.f32 %v1855, %v1999
    %v2048 = vmul.f32 %v1856, %v2000
    %v2049 = vmul.f32 %v1857, %v2001
    %v2050 = vmul.f32 %v1858, %v2002
    %v2051 = vmul.f32 %v1859, %v2003
    %v2052 = vmul.f32 %v1860, %v2004
    %v2053 = vmul.f32 %v1861, %v2005
    %v2054 = vmul.f32 %v1862, %v2006
    %v2055 = vmul.f32 %v1863, %v2007
    %v2056 = vmul.f32 %v1864, %v2008
    %v2057 = vmul.f32 %v1865, %v2009
    %v2058 = vmul.f32 %v1866, %v2010
    %v2059 = vmul.f32 %v1867, %v2011
    %v2060 = vmul.f32 %v1868, %v2012
    %v2061 = vmul.f32 %v1869, %v2013
    %v2062 = vmul.f32 %v1870, %v2014
    %v2063 = vmul.f32 %v1871, %v2015
    %v2064 = vmul.f32 %v1872, %v2016
    %v2065 = vpack.c.bf16 %v2041, %v2017
    %v2066 = vpack.c.bf16 %v2042, %v2018
    %v2067 = vpack.c.bf16 %v2043, %v2019
    %v2068 = vpack.c.bf16 %v2044, %v2020
    %v2069 = vpack.c.bf16 %v2045, %v2021
    %v2070 = vpack.c.bf16 %v2046, %v2022
    %v2071 = vpack.c.bf16 %v2047, %v2023
    %v2072 = vpack.c.bf16 %v2048, %v2024
    %v2073 = vpack.c.bf16 %v2049, %v2025
    %v2074 = vpack.c.bf16 %v2050, %v2026
    %v2075 = vpack.c.bf16 %v2051, %v2027
    %v2076 = vpack.c.bf16 %v2052, %v2028
    %v2077 = vpack.c.bf16 %v2053, %v2029
    %v2078 = vpack.c.bf16 %v2054, %v2030
    %v2079 = vpack.c.bf16 %v2055, %v2031
    %v2080 = vpack.c.bf16 %v2056, %v2032
    %v2081 = vpack.c.bf16 %v2057, %v2033
    %v2082 = vpack.c.bf16 %v2058, %v2034
    %v2083 = vpack.c.bf16 %v2059, %v2035
    %v2084 = vpack.c.bf16 %v2060, %v2036
    %v2085 = vpack.c.bf16 %v2061, %v2037
    %v2086 = vpack.c.bf16 %v2062, %v2038
    %v2087 = vpack.c.bf16 %v2063, %v2039
    %v2088 = vpack.c.bf16 %v2064, %v2040
    %v2089 = vld [vmem:[%s3] sm:$0xf]
    %v2090 = vld [vmem:[%s3 + $0x4] sm:$0xf]
    %v2091 = vld [vmem:[%s3 + $0x8] sm:$0xf]
    %v2092 = vld [vmem:[%s3 + $0xc] sm:$0xf]
    %v2093 = vld [vmem:[%s3 + $0x10] sm:$0xf]
    %v2094 = vld [vmem:[%s3 + $0x14] sm:$0xf]
    %v2095 = vld [vmem:[%s3 + $0x18] sm:$0xf]
    %v2096 = vld [vmem:[%s3 + $0x1c] sm:$0xf]
    %v2097 = vld [vmem:[%s3 + $0x20] sm:$0xf]
    %v2098 = vld [vmem:[%s3 + $0x24] sm:$0xf]
    %v2099 = vld [vmem:[%s3 + $0x28] sm:$0xf]
    %v2100 = vld [vmem:[%s3 + $0x2c] sm:$0xf]
    %v2101 = vld [vmem:[%s3 + $0x30] sm:$0xf]
    %v2102 = vld [vmem:[%s3 + $0x34] sm:$0xf]
    %v2103 = vld [vmem:[%s3 + $0x38] sm:$0xf]
    %v2104 = vld [vmem:[%s3 + $0x3c] sm:$0xf]
    %v2105 = vld [vmem:[%s3 + $0x40] sm:$0xf]
    %v2106 = vld [vmem:[%s3 + $0x44] sm:$0xf]
    %v2107 = vld [vmem:[%s3 + $0x48] sm:$0xf]
    %v2108 = vld [vmem:[%s3 + $0x4c] sm:$0xf]
    %v2109 = vld [vmem:[%s3 + $0x50] sm:$0xf]
    %v2110 = vld [vmem:[%s3 + $0x54] sm:$0xf]
    %v2111 = vld [vmem:[%s3 + $0x58] sm:$0xf]
    %v2112 = vld [vmem:[%s3 + $0x5c] sm:$0xf]
    %v2113 = vld [vmem:[%s3 + $0x60] sm:$0xf]
    %v2114 = vld [vmem:[%s3 + $0x64] sm:$0xf]
    %v2115 = vld [vmem:[%s3 + $0x68] sm:$0xf]
    %v2116 = vld [vmem:[%s3 + $0x6c] sm:$0xf]
    %v2117 = vld [vmem:[%s3 + $0x70] sm:$0xf]
    %v2118 = vld [vmem:[%s3 + $0x74] sm:$0xf]
    %v2119 = vld [vmem:[%s3 + $0x78] sm:$0xf]
    %v2120 = vld [vmem:[%s3 + $0x7c] sm:$0xf]
    %v2121 = vld [vmem:[%s3 + $0x80] sm:$0xf]
    %v2122 = vld [vmem:[%s3 + $0x84] sm:$0xf]
    %v2123 = vld [vmem:[%s3 + $0x88] sm:$0xf]
    %v2124 = vld [vmem:[%s3 + $0x8c] sm:$0xf]
    %v2125 = vld [vmem:[%s3 + $0x90] sm:$0xf]
    %v2126 = vld [vmem:[%s3 + $0x94] sm:$0xf]
    %v2127 = vld [vmem:[%s3 + $0x98] sm:$0xf]
    %v2128 = vld [vmem:[%s3 + $0x9c] sm:$0xf]
    %v2129 = vld [vmem:[%s3 + $0xa0] sm:$0xf]
    %v2130 = vld [vmem:[%s3 + $0xa4] sm:$0xf]
    %v2131 = vld [vmem:[%s3 + $0xa8] sm:$0xf]
    %v2132 = vld [vmem:[%s3 + $0xac] sm:$0xf]
    %v2133 = vld [vmem:[%s3 + $0xb0] sm:$0xf]
    %v2134 = vld [vmem:[%s3 + $0xb4] sm:$0xf]
    %v2135 = vld [vmem:[%s3 + $0xb8] sm:$0xf]
    %v2136 = vld [vmem:[%s3 + $0xbc] sm:$0xf]
    %v2137 = vld [vmem:[%s3 + $0xc0] sm:$0xf]
    %v2138 = vld [vmem:[%s3 + $0xc4] sm:$0xf]
    %v2139 = vld [vmem:[%s3 + $0xc8] sm:$0xf]
    %v2140 = vld [vmem:[%s3 + $0xcc] sm:$0xf]
    %v2141 = vld [vmem:[%s3 + $0xd0] sm:$0xf]
    %v2142 = vld [vmem:[%s3 + $0xd4] sm:$0xf]
    %v2143 = vld [vmem:[%s3 + $0xd8] sm:$0xf]
    %v2144 = vld [vmem:[%s3 + $0xdc] sm:$0xf]
    %v2145 = vld [vmem:[%s3 + $0xe0] sm:$0xf]
    %v2146 = vld [vmem:[%s3 + $0xe4] sm:$0xf]
    %v2147 = vld [vmem:[%s3 + $0xe8] sm:$0xf]
    %v2148 = vld [vmem:[%s3 + $0xec] sm:$0xf]
    %v2149 = vld [vmem:[%s3 + $0xf0] sm:$0xf]
    %v2150 = vld [vmem:[%s3 + $0xf4] sm:$0xf]
    %v2151 = vld [vmem:[%s3 + $0xf8] sm:$0xf]
    %v2152 = vld [vmem:[%s3 + $0xfc] sm:$0xf]
    %v2153 = vld [vmem:[%s3 + $0x100] sm:$0xf]
    %v2154 = vld [vmem:[%s3 + $0x104] sm:$0xf]
    %v2155 = vld [vmem:[%s3 + $0x108] sm:$0xf]
    %v2156 = vld [vmem:[%s3 + $0x10c] sm:$0xf]
    %v2157 = vld [vmem:[%s3 + $0x110] sm:$0xf]
    %v2158 = vld [vmem:[%s3 + $0x114] sm:$0xf]
    %v2159 = vld [vmem:[%s3 + $0x118] sm:$0xf]
    %v2160 = vld [vmem:[%s3 + $0x11c] sm:$0xf]
    %v2161 = vld [vmem:[%s3 + $0x120] sm:$0xf]
    %v2162 = vld [vmem:[%s3 + $0x124] sm:$0xf]
    %v2163 = vld [vmem:[%s3 + $0x128] sm:$0xf]
    %v2164 = vld [vmem:[%s3 + $0x12c] sm:$0xf]
    %v2165 = vld [vmem:[%s3 + $0x130] sm:$0xf]
    %v2166 = vld [vmem:[%s3 + $0x134] sm:$0xf]
    %v2167 = vld [vmem:[%s3 + $0x138] sm:$0xf]
    %v2168 = vld [vmem:[%s3 + $0x13c] sm:$0xf]
    %v2169 = vld [vmem:[%s3 + $0x140] sm:$0xf]
    %v2170 = vld [vmem:[%s3 + $0x144] sm:$0xf]
    %v2171 = vld [vmem:[%s3 + $0x148] sm:$0xf]
    %v2172 = vld [vmem:[%s3 + $0x14c] sm:$0xf]
    %v2173 = vld [vmem:[%s3 + $0x150] sm:$0xf]
    %v2174 = vld [vmem:[%s3 + $0x154] sm:$0xf]
    %v2175 = vld [vmem:[%s3 + $0x158] sm:$0xf]
    %v2176 = vld [vmem:[%s3 + $0x15c] sm:$0xf]
    %v2177 = vld [vmem:[%s3 + $0x160] sm:$0xf]
    %v2178 = vld [vmem:[%s3 + $0x164] sm:$0xf]
    %v2179 = vld [vmem:[%s3 + $0x168] sm:$0xf]
    %v2180 = vld [vmem:[%s3 + $0x16c] sm:$0xf]
    %v2181 = vld [vmem:[%s3 + $0x170] sm:$0xf]
    %v2182 = vld [vmem:[%s3 + $0x174] sm:$0xf]
    %v2183 = vld [vmem:[%s3 + $0x178] sm:$0xf]
    %v2184 = vld [vmem:[%s3 + $0x17c] sm:$0xf]
    %v2185 = vld [vmem:[%s3 + $0x180] sm:$0xf]
    %v2186 = vld [vmem:[%s3 + $0x184] sm:$0xf]
    %v2187 = vld [vmem:[%s3 + $0x188] sm:$0xf]
    %v2188 = vld [vmem:[%s3 + $0x18c] sm:$0xf]
    %v2189 = vld [vmem:[%s3 + $0x190] sm:$0xf]
    %v2190 = vld [vmem:[%s3 + $0x194] sm:$0xf]
    %v2191 = vld [vmem:[%s3 + $0x198] sm:$0xf]
    %v2192 = vld [vmem:[%s3 + $0x19c] sm:$0xf]
    %v2193 = vld [vmem:[%s3 + $0x1a0] sm:$0xf]
    %v2194 = vld [vmem:[%s3 + $0x1a4] sm:$0xf]
    %v2195 = vld [vmem:[%s3 + $0x1a8] sm:$0xf]
    %v2196 = vld [vmem:[%s3 + $0x1ac] sm:$0xf]
    %v2197 = vld [vmem:[%s3 + $0x1b0] sm:$0xf]
    %v2198 = vld [vmem:[%s3 + $0x1b4] sm:$0xf]
    %v2199 = vld [vmem:[%s3 + $0x1b8] sm:$0xf]
    %v2200 = vld [vmem:[%s3 + $0x1bc] sm:$0xf]
    %v2201 = vld [vmem:[%s3 + $0x1c0] sm:$0xf]
    %v2202 = vld [vmem:[%s3 + $0x1c4] sm:$0xf]
    %v2203 = vld [vmem:[%s3 + $0x1c8] sm:$0xf]
    %v2204 = vld [vmem:[%s3 + $0x1cc] sm:$0xf]
    %v2205 = vld [vmem:[%s3 + $0x1d0] sm:$0xf]
    %v2206 = vld [vmem:[%s3 + $0x1d4] sm:$0xf]
    %v2207 = vld [vmem:[%s3 + $0x1d8] sm:$0xf]
    %v2208 = vld [vmem:[%s3 + $0x1dc] sm:$0xf]
    %v2209 = vld [vmem:[%s3 + $0x1e0] sm:$0xf]
    %v2210 = vld [vmem:[%s3 + $0x1e4] sm:$0xf]
    %v2211 = vld [vmem:[%s3 + $0x1e8] sm:$0xf]
    %v2212 = vld [vmem:[%s3 + $0x1ec] sm:$0xf]
    %v2213 = vld [vmem:[%s3 + $0x1f0] sm:$0xf]
    %v2214 = vld [vmem:[%s3 + $0x1f4] sm:$0xf]
    %v2215 = vld [vmem:[%s3 + $0x1f8] sm:$0xf]
    %v2216 = vld [vmem:[%s3 + $0x1fc] sm:$0xf]
    %v2217 = vld [vmem:[%s3 + $0x200] sm:$0xf]
    %v2218 = vld [vmem:[%s3 + $0x204] sm:$0xf]
    %v2219 = vld [vmem:[%s3 + $0x208] sm:$0xf]
    %v2220 = vld [vmem:[%s3 + $0x20c] sm:$0xf]
    %v2221 = vld [vmem:[%s3 + $0x210] sm:$0xf]
    %v2222 = vld [vmem:[%s3 + $0x214] sm:$0xf]
    %v2223 = vld [vmem:[%s3 + $0x218] sm:$0xf]
    %v2224 = vld [vmem:[%s3 + $0x21c] sm:$0xf]
    %v2225 = vld [vmem:[%s3 + $0x220] sm:$0xf]
    %v2226 = vld [vmem:[%s3 + $0x224] sm:$0xf]
    %v2227 = vld [vmem:[%s3 + $0x228] sm:$0xf]
    %v2228 = vld [vmem:[%s3 + $0x22c] sm:$0xf]
    %v2229 = vld [vmem:[%s3 + $0x230] sm:$0xf]
    %v2230 = vld [vmem:[%s3 + $0x234] sm:$0xf]
    %v2231 = vld [vmem:[%s3 + $0x238] sm:$0xf]
    %v2232 = vld [vmem:[%s3 + $0x23c] sm:$0xf]
    %v2233 = vld [vmem:[%s3 + $0x240] sm:$0xf]
    %v2234 = vld [vmem:[%s3 + $0x244] sm:$0xf]
    %v2235 = vld [vmem:[%s3 + $0x248] sm:$0xf]
    %v2236 = vld [vmem:[%s3 + $0x24c] sm:$0xf]
    %v2237 = vld [vmem:[%s3 + $0x250] sm:$0xf]
    %v2238 = vld [vmem:[%s3 + $0x254] sm:$0xf]
    %v2239 = vld [vmem:[%s3 + $0x258] sm:$0xf]
    %v2240 = vld [vmem:[%s3 + $0x25c] sm:$0xf]
    %v2241 = vld [vmem:[%s3 + $0x260] sm:$0xf]
    %v2242 = vld [vmem:[%s3 + $0x264] sm:$0xf]
    %v2243 = vld [vmem:[%s3 + $0x268] sm:$0xf]
    %v2244 = vld [vmem:[%s3 + $0x26c] sm:$0xf]
    %v2245 = vld [vmem:[%s3 + $0x270] sm:$0xf]
    %v2246 = vld [vmem:[%s3 + $0x274] sm:$0xf]
    %v2247 = vld [vmem:[%s3 + $0x278] sm:$0xf]
    %v2248 = vld [vmem:[%s3 + $0x27c] sm:$0xf]
    %v2249 = vld [vmem:[%s3 + $0x280] sm:$0xf]
    %v2250 = vld [vmem:[%s3 + $0x284] sm:$0xf]
    %v2251 = vld [vmem:[%s3 + $0x288] sm:$0xf]
    %v2252 = vld [vmem:[%s3 + $0x28c] sm:$0xf]
    %v2253 = vld [vmem:[%s3 + $0x290] sm:$0xf]
    %v2254 = vld [vmem:[%s3 + $0x294] sm:$0xf]
    %v2255 = vld [vmem:[%s3 + $0x298] sm:$0xf]
    %v2256 = vld [vmem:[%s3 + $0x29c] sm:$0xf]
    %v2257 = vld [vmem:[%s3 + $0x2a0] sm:$0xf]
    %v2258 = vld [vmem:[%s3 + $0x2a4] sm:$0xf]
    %v2259 = vld [vmem:[%s3 + $0x2a8] sm:$0xf]
    %v2260 = vld [vmem:[%s3 + $0x2ac] sm:$0xf]
    %v2261 = vld [vmem:[%s3 + $0x2b0] sm:$0xf]
    %v2262 = vld [vmem:[%s3 + $0x2b4] sm:$0xf]
    %v2263 = vld [vmem:[%s3 + $0x2b8] sm:$0xf]
    %v2264 = vld [vmem:[%s3 + $0x2bc] sm:$0xf]
    %v2265 = vld [vmem:[%s3 + $0x2c0] sm:$0xf]
    %v2266 = vld [vmem:[%s3 + $0x2c4] sm:$0xf]
    %v2267 = vld [vmem:[%s3 + $0x2c8] sm:$0xf]
    %v2268 = vld [vmem:[%s3 + $0x2cc] sm:$0xf]
    %v2269 = vld [vmem:[%s3 + $0x2d0] sm:$0xf]
    %v2270 = vld [vmem:[%s3 + $0x2d4] sm:$0xf]
    %v2271 = vld [vmem:[%s3 + $0x2d8] sm:$0xf]
    %v2272 = vld [vmem:[%s3 + $0x2dc] sm:$0xf]
    %v2273 = vld [vmem:[%s3 + $0x2e0] sm:$0xf]
    %v2274 = vld [vmem:[%s3 + $0x2e4] sm:$0xf]
    %v2275 = vld [vmem:[%s3 + $0x2e8] sm:$0xf]
    %v2276 = vld [vmem:[%s3 + $0x2ec] sm:$0xf]
    %v2277 = vld [vmem:[%s3 + $0x2f0] sm:$0xf]
    %v2278 = vld [vmem:[%s3 + $0x2f4] sm:$0xf]
    %v2279 = vld [vmem:[%s3 + $0x2f8] sm:$0xf]
    %v2280 = vld [vmem:[%s3 + $0x2fc] sm:$0xf]
    %v2281 = vld [vmem:[%s3 + $0x300] sm:$0xf]
    %v2282 = vld [vmem:[%s3 + $0x304] sm:$0xf]
    %v2283 = vld [vmem:[%s3 + $0x308] sm:$0xf]
    %v2284 = vld [vmem:[%s3 + $0x30c] sm:$0xf]
    %v2285 = vld [vmem:[%s3 + $0x310] sm:$0xf]
    %v2286 = vld [vmem:[%s3 + $0x314] sm:$0xf]
    %v2287 = vld [vmem:[%s3 + $0x318] sm:$0xf]
    %v2288 = vld [vmem:[%s3 + $0x31c] sm:$0xf]
    %v2289 = vld [vmem:[%s3 + $0x320] sm:$0xf]
    %v2290 = vld [vmem:[%s3 + $0x324] sm:$0xf]
    %v2291 = vld [vmem:[%s3 + $0x328] sm:$0xf]
    %v2292 = vld [vmem:[%s3 + $0x32c] sm:$0xf]
    %v2293 = vld [vmem:[%s3 + $0x330] sm:$0xf]
    %v2294 = vld [vmem:[%s3 + $0x334] sm:$0xf]
    %v2295 = vld [vmem:[%s3 + $0x338] sm:$0xf]
    %v2296 = vld [vmem:[%s3 + $0x33c] sm:$0xf]
    %v2297 = vld [vmem:[%s3 + $0x340] sm:$0xf]
    %v2298 = vld [vmem:[%s3 + $0x344] sm:$0xf]
    %v2299 = vld [vmem:[%s3 + $0x348] sm:$0xf]
    %v2300 = vld [vmem:[%s3 + $0x34c] sm:$0xf]
    %v2301 = vld [vmem:[%s3 + $0x350] sm:$0xf]
    %v2302 = vld [vmem:[%s3 + $0x354] sm:$0xf]
    %v2303 = vld [vmem:[%s3 + $0x358] sm:$0xf]
    %v2304 = vld [vmem:[%s3 + $0x35c] sm:$0xf]
    %v2305 = vld [vmem:[%s3 + $0x360] sm:$0xf]
    %v2306 = vld [vmem:[%s3 + $0x364] sm:$0xf]
    %v2307 = vld [vmem:[%s3 + $0x368] sm:$0xf]
    %v2308 = vld [vmem:[%s3 + $0x36c] sm:$0xf]
    %v2309 = vld [vmem:[%s3 + $0x370] sm:$0xf]
    %v2310 = vld [vmem:[%s3 + $0x374] sm:$0xf]
    %v2311 = vld [vmem:[%s3 + $0x378] sm:$0xf]
    %v2312 = vld [vmem:[%s3 + $0x37c] sm:$0xf]
    %v2313 = vld [vmem:[%s3 + $0x380] sm:$0xf]
    %v2314 = vld [vmem:[%s3 + $0x384] sm:$0xf]
    %v2315 = vld [vmem:[%s3 + $0x388] sm:$0xf]
    %v2316 = vld [vmem:[%s3 + $0x38c] sm:$0xf]
    %v2317 = vld [vmem:[%s3 + $0x390] sm:$0xf]
    %v2318 = vld [vmem:[%s3 + $0x394] sm:$0xf]
    %v2319 = vld [vmem:[%s3 + $0x398] sm:$0xf]
    %v2320 = vld [vmem:[%s3 + $0x39c] sm:$0xf]
    %v2321 = vld [vmem:[%s3 + $0x3a0] sm:$0xf]
    %v2322 = vld [vmem:[%s3 + $0x3a4] sm:$0xf]
    %v2323 = vld [vmem:[%s3 + $0x3a8] sm:$0xf]
    %v2324 = vld [vmem:[%s3 + $0x3ac] sm:$0xf]
    %v2325 = vld [vmem:[%s3 + $0x3b0] sm:$0xf]
    %v2326 = vld [vmem:[%s3 + $0x3b4] sm:$0xf]
    %v2327 = vld [vmem:[%s3 + $0x3b8] sm:$0xf]
    %v2328 = vld [vmem:[%s3 + $0x3bc] sm:$0xf]
    %v2329 = vld [vmem:[%s3 + $0x3c0] sm:$0xf]
    %v2330 = vld [vmem:[%s3 + $0x3c4] sm:$0xf]
    %v2331 = vld [vmem:[%s3 + $0x3c8] sm:$0xf]
    %v2332 = vld [vmem:[%s3 + $0x3cc] sm:$0xf]
    %v2333 = vld [vmem:[%s3 + $0x3d0] sm:$0xf]
    %v2334 = vld [vmem:[%s3 + $0x3d4] sm:$0xf]
    %v2335 = vld [vmem:[%s3 + $0x3d8] sm:$0xf]
    %v2336 = vld [vmem:[%s3 + $0x3dc] sm:$0xf]
    %v2337 = vld [vmem:[%s3 + $0x3e0] sm:$0xf]
    %v2338 = vld [vmem:[%s3 + $0x3e4] sm:$0xf]
    %v2339 = vld [vmem:[%s3 + $0x3e8] sm:$0xf]
    %v2340 = vld [vmem:[%s3 + $0x3ec] sm:$0xf]
    %v2341 = vld [vmem:[%s3 + $0x3f0] sm:$0xf]
    %v2342 = vld [vmem:[%s3 + $0x3f4] sm:$0xf]
    %v2343 = vld [vmem:[%s3 + $0x3f8] sm:$0xf]
    %v2344 = vld [vmem:[%s3 + $0x3fc] sm:$0xf]
    %v2345 = vld [vmem:[%s3 + $0x400] sm:$0xf]
    %v2346 = vld [vmem:[%s3 + $0x404] sm:$0xf]
    %v2347 = vld [vmem:[%s3 + $0x408] sm:$0xf]
    %v2348 = vld [vmem:[%s3 + $0x40c] sm:$0xf]
    %v2349 = vld [vmem:[%s3 + $0x410] sm:$0xf]
    %v2350 = vld [vmem:[%s3 + $0x414] sm:$0xf]
    %v2351 = vld [vmem:[%s3 + $0x418] sm:$0xf]
    %v2352 = vld [vmem:[%s3 + $0x41c] sm:$0xf]
    %v2353 = vld [vmem:[%s3 + $0x420] sm:$0xf]
    %v2354 = vld [vmem:[%s3 + $0x424] sm:$0xf]
    %v2355 = vld [vmem:[%s3 + $0x428] sm:$0xf]
    %v2356 = vld [vmem:[%s3 + $0x42c] sm:$0xf]
    %v2357 = vld [vmem:[%s3 + $0x430] sm:$0xf]
    %v2358 = vld [vmem:[%s3 + $0x434] sm:$0xf]
    %v2359 = vld [vmem:[%s3 + $0x438] sm:$0xf]
    %v2360 = vld [vmem:[%s3 + $0x43c] sm:$0xf]
    %v2361 = vld [vmem:[%s3 + $0x440] sm:$0xf]
    %v2362 = vld [vmem:[%s3 + $0x444] sm:$0xf]
    %v2363 = vld [vmem:[%s3 + $0x448] sm:$0xf]
    %v2364 = vld [vmem:[%s3 + $0x44c] sm:$0xf]
    %v2365 = vld [vmem:[%s3 + $0x450] sm:$0xf]
    %v2366 = vld [vmem:[%s3 + $0x454] sm:$0xf]
    %v2367 = vld [vmem:[%s3 + $0x458] sm:$0xf]
    %v2368 = vld [vmem:[%s3 + $0x45c] sm:$0xf]
    %v2369 = vld [vmem:[%s3 + $0x460] sm:$0xf]
    %v2370 = vld [vmem:[%s3 + $0x464] sm:$0xf]
    %v2371 = vld [vmem:[%s3 + $0x468] sm:$0xf]
    %v2372 = vld [vmem:[%s3 + $0x46c] sm:$0xf]
    %v2373 = vld [vmem:[%s3 + $0x470] sm:$0xf]
    %v2374 = vld [vmem:[%s3 + $0x474] sm:$0xf]
    %v2375 = vld [vmem:[%s3 + $0x478] sm:$0xf]
    %v2376 = vld [vmem:[%s3 + $0x47c] sm:$0xf]
    %v2377 = vld [vmem:[%s3 + $0x480] sm:$0xf]
    %v2378 = vld [vmem:[%s3 + $0x484] sm:$0xf]
    %v2379 = vld [vmem:[%s3 + $0x488] sm:$0xf]
    %v2380 = vld [vmem:[%s3 + $0x48c] sm:$0xf]
    %v2381 = vld [vmem:[%s3 + $0x490] sm:$0xf]
    %v2382 = vld [vmem:[%s3 + $0x494] sm:$0xf]
    %v2383 = vld [vmem:[%s3 + $0x498] sm:$0xf]
    %v2384 = vld [vmem:[%s3 + $0x49c] sm:$0xf]
    %v2385 = vld [vmem:[%s3 + $0x4a0] sm:$0xf]
    %v2386 = vld [vmem:[%s3 + $0x4a4] sm:$0xf]
    %v2387 = vld [vmem:[%s3 + $0x4a8] sm:$0xf]
    %v2388 = vld [vmem:[%s3 + $0x4ac] sm:$0xf]
    %v2389 = vld [vmem:[%s3 + $0x4b0] sm:$0xf]
    %v2390 = vld [vmem:[%s3 + $0x4b4] sm:$0xf]
    %v2391 = vld [vmem:[%s3 + $0x4b8] sm:$0xf]
    %v2392 = vld [vmem:[%s3 + $0x4bc] sm:$0xf]
    %v2393 = vld [vmem:[%s3 + $0x4c0] sm:$0xf]
    %v2394 = vld [vmem:[%s3 + $0x4c4] sm:$0xf]
    %v2395 = vld [vmem:[%s3 + $0x4c8] sm:$0xf]
    %v2396 = vld [vmem:[%s3 + $0x4cc] sm:$0xf]
    %v2397 = vld [vmem:[%s3 + $0x4d0] sm:$0xf]
    %v2398 = vld [vmem:[%s3 + $0x4d4] sm:$0xf]
    %v2399 = vld [vmem:[%s3 + $0x4d8] sm:$0xf]
    %v2400 = vld [vmem:[%s3 + $0x4dc] sm:$0xf]
    %v2401 = vld [vmem:[%s3 + $0x4e0] sm:$0xf]
    %v2402 = vld [vmem:[%s3 + $0x4e4] sm:$0xf]
    %v2403 = vld [vmem:[%s3 + $0x4e8] sm:$0xf]
    %v2404 = vld [vmem:[%s3 + $0x4ec] sm:$0xf]
    %v2405 = vld [vmem:[%s3 + $0x4f0] sm:$0xf]
    %v2406 = vld [vmem:[%s3 + $0x4f4] sm:$0xf]
    %v2407 = vld [vmem:[%s3 + $0x4f8] sm:$0xf]
    %v2408 = vld [vmem:[%s3 + $0x4fc] sm:$0xf]
    %v2409 = vld [vmem:[%s3 + $0x500] sm:$0xf]
    %v2410 = vld [vmem:[%s3 + $0x504] sm:$0xf]
    %v2411 = vld [vmem:[%s3 + $0x508] sm:$0xf]
    %v2412 = vld [vmem:[%s3 + $0x50c] sm:$0xf]
    %v2413 = vld [vmem:[%s3 + $0x510] sm:$0xf]
    %v2414 = vld [vmem:[%s3 + $0x514] sm:$0xf]
    %v2415 = vld [vmem:[%s3 + $0x518] sm:$0xf]
    %v2416 = vld [vmem:[%s3 + $0x51c] sm:$0xf]
    %v2417 = vld [vmem:[%s3 + $0x520] sm:$0xf]
    %v2418 = vld [vmem:[%s3 + $0x524] sm:$0xf]
    %v2419 = vld [vmem:[%s3 + $0x528] sm:$0xf]
    %v2420 = vld [vmem:[%s3 + $0x52c] sm:$0xf]
    %v2421 = vld [vmem:[%s3 + $0x530] sm:$0xf]
    %v2422 = vld [vmem:[%s3 + $0x534] sm:$0xf]
    %v2423 = vld [vmem:[%s3 + $0x538] sm:$0xf]
    %v2424 = vld [vmem:[%s3 + $0x53c] sm:$0xf]
    %v2425 = vld [vmem:[%s3 + $0x540] sm:$0xf]
    %v2426 = vld [vmem:[%s3 + $0x544] sm:$0xf]
    %v2427 = vld [vmem:[%s3 + $0x548] sm:$0xf]
    %v2428 = vld [vmem:[%s3 + $0x54c] sm:$0xf]
    %v2429 = vld [vmem:[%s3 + $0x550] sm:$0xf]
    %v2430 = vld [vmem:[%s3 + $0x554] sm:$0xf]
    %v2431 = vld [vmem:[%s3 + $0x558] sm:$0xf]
    %v2432 = vld [vmem:[%s3 + $0x55c] sm:$0xf]
    %v2433 = vld [vmem:[%s3 + $0x560] sm:$0xf]
    %v2434 = vld [vmem:[%s3 + $0x564] sm:$0xf]
    %v2435 = vld [vmem:[%s3 + $0x568] sm:$0xf]
    %v2436 = vld [vmem:[%s3 + $0x56c] sm:$0xf]
    %v2437 = vld [vmem:[%s3 + $0x570] sm:$0xf]
    %v2438 = vld [vmem:[%s3 + $0x574] sm:$0xf]
    %v2439 = vld [vmem:[%s3 + $0x578] sm:$0xf]
    %v2440 = vld [vmem:[%s3 + $0x57c] sm:$0xf]
    %v2441 = vld [vmem:[%s3 + $0x580] sm:$0xf]
    %v2442 = vld [vmem:[%s3 + $0x584] sm:$0xf]
    %v2443 = vld [vmem:[%s3 + $0x588] sm:$0xf]
    %v2444 = vld [vmem:[%s3 + $0x58c] sm:$0xf]
    %v2445 = vld [vmem:[%s3 + $0x590] sm:$0xf]
    %v2446 = vld [vmem:[%s3 + $0x594] sm:$0xf]
    %v2447 = vld [vmem:[%s3 + $0x598] sm:$0xf]
    %v2448 = vld [vmem:[%s3 + $0x59c] sm:$0xf]
    %v2449 = vld [vmem:[%s3 + $0x5a0] sm:$0xf]
    %v2450 = vld [vmem:[%s3 + $0x5a4] sm:$0xf]
    %v2451 = vld [vmem:[%s3 + $0x5a8] sm:$0xf]
    %v2452 = vld [vmem:[%s3 + $0x5ac] sm:$0xf]
    %v2453 = vld [vmem:[%s3 + $0x5b0] sm:$0xf]
    %v2454 = vld [vmem:[%s3 + $0x5b4] sm:$0xf]
    %v2455 = vld [vmem:[%s3 + $0x5b8] sm:$0xf]
    %v2456 = vld [vmem:[%s3 + $0x5bc] sm:$0xf]
    %v2457 = vld [vmem:[%s3 + $0x5c0] sm:$0xf]
    %v2458 = vld [vmem:[%s3 + $0x5c4] sm:$0xf]
    %v2459 = vld [vmem:[%s3 + $0x5c8] sm:$0xf]
    %v2460 = vld [vmem:[%s3 + $0x5cc] sm:$0xf]
    %v2461 = vld [vmem:[%s3 + $0x5d0] sm:$0xf]
    %v2462 = vld [vmem:[%s3 + $0x5d4] sm:$0xf]
    %v2463 = vld [vmem:[%s3 + $0x5d8] sm:$0xf]
    %v2464 = vld [vmem:[%s3 + $0x5dc] sm:$0xf]
    %v2465 = vld [vmem:[%s3 + $0x5e0] sm:$0xf]
    %v2466 = vld [vmem:[%s3 + $0x5e4] sm:$0xf]
    %v2467 = vld [vmem:[%s3 + $0x5e8] sm:$0xf]
    %v2468 = vld [vmem:[%s3 + $0x5ec] sm:$0xf]
    %v2469 = vld [vmem:[%s3 + $0x5f0] sm:$0xf]
    %v2470 = vld [vmem:[%s3 + $0x5f4] sm:$0xf]
    %v2471 = vld [vmem:[%s3 + $0x5f8] sm:$0xf]
    %v2472 = vld [vmem:[%s3 + $0x5fc] sm:$0xf]
    %v2473 = vld [vmem:[%s4] sm:$0x1]
    %v2475 = vlaneseq
    %v2476 = vshrl.u32 %v2475, 7
    %v2477 = vsub.s32 0, %v2476
    %v2478 = vrot.slane %v2473, %v2477
    %v2864 = vunpack.c.l.b16 %v2089
    %v2865 = vunpack.c.l.b16 %v2090
    %v2866 = vunpack.c.l.b16 %v2091
    %v2867 = vunpack.c.l.b16 %v2092
    %v2868 = vunpack.c.l.b16 %v2093
    %v2869 = vunpack.c.l.b16 %v2094
    %v2870 = vunpack.c.l.b16 %v2095
    %v2871 = vunpack.c.l.b16 %v2096
    %v2872 = vunpack.c.l.b16 %v2097
    %v2873 = vunpack.c.l.b16 %v2098
    %v2874 = vunpack.c.l.b16 %v2099
    %v2875 = vunpack.c.l.b16 %v2100
    %v2876 = vunpack.c.l.b16 %v2101
    %v2877 = vunpack.c.l.b16 %v2102
    %v2878 = vunpack.c.l.b16 %v2103
    %v2879 = vunpack.c.l.b16 %v2104
    %v2880 = vunpack.c.l.b16 %v2105
    %v2881 = vunpack.c.l.b16 %v2106
    %v2882 = vunpack.c.l.b16 %v2107
    %v2883 = vunpack.c.l.b16 %v2108
    %v2884 = vunpack.c.l.b16 %v2109
    %v2885 = vunpack.c.l.b16 %v2110
    %v2886 = vunpack.c.l.b16 %v2111
    %v2887 = vunpack.c.l.b16 %v2112
    %v2888 = vunpack.c.l.b16 %v2113
    %v2889 = vunpack.c.l.b16 %v2114
    %v2890 = vunpack.c.l.b16 %v2115
    %v2891 = vunpack.c.l.b16 %v2116
    %v2892 = vunpack.c.l.b16 %v2117
    %v2893 = vunpack.c.l.b16 %v2118
    %v2894 = vunpack.c.l.b16 %v2119
    %v2895 = vunpack.c.l.b16 %v2120
    %v2896 = vunpack.c.l.b16 %v2121
    %v2897 = vunpack.c.l.b16 %v2122
    %v2898 = vunpack.c.l.b16 %v2123
    %v2899 = vunpack.c.l.b16 %v2124
    %v2900 = vunpack.c.l.b16 %v2125
    %v2901 = vunpack.c.l.b16 %v2126
    %v2902 = vunpack.c.l.b16 %v2127
    %v2903 = vunpack.c.l.b16 %v2128
    %v2904 = vunpack.c.l.b16 %v2129
    %v2905 = vunpack.c.l.b16 %v2130
    %v2906 = vunpack.c.l.b16 %v2131
    %v2907 = vunpack.c.l.b16 %v2132
    %v2908 = vunpack.c.l.b16 %v2133
    %v2909 = vunpack.c.l.b16 %v2134
    %v2910 = vunpack.c.l.b16 %v2135
    %v2911 = vunpack.c.l.b16 %v2136
    %v2912 = vunpack.c.l.b16 %v2137
    %v2913 = vunpack.c.l.b16 %v2138
    %v2914 = vunpack.c.l.b16 %v2139
    %v2915 = vunpack.c.l.b16 %v2140
    %v2916 = vunpack.c.l.b16 %v2141
    %v2917 = vunpack.c.l.b16 %v2142
    %v2918 = vunpack.c.l.b16 %v2143
    %v2919 = vunpack.c.l.b16 %v2144
    %v2920 = vunpack.c.l.b16 %v2145
    %v2921 = vunpack.c.l.b16 %v2146
    %v2922 = vunpack.c.l.b16 %v2147
    %v2923 = vunpack.c.l.b16 %v2148
    %v2924 = vunpack.c.l.b16 %v2149
    %v2925 = vunpack.c.l.b16 %v2150
    %v2926 = vunpack.c.l.b16 %v2151
    %v2927 = vunpack.c.l.b16 %v2152
    %v2928 = vunpack.c.l.b16 %v2153
    %v2929 = vunpack.c.l.b16 %v2154
    %v2930 = vunpack.c.l.b16 %v2155
    %v2931 = vunpack.c.l.b16 %v2156
    %v2932 = vunpack.c.l.b16 %v2157
    %v2933 = vunpack.c.l.b16 %v2158
    %v2934 = vunpack.c.l.b16 %v2159
    %v2935 = vunpack.c.l.b16 %v2160
    %v2936 = vunpack.c.l.b16 %v2161
    %v2937 = vunpack.c.l.b16 %v2162
    %v2938 = vunpack.c.l.b16 %v2163
    %v2939 = vunpack.c.l.b16 %v2164
    %v2940 = vunpack.c.l.b16 %v2165
    %v2941 = vunpack.c.l.b16 %v2166
    %v2942 = vunpack.c.l.b16 %v2167
    %v2943 = vunpack.c.l.b16 %v2168
    %v2944 = vunpack.c.l.b16 %v2169
    %v2945 = vunpack.c.l.b16 %v2170
    %v2946 = vunpack.c.l.b16 %v2171
    %v2947 = vunpack.c.l.b16 %v2172
    %v2948 = vunpack.c.l.b16 %v2173
    %v2949 = vunpack.c.l.b16 %v2174
    %v2950 = vunpack.c.l.b16 %v2175
    %v2951 = vunpack.c.l.b16 %v2176
    %v2952 = vunpack.c.l.b16 %v2177
    %v2953 = vunpack.c.l.b16 %v2178
    %v2954 = vunpack.c.l.b16 %v2179
    %v2955 = vunpack.c.l.b16 %v2180
    %v2956 = vunpack.c.l.b16 %v2181
    %v2957 = vunpack.c.l.b16 %v2182
    %v2958 = vunpack.c.l.b16 %v2183
    %v2959 = vunpack.c.l.b16 %v2184
    %v2960 = vunpack.c.l.b16 %v2185
    %v2961 = vunpack.c.l.b16 %v2186
    %v2962 = vunpack.c.l.b16 %v2187
    %v2963 = vunpack.c.l.b16 %v2188
    %v2964 = vunpack.c.l.b16 %v2189
    %v2965 = vunpack.c.l.b16 %v2190
    %v2966 = vunpack.c.l.b16 %v2191
    %v2967 = vunpack.c.l.b16 %v2192
    %v2968 = vunpack.c.l.b16 %v2193
    %v2969 = vunpack.c.l.b16 %v2194
    %v2970 = vunpack.c.l.b16 %v2195
    %v2971 = vunpack.c.l.b16 %v2196
    %v2972 = vunpack.c.l.b16 %v2197
    %v2973 = vunpack.c.l.b16 %v2198
    %v2974 = vunpack.c.l.b16 %v2199
    %v2975 = vunpack.c.l.b16 %v2200
    %v2976 = vunpack.c.l.b16 %v2201
    %v2977 = vunpack.c.l.b16 %v2202
    %v2978 = vunpack.c.l.b16 %v2203
    %v2979 = vunpack.c.l.b16 %v2204
    %v2980 = vunpack.c.l.b16 %v2205
    %v2981 = vunpack.c.l.b16 %v2206
    %v2982 = vunpack.c.l.b16 %v2207
    %v2983 = vunpack.c.l.b16 %v2208
    %v2984 = vunpack.c.l.b16 %v2209
    %v2985 = vunpack.c.l.b16 %v2210
    %v2986 = vunpack.c.l.b16 %v2211
    %v2987 = vunpack.c.l.b16 %v2212
    %v2988 = vunpack.c.l.b16 %v2213
    %v2989 = vunpack.c.l.b16 %v2214
    %v2990 = vunpack.c.l.b16 %v2215
    %v2991 = vunpack.c.l.b16 %v2216
    %v2992 = vunpack.c.l.b16 %v2217
    %v2993 = vunpack.c.l.b16 %v2218
    %v2994 = vunpack.c.l.b16 %v2219
    %v2995 = vunpack.c.l.b16 %v2220
    %v2996 = vunpack.c.l.b16 %v2221
    %v2997 = vunpack.c.l.b16 %v2222
    %v2998 = vunpack.c.l.b16 %v2223
    %v2999 = vunpack.c.l.b16 %v2224
    %v3000 = vunpack.c.l.b16 %v2225
    %v3001 = vunpack.c.l.b16 %v2226
    %v3002 = vunpack.c.l.b16 %v2227
    %v3003 = vunpack.c.l.b16 %v2228
    %v3004 = vunpack.c.l.b16 %v2229
    %v3005 = vunpack.c.l.b16 %v2230
    %v3006 = vunpack.c.l.b16 %v2231
    %v3007 = vunpack.c.l.b16 %v2232
    %v3008 = vunpack.c.l.b16 %v2233
    %v3009 = vunpack.c.l.b16 %v2234
    %v3010 = vunpack.c.l.b16 %v2235
    %v3011 = vunpack.c.l.b16 %v2236
    %v3012 = vunpack.c.l.b16 %v2237
    %v3013 = vunpack.c.l.b16 %v2238
    %v3014 = vunpack.c.l.b16 %v2239
    %v3015 = vunpack.c.l.b16 %v2240
    %v3016 = vunpack.c.l.b16 %v2241
    %v3017 = vunpack.c.l.b16 %v2242
    %v3018 = vunpack.c.l.b16 %v2243
    %v3019 = vunpack.c.l.b16 %v2244
    %v3020 = vunpack.c.l.b16 %v2245
    %v3021 = vunpack.c.l.b16 %v2246
    %v3022 = vunpack.c.l.b16 %v2247
    %v3023 = vunpack.c.l.b16 %v2248
    %v3024 = vunpack.c.l.b16 %v2249
    %v3025 = vunpack.c.l.b16 %v2250
    %v3026 = vunpack.c.l.b16 %v2251
    %v3027 = vunpack.c.l.b16 %v2252
    %v3028 = vunpack.c.l.b16 %v2253
    %v3029 = vunpack.c.l.b16 %v2254
    %v3030 = vunpack.c.l.b16 %v2255
    %v3031 = vunpack.c.l.b16 %v2256
    %v3032 = vunpack.c.l.b16 %v2257
    %v3033 = vunpack.c.l.b16 %v2258
    %v3034 = vunpack.c.l.b16 %v2259
    %v3035 = vunpack.c.l.b16 %v2260
    %v3036 = vunpack.c.l.b16 %v2261
    %v3037 = vunpack.c.l.b16 %v2262
    %v3038 = vunpack.c.l.b16 %v2263
    %v3039 = vunpack.c.l.b16 %v2264
    %v3040 = vunpack.c.l.b16 %v2265
    %v3041 = vunpack.c.l.b16 %v2266
    %v3042 = vunpack.c.l.b16 %v2267
    %v3043 = vunpack.c.l.b16 %v2268
    %v3044 = vunpack.c.l.b16 %v2269
    %v3045 = vunpack.c.l.b16 %v2270
    %v3046 = vunpack.c.l.b16 %v2271
    %v3047 = vunpack.c.l.b16 %v2272
    %v3048 = vunpack.c.l.b16 %v2273
    %v3049 = vunpack.c.l.b16 %v2274
    %v3050 = vunpack.c.l.b16 %v2275
    %v3051 = vunpack.c.l.b16 %v2276
    %v3052 = vunpack.c.l.b16 %v2277
    %v3053 = vunpack.c.l.b16 %v2278
    %v3054 = vunpack.c.l.b16 %v2279
    %v3055 = vunpack.c.l.b16 %v2280
    %v3056 = vunpack.c.l.b16 %v2281
    %v3057 = vunpack.c.l.b16 %v2282
    %v3058 = vunpack.c.l.b16 %v2283
    %v3059 = vunpack.c.l.b16 %v2284
    %v3060 = vunpack.c.l.b16 %v2285
    %v3061 = vunpack.c.l.b16 %v2286
    %v3062 = vunpack.c.l.b16 %v2287
    %v3063 = vunpack.c.l.b16 %v2288
    %v3064 = vunpack.c.l.b16 %v2289
    %v3065 = vunpack.c.l.b16 %v2290
    %v3066 = vunpack.c.l.b16 %v2291
    %v3067 = vunpack.c.l.b16 %v2292
    %v3068 = vunpack.c.l.b16 %v2293
    %v3069 = vunpack.c.l.b16 %v2294
    %v3070 = vunpack.c.l.b16 %v2295
    %v3071 = vunpack.c.l.b16 %v2296
    %v3072 = vunpack.c.l.b16 %v2297
    %v3073 = vunpack.c.l.b16 %v2298
    %v3074 = vunpack.c.l.b16 %v2299
    %v3075 = vunpack.c.l.b16 %v2300
    %v3076 = vunpack.c.l.b16 %v2301
    %v3077 = vunpack.c.l.b16 %v2302
    %v3078 = vunpack.c.l.b16 %v2303
    %v3079 = vunpack.c.l.b16 %v2304
    %v3080 = vunpack.c.l.b16 %v2305
    %v3081 = vunpack.c.l.b16 %v2306
    %v3082 = vunpack.c.l.b16 %v2307
    %v3083 = vunpack.c.l.b16 %v2308
    %v3084 = vunpack.c.l.b16 %v2309
    %v3085 = vunpack.c.l.b16 %v2310
    %v3086 = vunpack.c.l.b16 %v2311
    %v3087 = vunpack.c.l.b16 %v2312
    %v3088 = vunpack.c.l.b16 %v2313
    %v3089 = vunpack.c.l.b16 %v2314
    %v3090 = vunpack.c.l.b16 %v2315
    %v3091 = vunpack.c.l.b16 %v2316
    %v3092 = vunpack.c.l.b16 %v2317
    %v3093 = vunpack.c.l.b16 %v2318
    %v3094 = vunpack.c.l.b16 %v2319
    %v3095 = vunpack.c.l.b16 %v2320
    %v3096 = vunpack.c.l.b16 %v2321
    %v3097 = vunpack.c.l.b16 %v2322
    %v3098 = vunpack.c.l.b16 %v2323
    %v3099 = vunpack.c.l.b16 %v2324
    %v3100 = vunpack.c.l.b16 %v2325
    %v3101 = vunpack.c.l.b16 %v2326
    %v3102 = vunpack.c.l.b16 %v2327
    %v3103 = vunpack.c.l.b16 %v2328
    %v3104 = vunpack.c.l.b16 %v2329
    %v3105 = vunpack.c.l.b16 %v2330
    %v3106 = vunpack.c.l.b16 %v2331
    %v3107 = vunpack.c.l.b16 %v2332
    %v3108 = vunpack.c.l.b16 %v2333
    %v3109 = vunpack.c.l.b16 %v2334
    %v3110 = vunpack.c.l.b16 %v2335
    %v3111 = vunpack.c.l.b16 %v2336
    %v3112 = vunpack.c.l.b16 %v2337
    %v3113 = vunpack.c.l.b16 %v2338
    %v3114 = vunpack.c.l.b16 %v2339
    %v3115 = vunpack.c.l.b16 %v2340
    %v3116 = vunpack.c.l.b16 %v2341
    %v3117 = vunpack.c.l.b16 %v2342
    %v3118 = vunpack.c.l.b16 %v2343
    %v3119 = vunpack.c.l.b16 %v2344
    %v3120 = vunpack.c.l.b16 %v2345
    %v3121 = vunpack.c.l.b16 %v2346
    %v3122 = vunpack.c.l.b16 %v2347
    %v3123 = vunpack.c.l.b16 %v2348
    %v3124 = vunpack.c.l.b16 %v2349
    %v3125 = vunpack.c.l.b16 %v2350
    %v3126 = vunpack.c.l.b16 %v2351
    %v3127 = vunpack.c.l.b16 %v2352
    %v3128 = vunpack.c.l.b16 %v2353
    %v3129 = vunpack.c.l.b16 %v2354
    %v3130 = vunpack.c.l.b16 %v2355
    %v3131 = vunpack.c.l.b16 %v2356
    %v3132 = vunpack.c.l.b16 %v2357
    %v3133 = vunpack.c.l.b16 %v2358
    %v3134 = vunpack.c.l.b16 %v2359
    %v3135 = vunpack.c.l.b16 %v2360
    %v3136 = vunpack.c.l.b16 %v2361
    %v3137 = vunpack.c.l.b16 %v2362
    %v3138 = vunpack.c.l.b16 %v2363
    %v3139 = vunpack.c.l.b16 %v2364
    %v3140 = vunpack.c.l.b16 %v2365
    %v3141 = vunpack.c.l.b16 %v2366
    %v3142 = vunpack.c.l.b16 %v2367
    %v3143 = vunpack.c.l.b16 %v2368
    %v3144 = vunpack.c.l.b16 %v2369
    %v3145 = vunpack.c.l.b16 %v2370
    %v3146 = vunpack.c.l.b16 %v2371
    %v3147 = vunpack.c.l.b16 %v2372
    %v3148 = vunpack.c.l.b16 %v2373
    %v3149 = vunpack.c.l.b16 %v2374
    %v3150 = vunpack.c.l.b16 %v2375
    %v3151 = vunpack.c.l.b16 %v2376
    %v3152 = vunpack.c.l.b16 %v2377
    %v3153 = vunpack.c.l.b16 %v2378
    %v3154 = vunpack.c.l.b16 %v2379
    %v3155 = vunpack.c.l.b16 %v2380
    %v3156 = vunpack.c.l.b16 %v2381
    %v3157 = vunpack.c.l.b16 %v2382
    %v3158 = vunpack.c.l.b16 %v2383
    %v3159 = vunpack.c.l.b16 %v2384
    %v3160 = vunpack.c.l.b16 %v2385
    %v3161 = vunpack.c.l.b16 %v2386
    %v3162 = vunpack.c.l.b16 %v2387
    %v3163 = vunpack.c.l.b16 %v2388
    %v3164 = vunpack.c.l.b16 %v2389
    %v3165 = vunpack.c.l.b16 %v2390
    %v3166 = vunpack.c.l.b16 %v2391
    %v3167 = vunpack.c.l.b16 %v2392
    %v3168 = vunpack.c.l.b16 %v2393
    %v3169 = vunpack.c.l.b16 %v2394
    %v3170 = vunpack.c.l.b16 %v2395
    %v3171 = vunpack.c.l.b16 %v2396
    %v3172 = vunpack.c.l.b16 %v2397
    %v3173 = vunpack.c.l.b16 %v2398
    %v3174 = vunpack.c.l.b16 %v2399
    %v3175 = vunpack.c.l.b16 %v2400
    %v3176 = vunpack.c.l.b16 %v2401
    %v3177 = vunpack.c.l.b16 %v2402
    %v3178 = vunpack.c.l.b16 %v2403
    %v3179 = vunpack.c.l.b16 %v2404
    %v3180 = vunpack.c.l.b16 %v2405
    %v3181 = vunpack.c.l.b16 %v2406
    %v3182 = vunpack.c.l.b16 %v2407
    %v3183 = vunpack.c.l.b16 %v2408
    %v3184 = vunpack.c.l.b16 %v2409
    %v3185 = vunpack.c.l.b16 %v2410
    %v3186 = vunpack.c.l.b16 %v2411
    %v3187 = vunpack.c.l.b16 %v2412
    %v3188 = vunpack.c.l.b16 %v2413
    %v3189 = vunpack.c.l.b16 %v2414
    %v3190 = vunpack.c.l.b16 %v2415
    %v3191 = vunpack.c.l.b16 %v2416
    %v3192 = vunpack.c.l.b16 %v2417
    %v3193 = vunpack.c.l.b16 %v2418
    %v3194 = vunpack.c.l.b16 %v2419
    %v3195 = vunpack.c.l.b16 %v2420
    %v3196 = vunpack.c.l.b16 %v2421
    %v3197 = vunpack.c.l.b16 %v2422
    %v3198 = vunpack.c.l.b16 %v2423
    %v3199 = vunpack.c.l.b16 %v2424
    %v3200 = vunpack.c.l.b16 %v2425
    %v3201 = vunpack.c.l.b16 %v2426
    %v3202 = vunpack.c.l.b16 %v2427
    %v3203 = vunpack.c.l.b16 %v2428
    %v3204 = vunpack.c.l.b16 %v2429
    %v3205 = vunpack.c.l.b16 %v2430
    %v3206 = vunpack.c.l.b16 %v2431
    %v3207 = vunpack.c.l.b16 %v2432
    %v3208 = vunpack.c.l.b16 %v2433
    %v3209 = vunpack.c.l.b16 %v2434
    %v3210 = vunpack.c.l.b16 %v2435
    %v3211 = vunpack.c.l.b16 %v2436
    %v3212 = vunpack.c.l.b16 %v2437
    %v3213 = vunpack.c.l.b16 %v2438
    %v3214 = vunpack.c.l.b16 %v2439
    %v3215 = vunpack.c.l.b16 %v2440
    %v3216 = vunpack.c.l.b16 %v2441
    %v3217 = vunpack.c.l.b16 %v2442
    %v3218 = vunpack.c.l.b16 %v2443
    %v3219 = vunpack.c.l.b16 %v2444
    %v3220 = vunpack.c.l.b16 %v2445
    %v3221 = vunpack.c.l.b16 %v2446
    %v3222 = vunpack.c.l.b16 %v2447
    %v3223 = vunpack.c.l.b16 %v2448
    %v3224 = vunpack.c.l.b16 %v2449
    %v3225 = vunpack.c.l.b16 %v2450
    %v3226 = vunpack.c.l.b16 %v2451
    %v3227 = vunpack.c.l.b16 %v2452
    %v3228 = vunpack.c.l.b16 %v2453
    %v3229 = vunpack.c.l.b16 %v2454
    %v3230 = vunpack.c.l.b16 %v2455
    %v3231 = vunpack.c.l.b16 %v2456
    %v3232 = vunpack.c.l.b16 %v2457
    %v3233 = vunpack.c.l.b16 %v2458
    %v3234 = vunpack.c.l.b16 %v2459
    %v3235 = vunpack.c.l.b16 %v2460
    %v3236 = vunpack.c.l.b16 %v2461
    %v3237 = vunpack.c.l.b16 %v2462
    %v3238 = vunpack.c.l.b16 %v2463
    %v3239 = vunpack.c.l.b16 %v2464
    %v3240 = vunpack.c.l.b16 %v2465
    %v3241 = vunpack.c.l.b16 %v2466
    %v3242 = vunpack.c.l.b16 %v2467
    %v3243 = vunpack.c.l.b16 %v2468
    %v3244 = vunpack.c.l.b16 %v2469
    %v3245 = vunpack.c.l.b16 %v2470
    %v3246 = vunpack.c.l.b16 %v2471
    %v3247 = vunpack.c.l.b16 %v2472
    %v3248 = vpack.c.b16 %v2865, %v2864
    %v3249 = vpack.c.b16 %v2867, %v2866
    %v3250 = vpack.c.b16 %v2869, %v2868
    %v3251 = vpack.c.b16 %v2871, %v2870
    %v3252 = vpack.c.b16 %v2873, %v2872
    %v3253 = vpack.c.b16 %v2875, %v2874
    %v3254 = vpack.c.b16 %v2877, %v2876
    %v3255 = vpack.c.b16 %v2879, %v2878
    %v3256 = vpack.c.b16 %v2881, %v2880
    %v3257 = vpack.c.b16 %v2883, %v2882
    %v3258 = vpack.c.b16 %v2885, %v2884
    %v3259 = vpack.c.b16 %v2887, %v2886
    %v3260 = vpack.c.b16 %v2889, %v2888
    %v3261 = vpack.c.b16 %v2891, %v2890
    %v3262 = vpack.c.b16 %v2893, %v2892
    %v3263 = vpack.c.b16 %v2895, %v2894
    %v3264 = vpack.c.b16 %v2897, %v2896
    %v3265 = vpack.c.b16 %v2899, %v2898
    %v3266 = vpack.c.b16 %v2901, %v2900
    %v3267 = vpack.c.b16 %v2903, %v2902
    %v3268 = vpack.c.b16 %v2905, %v2904
    %v3269 = vpack.c.b16 %v2907, %v2906
    %v3270 = vpack.c.b16 %v2909, %v2908
    %v3271 = vpack.c.b16 %v2911, %v2910
    %v3272 = vpack.c.b16 %v2913, %v2912
    %v3273 = vpack.c.b16 %v2915, %v2914
    %v3274 = vpack.c.b16 %v2917, %v2916
    %v3275 = vpack.c.b16 %v2919, %v2918
    %v3276 = vpack.c.b16 %v2921, %v2920
    %v3277 = vpack.c.b16 %v2923, %v2922
    %v3278 = vpack.c.b16 %v2925, %v2924
    %v3279 = vpack.c.b16 %v2927, %v2926
    %v3280 = vpack.c.b16 %v2929, %v2928
    %v3281 = vpack.c.b16 %v2931, %v2930
    %v3282 = vpack.c.b16 %v2933, %v2932
    %v3283 = vpack.c.b16 %v2935, %v2934
    %v3284 = vpack.c.b16 %v2937, %v2936
    %v3285 = vpack.c.b16 %v2939, %v2938
    %v3286 = vpack.c.b16 %v2941, %v2940
    %v3287 = vpack.c.b16 %v2943, %v2942
    %v3288 = vpack.c.b16 %v2945, %v2944
    %v3289 = vpack.c.b16 %v2947, %v2946
    %v3290 = vpack.c.b16 %v2949, %v2948
    %v3291 = vpack.c.b16 %v2951, %v2950
    %v3292 = vpack.c.b16 %v2953, %v2952
    %v3293 = vpack.c.b16 %v2955, %v2954
    %v3294 = vpack.c.b16 %v2957, %v2956
    %v3295 = vpack.c.b16 %v2959, %v2958
    %v3296 = vpack.c.b16 %v2961, %v2960
    %v3297 = vpack.c.b16 %v2963, %v2962
    %v3298 = vpack.c.b16 %v2965, %v2964
    %v3299 = vpack.c.b16 %v2967, %v2966
    %v3300 = vpack.c.b16 %v2969, %v2968
    %v3301 = vpack.c.b16 %v2971, %v2970
    %v3302 = vpack.c.b16 %v2973, %v2972
    %v3303 = vpack.c.b16 %v2975, %v2974
    %v3304 = vpack.c.b16 %v2977, %v2976
    %v3305 = vpack.c.b16 %v2979, %v2978
    %v3306 = vpack.c.b16 %v2981, %v2980
    %v3307 = vpack.c.b16 %v2983, %v2982
    %v3308 = vpack.c.b16 %v2985, %v2984
    %v3309 = vpack.c.b16 %v2987, %v2986
    %v3310 = vpack.c.b16 %v2989, %v2988
    %v3311 = vpack.c.b16 %v2991, %v2990
    %v3312 = vpack.c.b16 %v2993, %v2992
    %v3313 = vpack.c.b16 %v2995, %v2994
    %v3314 = vpack.c.b16 %v2997, %v2996
    %v3315 = vpack.c.b16 %v2999, %v2998
    %v3316 = vpack.c.b16 %v3001, %v3000
    %v3317 = vpack.c.b16 %v3003, %v3002
    %v3318 = vpack.c.b16 %v3005, %v3004
    %v3319 = vpack.c.b16 %v3007, %v3006
    %v3320 = vpack.c.b16 %v3009, %v3008
    %v3321 = vpack.c.b16 %v3011, %v3010
    %v3322 = vpack.c.b16 %v3013, %v3012
    %v3323 = vpack.c.b16 %v3015, %v3014
    %v3324 = vpack.c.b16 %v3017, %v3016
    %v3325 = vpack.c.b16 %v3019, %v3018
    %v3326 = vpack.c.b16 %v3021, %v3020
    %v3327 = vpack.c.b16 %v3023, %v3022
    %v3328 = vpack.c.b16 %v3025, %v3024
    %v3329 = vpack.c.b16 %v3027, %v3026
    %v3330 = vpack.c.b16 %v3029, %v3028
    %v3331 = vpack.c.b16 %v3031, %v3030
    %v3332 = vpack.c.b16 %v3033, %v3032
    %v3333 = vpack.c.b16 %v3035, %v3034
    %v3334 = vpack.c.b16 %v3037, %v3036
    %v3335 = vpack.c.b16 %v3039, %v3038
    %v3336 = vpack.c.b16 %v3041, %v3040
    %v3337 = vpack.c.b16 %v3043, %v3042
    %v3338 = vpack.c.b16 %v3045, %v3044
    %v3339 = vpack.c.b16 %v3047, %v3046
    %v3340 = vpack.c.b16 %v3049, %v3048
    %v3341 = vpack.c.b16 %v3051, %v3050
    %v3342 = vpack.c.b16 %v3053, %v3052
    %v3343 = vpack.c.b16 %v3055, %v3054
    %v3344 = vpack.c.b16 %v3057, %v3056
    %v3345 = vpack.c.b16 %v3059, %v3058
    %v3346 = vpack.c.b16 %v3061, %v3060
    %v3347 = vpack.c.b16 %v3063, %v3062
    %v3348 = vpack.c.b16 %v3065, %v3064
    %v3349 = vpack.c.b16 %v3067, %v3066
    %v3350 = vpack.c.b16 %v3069, %v3068
    %v3351 = vpack.c.b16 %v3071, %v3070
    %v3352 = vpack.c.b16 %v3073, %v3072
    %v3353 = vpack.c.b16 %v3075, %v3074
    %v3354 = vpack.c.b16 %v3077, %v3076
    %v3355 = vpack.c.b16 %v3079, %v3078
    %v3356 = vpack.c.b16 %v3081, %v3080
    %v3357 = vpack.c.b16 %v3083, %v3082
    %v3358 = vpack.c.b16 %v3085, %v3084
    %v3359 = vpack.c.b16 %v3087, %v3086
    %v3360 = vpack.c.b16 %v3089, %v3088
    %v3361 = vpack.c.b16 %v3091, %v3090
    %v3362 = vpack.c.b16 %v3093, %v3092
    %v3363 = vpack.c.b16 %v3095, %v3094
    %v3364 = vpack.c.b16 %v3097, %v3096
    %v3365 = vpack.c.b16 %v3099, %v3098
    %v3366 = vpack.c.b16 %v3101, %v3100
    %v3367 = vpack.c.b16 %v3103, %v3102
    %v3368 = vpack.c.b16 %v3105, %v3104
    %v3369 = vpack.c.b16 %v3107, %v3106
    %v3370 = vpack.c.b16 %v3109, %v3108
    %v3371 = vpack.c.b16 %v3111, %v3110
    %v3372 = vpack.c.b16 %v3113, %v3112
    %v3373 = vpack.c.b16 %v3115, %v3114
    %v3374 = vpack.c.b16 %v3117, %v3116
    %v3375 = vpack.c.b16 %v3119, %v3118
    %v3376 = vpack.c.b16 %v3121, %v3120
    %v3377 = vpack.c.b16 %v3123, %v3122
    %v3378 = vpack.c.b16 %v3125, %v3124
    %v3379 = vpack.c.b16 %v3127, %v3126
    %v3380 = vpack.c.b16 %v3129, %v3128
    %v3381 = vpack.c.b16 %v3131, %v3130
    %v3382 = vpack.c.b16 %v3133, %v3132
    %v3383 = vpack.c.b16 %v3135, %v3134
    %v3384 = vpack.c.b16 %v3137, %v3136
    %v3385 = vpack.c.b16 %v3139, %v3138
    %v3386 = vpack.c.b16 %v3141, %v3140
    %v3387 = vpack.c.b16 %v3143, %v3142
    %v3388 = vpack.c.b16 %v3145, %v3144
    %v3389 = vpack.c.b16 %v3147, %v3146
    %v3390 = vpack.c.b16 %v3149, %v3148
    %v3391 = vpack.c.b16 %v3151, %v3150
    %v3392 = vpack.c.b16 %v3153, %v3152
    %v3393 = vpack.c.b16 %v3155, %v3154
    %v3394 = vpack.c.b16 %v3157, %v3156
    %v3395 = vpack.c.b16 %v3159, %v3158
    %v3396 = vpack.c.b16 %v3161, %v3160
    %v3397 = vpack.c.b16 %v3163, %v3162
    %v3398 = vpack.c.b16 %v3165, %v3164
    %v3399 = vpack.c.b16 %v3167, %v3166
    %v3400 = vpack.c.b16 %v3169, %v3168
    %v3401 = vpack.c.b16 %v3171, %v3170
    %v3402 = vpack.c.b16 %v3173, %v3172
    %v3403 = vpack.c.b16 %v3175, %v3174
    %v3404 = vpack.c.b16 %v3177, %v3176
    %v3405 = vpack.c.b16 %v3179, %v3178
    %v3406 = vpack.c.b16 %v3181, %v3180
    %v3407 = vpack.c.b16 %v3183, %v3182
    %v3408 = vpack.c.b16 %v3185, %v3184
    %v3409 = vpack.c.b16 %v3187, %v3186
    %v3410 = vpack.c.b16 %v3189, %v3188
    %v3411 = vpack.c.b16 %v3191, %v3190
    %v3412 = vpack.c.b16 %v3193, %v3192
    %v3413 = vpack.c.b16 %v3195, %v3194
    %v3414 = vpack.c.b16 %v3197, %v3196
    %v3415 = vpack.c.b16 %v3199, %v3198
    %v3416 = vpack.c.b16 %v3201, %v3200
    %v3417 = vpack.c.b16 %v3203, %v3202
    %v3418 = vpack.c.b16 %v3205, %v3204
    %v3419 = vpack.c.b16 %v3207, %v3206
    %v3420 = vpack.c.b16 %v3209, %v3208
    %v3421 = vpack.c.b16 %v3211, %v3210
    %v3422 = vpack.c.b16 %v3213, %v3212
    %v3423 = vpack.c.b16 %v3215, %v3214
    %v3424 = vpack.c.b16 %v3217, %v3216
    %v3425 = vpack.c.b16 %v3219, %v3218
    %v3426 = vpack.c.b16 %v3221, %v3220
    %v3427 = vpack.c.b16 %v3223, %v3222
    %v3428 = vpack.c.b16 %v3225, %v3224
    %v3429 = vpack.c.b16 %v3227, %v3226
    %v3430 = vpack.c.b16 %v3229, %v3228
    %v3431 = vpack.c.b16 %v3231, %v3230
    %v3432 = vpack.c.b16 %v3233, %v3232
    %v3433 = vpack.c.b16 %v3235, %v3234
    %v3434 = vpack.c.b16 %v3237, %v3236
    %v3435 = vpack.c.b16 %v3239, %v3238
    %v3436 = vpack.c.b16 %v3241, %v3240
    %v3437 = vpack.c.b16 %v3243, %v3242
    %v3438 = vpack.c.b16 %v3245, %v3244
    %v3439 = vpack.c.b16 %v3247, %v3246
    %3632 = vmatprep.subr.bf16.mxu0 0
    %3633 = vmatpush1.bf16.msra.mxu0 %v3248
    %3634 = vmatprep.subr.bf16.mxu0 0
    %3635 = vmatpush1.bf16.msra.mxu0 %v3249
    %3636 = vmatprep.subr.bf16.mxu0 0
    %3637 = vmatpush1.bf16.msra.mxu0 %v3250
    %3638 = vmatprep.subr.bf16.mxu0 0
    %3639 = vmatpush1.bf16.msra.mxu0 %v3251
    %3640 = vmatprep.subr.bf16.mxu0 0
    %3641 = vmatpush1.bf16.msra.mxu0 %v3252
    %3642 = vmatprep.subr.bf16.mxu0 0
    %3643 = vmatpush1.bf16.msra.mxu0 %v3253
    %3644 = vmatprep.subr.bf16.mxu0 0
    %3645 = vmatpush1.bf16.msra.mxu0 %v3254
    %3646 = vmatprep.subr.bf16.mxu0 0
    %3647 = vmatpush1.bf16.msra.mxu0 %v3255
    %3648 = vmatprep.subr.bf16.mxu0 0
    %3649 = vmatpush1.bf16.msra.mxu0 %v3256
    %3650 = vmatprep.subr.bf16.mxu0 0
    %3651 = vmatpush1.bf16.msra.mxu0 %v3257
    %3652 = vmatprep.subr.bf16.mxu0 0
    %3653 = vmatpush1.bf16.msra.mxu0 %v3258
    %3654 = vmatprep.subr.bf16.mxu0 0
    %3655 = vmatpush1.bf16.msra.mxu0 %v3259
    %3656 = vmatprep.subr.bf16.mxu0 0
    %3657 = vmatpush1.bf16.msra.mxu0 %v3260
    %3658 = vmatprep.subr.bf16.mxu0 0
    %3659 = vmatpush1.bf16.msra.mxu0 %v3261
    %3660 = vmatprep.subr.bf16.mxu0 0
    %3661 = vmatpush1.bf16.msra.mxu0 %v3262
    %3662 = vmatprep.subr.bf16.mxu0 0
    %3663 = vmatpush1.bf16.msra.mxu0 %v3263
    %3664 = vmatprep.mubr.bf16.mxu0 %v2066
    %3665 = vmatmul.mubr.bf16.gmra.mrb[0].mxu0 %v2065
    %v3666 = vpop.f32.mrb[0].mxu0
    %v3667 = vadd.f32 %v2478, %v3666
    %v3668 = vpop.f32.mrb[0].mxu0
    %v3669 = vpop.f32.mrb[0].mxu0
    %v3670 = vadd.f32 %v2478, %v3669
    %v3671 = vpop.f32.mrb[0].mxu0
    %3672 = vdwg.mxu0
    %3673 = vmatprep.subr.bf16.mxu0 0
    %3674 = vmatpush1.bf16.msra.mxu0 %v3264
    %3675 = vmatprep.subr.bf16.mxu0 0
    %3676 = vmatpush1.bf16.msra.mxu0 %v3265
    %3677 = vmatprep.subr.bf16.mxu0 0
    %3678 = vmatpush1.bf16.msra.mxu0 %v3266
    %3679 = vmatprep.subr.bf16.mxu0 0
    %3680 = vmatpush1.bf16.msra.mxu0 %v3267
    %3681 = vmatprep.subr.bf16.mxu0 0
    %3682 = vmatpush1.bf16.msra.mxu0 %v3268
    %3683 = vmatprep.subr.bf16.mxu0 0
    %3684 = vmatpush1.bf16.msra.mxu0 %v3269
    %3685 = vmatprep.subr.bf16.mxu0 0
    %3686 = vmatpush1.bf16.msra.mxu0 %v3270
    %3687 = vmatprep.subr.bf16.mxu0 0
    %3688 = vmatpush1.bf16.msra.mxu0 %v3271
    %3689 = vmatprep.subr.bf16.mxu0 0
    %3690 = vmatpush1.bf16.msra.mxu0 %v3272
    %3691 = vmatprep.subr.bf16.mxu0 0
    %3692 = vmatpush1.bf16.msra.mxu0 %v3273
    %3693 = vmatprep.subr.bf16.mxu0 0
    %3694 = vmatpush1.bf16.msra.mxu0 %v3274
    %3695 = vmatprep.subr.bf16.mxu0 0
    %3696 = vmatpush1.bf16.msra.mxu0 %v3275
    %3697 = vmatprep.subr.bf16.mxu0 0
    %3698 = vmatpush1.bf16.msra.mxu0 %v3276
    %3699 = vmatprep.subr.bf16.mxu0 0
    %3700 = vmatpush1.bf16.msra.mxu0 %v3277
    %3701 = vmatprep.subr.bf16.mxu0 0
    %3702 = vmatpush1.bf16.msra.mxu0 %v3278
    %3703 = vmatprep.subr.bf16.mxu0 0
    %3704 = vmatpush1.bf16.msra.mxu0 %v3279
    %3705 = vmatprep.mubr.bf16.mxu0 %v2068
    %3706 = vmatmul.mubr.bf16.gmra.mrb[0].mxu0 %v2067
    %v3707 = vpop.f32.mrb[0].mxu0
    %v3708 = vadd.f32 %v3667, %v3707
    %v3709 = vpop.f32.mrb[0].mxu0
    %v3710 = vpop.f32.mrb[0].mxu0
    %v3711 = vadd.f32 %v3670, %v3710
    %v3712 = vpop.f32.mrb[0].mxu0
    %3713 = vdwg.mxu0
    %3714 = vmatprep.subr.bf16.mxu0 0
    %3715 = vmatpush1.bf16.msra.mxu0 %v3280
    %3716 = vmatprep.subr.bf16.mxu0 0
    %3717 = vmatpush1.bf16.msra.mxu0 %v3281
    %3718 = vmatprep.subr.bf16.mxu0 0
    %3719 = vmatpush1.bf16.msra.mxu0 %v3282
    %3720 = vmatprep.subr.bf16.mxu0 0
    %3721 = vmatpush1.bf16.msra.mxu0 %v3283
    %3722 = vmatprep.subr.bf16.mxu0 0
    %3723 = vmatpush1.bf16.msra.mxu0 %v3284
    %3724 = vmatprep.subr.bf16.mxu0 0
    %3725 = vmatpush1.bf16.msra.mxu0 %v3285
    %3726 = vmatprep.subr.bf16.mxu0 0
    %3727 = vmatpush1.bf16.msra.mxu0 %v3286
    %3728 = vmatprep.subr.bf16.mxu0 0
    %3729 = vmatpush1.bf16.msra.mxu0 %v3287
    %3730 = vmatprep.subr.bf16.mxu0 0
    %3731 = vmatpush1.bf16.msra.mxu0 %v3288
    %3732 = vmatprep.subr.bf16.mxu0 0
    %3733 = vmatpush1.bf16.msra.mxu0 %v3289
    %3734 = vmatprep.subr.bf16.mxu0 0
    %3735 = vmatpush1.bf16.msra.mxu0 %v3290
    %3736 = vmatprep.subr.bf16.mxu0 0
    %3737 = vmatpush1.bf16.msra.mxu0 %v3291
    %3738 = vmatprep.subr.bf16.mxu0 0
    %3739 = vmatpush1.bf16.msra.mxu0 %v3292
    %3740 = vmatprep.subr.bf16.mxu0 0
    %3741 = vmatpush1.bf16.msra.mxu0 %v3293
    %3742 = vmatprep.subr.bf16.mxu0 0
    %3743 = vmatpush1.bf16.msra.mxu0 %v3294
    %3744 = vmatprep.subr.bf16.mxu0 0
    %3745 = vmatpush1.bf16.msra.mxu0 %v3295
    %3746 = vmatprep.mubr.bf16.mxu0 %v2070
    %3747 = vmatmul.mubr.bf16.gmra.mrb[0].mxu0 %v2069
    %v3748 = vpop.f32.mrb[0].mxu0
    %v3749 = vadd.f32 %v3708, %v3748
    %v3750 = vpop.f32.mrb[0].mxu0
    %v3751 = vpop.f32.mrb[0].mxu0
    %v3752 = vadd.f32 %v3711, %v3751
    %v3753 = vpop.f32.mrb[0].mxu0
    %3754 = vdwg.mxu0
    %3755 = vmatprep.subr.bf16.mxu0 0
    %3756 = vmatpush1.bf16.msra.mxu0 %v3296
    %3757 = vmatprep.subr.bf16.mxu0 0
    %3758 = vmatpush1.bf16.msra.mxu0 %v3297
    %3759 = vmatprep.subr.bf16.mxu0 0
    %3760 = vmatpush1.bf16.msra.mxu0 %v3298
    %3761 = vmatprep.subr.bf16.mxu0 0
    %3762 = vmatpush1.bf16.msra.mxu0 %v3299
    %3763 = vmatprep.subr.bf16.mxu0 0
    %3764 = vmatpush1.bf16.msra.mxu0 %v3300
    %3765 = vmatprep.subr.bf16.mxu0 0
    %3766 = vmatpush1.bf16.msra.mxu0 %v3301
    %3767 = vmatprep.subr.bf16.mxu0 0
    %3768 = vmatpush1.bf16.msra.mxu0 %v3302
    %3769 = vmatprep.subr.bf16.mxu0 0
    %3770 = vmatpush1.bf16.msra.mxu0 %v3303
    %3771 = vmatprep.subr.bf16.mxu0 0
    %3772 = vmatpush1.bf16.msra.mxu0 %v3304
    %3773 = vmatprep.subr.bf16.mxu0 0
    %3774 = vmatpush1.bf16.msra.mxu0 %v3305
    %3775 = vmatprep.subr.bf16.mxu0 0
    %3776 = vmatpush1.bf16.msra.mxu0 %v3306
    %3777 = vmatprep.subr.bf16.mxu0 0
    %3778 = vmatpush1.bf16.msra.mxu0 %v3307
    %3779 = vmatprep.subr.bf16.mxu0 0
    %3780 = vmatpush1.bf16.msra.mxu0 %v3308
    %3781 = vmatprep.subr.bf16.mxu0 0
    %3782 = vmatpush1.bf16.msra.mxu0 %v3309
    %3783 = vmatprep.subr.bf16.mxu0 0
    %3784 = vmatpush1.bf16.msra.mxu0 %v3310
    %3785 = vmatprep.subr.bf16.mxu0 0
    %3786 = vmatpush1.bf16.msra.mxu0 %v3311
    %3787 = vmatprep.mubr.bf16.mxu0 %v2072
    %3788 = vmatmul.mubr.bf16.gmra.mrb[0].mxu0 %v2071
    %v3789 = vpop.f32.mrb[0].mxu0
    %v3790 = vadd.f32 %v3749, %v3789
    %v3791 = vpop.f32.mrb[0].mxu0
    %v3792 = vpop.f32.mrb[0].mxu0
    %v3793 = vadd.f32 %v3752, %v3792
    %v3794 = vpop.f32.mrb[0].mxu0
    %3795 = vdwg.mxu0
    %3796 = vmatprep.subr.bf16.mxu0 0
    %3797 = vmatpush1.bf16.msra.mxu0 %v3312
    %3798 = vmatprep.subr.bf16.mxu0 0
    %3799 = vmatpush1.bf16.msra.mxu0 %v3313
    %3800 = vmatprep.subr.bf16.mxu0 0
    %3801 = vmatpush1.bf16.msra.mxu0 %v3314
    %3802 = vmatprep.subr.bf16.mxu0 0
    %3803 = vmatpush1.bf16.msra.mxu0 %v3315
    %3804 = vmatprep.subr.bf16.mxu0 0
    %3805 = vmatpush1.bf16.msra.mxu0 %v3316
    %3806 = vmatprep.subr.bf16.mxu0 0
    %3807 = vmatpush1.bf16.msra.mxu0 %v3317
    %3808 = vmatprep.subr.bf16.mxu0 0
    %3809 = vmatpush1.bf16.msra.mxu0 %v3318
    %3810 = vmatprep.subr.bf16.mxu0 0
    %3811 = vmatpush1.bf16.msra.mxu0 %v3319
    %3812 = vmatprep.subr.bf16.mxu0 0
    %3813 = vmatpush1.bf16.msra.mxu0 %v3320
    %3814 = vmatprep.subr.bf16.mxu0 0
    %3815 = vmatpush1.bf16.msra.mxu0 %v3321
    %3816 = vmatprep.subr.bf16.mxu0 0
    %3817 = vmatpush1.bf16.msra.mxu0 %v3322
    %3818 = vmatprep.subr.bf16.mxu0 0
    %3819 = vmatpush1.bf16.msra.mxu0 %v3323
    %3820 = vmatprep.subr.bf16.mxu0 0
    %3821 = vmatpush1.bf16.msra.mxu0 %v3324
    %3822 = vmatprep.subr.bf16.mxu0 0
    %3823 = vmatpush1.bf16.msra.mxu0 %v3325
    %3824 = vmatprep.subr.bf16.mxu0 0
    %3825 = vmatpush1.bf16.msra.mxu0 %v3326
    %3826 = vmatprep.subr.bf16.mxu0 0
    %3827 = vmatpush1.bf16.msra.mxu0 %v3327
    %3828 = vmatprep.mubr.bf16.mxu0 %v2074
    %3829 = vmatmul.mubr.bf16.gmra.mrb[0].mxu0 %v2073
    %v3830 = vpop.f32.mrb[0].mxu0
    %v3831 = vadd.f32 %v3790, %v3830
    %v3832 = vpop.f32.mrb[0].mxu0
    %v3833 = vpop.f32.mrb[0].mxu0
    %v3834 = vadd.f32 %v3793, %v3833
    %v3835 = vpop.f32.mrb[0].mxu0
    %3836 = vdwg.mxu0
    %3837 = vmatprep.subr.bf16.mxu0 0
    %3838 = vmatpush1.bf16.msra.mxu0 %v3328
    %3839 = vmatprep.subr.bf16.mxu0 0
    %3840 = vmatpush1.bf16.msra.mxu0 %v3329
    %3841 = vmatprep.subr.bf16.mxu0 0
    %3842 = vmatpush1.bf16.msra.mxu0 %v3330
    %3843 = vmatprep.subr.bf16.mxu0 0
    %3844 = vmatpush1.bf16.msra.mxu0 %v3331
    %3845 = vmatprep.subr.bf16.mxu0 0
    %3846 = vmatpush1.bf16.msra.mxu0 %v3332
    %3847 = vmatprep.subr.bf16.mxu0 0
    %3848 = vmatpush1.bf16.msra.mxu0 %v3333
    %3849 = vmatprep.subr.bf16.mxu0 0
    %3850 = vmatpush1.bf16.msra.mxu0 %v3334
    %3851 = vmatprep.subr.bf16.mxu0 0
    %3852 = vmatpush1.bf16.msra.mxu0 %v3335
    %3853 = vmatprep.subr.bf16.mxu0 0
    %3854 = vmatpush1.bf16.msra.mxu0 %v3336
    %3855 = vmatprep.subr.bf16.mxu0 0
    %3856 = vmatpush1.bf16.msra.mxu0 %v3337
    %3857 = vmatprep.subr.bf16.mxu0 0
    %3858 = vmatpush1.bf16.msra.mxu0 %v3338
    %3859 = vmatprep.subr.bf16.mxu0 0
    %3860 = vmatpush1.bf16.msra.mxu0 %v3339
    %3861 = vmatprep.subr.bf16.mxu0 0
    %3862 = vmatpush1.bf16.msra.mxu0 %v3340
    %3863 = vmatprep.subr.bf16.mxu0 0
    %3864 = vmatpush1.bf16.msra.mxu0 %v3341
    %3865 = vmatprep.subr.bf16.mxu0 0
    %3866 = vmatpush1.bf16.msra.mxu0 %v3342
    %3867 = vmatprep.subr.bf16.mxu0 0
    %3868 = vmatpush1.bf16.msra.mxu0 %v3343
    %3869 = vmatprep.mubr.bf16.mxu0 %v2076
    %3870 = vmatmul.mubr.bf16.gmra.mrb[0].mxu0 %v2075
    %v3871 = vpop.f32.mrb[0].mxu0
    %v3872 = vadd.f32 %v3831, %v3871
    %v3873 = vpop.f32.mrb[0].mxu0
    %v3874 = vpop.f32.mrb[0].mxu0
    %v3875 = vadd.f32 %v3834, %v3874
    %v3876 = vpop.f32.mrb[0].mxu0
    %3877 = vdwg.mxu0
    %3878 = vmatprep.subr.bf16.mxu0 0
    %3879 = vmatpush1.bf16.msra.mxu0 %v3344
    %3880 = vmatprep.subr.bf16.mxu0 0
    %3881 = vmatpush1.bf16.msra.mxu0 %v3345
    %3882 = vmatprep.subr.bf16.mxu0 0
    %3883 = vmatpush1.bf16.msra.mxu0 %v3346
    %3884 = vmatprep.subr.bf16.mxu0 0
    %3885 = vmatpush1.bf16.msra.mxu0 %v3347
    %3886 = vmatprep.subr.bf16.mxu0 0
    %3887 = vmatpush1.bf16.msra.mxu0 %v3348
    %3888 = vmatprep.subr.bf16.mxu0 0
    %3889 = vmatpush1.bf16.msra.mxu0 %v3349
    %3890 = vmatprep.subr.bf16.mxu0 0
    %3891 = vmatpush1.bf16.msra.mxu0 %v3350
    %3892 = vmatprep.subr.bf16.mxu0 0
    %3893 = vmatpush1.bf16.msra.mxu0 %v3351
    %3894 = vmatprep.subr.bf16.mxu0 0
    %3895 = vmatpush1.bf16.msra.mxu0 %v3352
    %3896 = vmatprep.subr.bf16.mxu0 0
    %3897 = vmatpush1.bf16.msra.mxu0 %v3353
    %3898 = vmatprep.subr.bf16.mxu0 0
    %3899 = vmatpush1.bf16.msra.mxu0 %v3354
    %3900 = vmatprep.subr.bf16.mxu0 0
    %3901 = vmatpush1.bf16.msra.mxu0 %v3355
    %3902 = vmatprep.subr.bf16.mxu0 0
    %3903 = vmatpush1.bf16.msra.mxu0 %v3356
    %3904 = vmatprep.subr.bf16.mxu0 0
    %3905 = vmatpush1.bf16.msra.mxu0 %v3357
    %3906 = vmatprep.subr.bf16.mxu0 0
    %3907 = vmatpush1.bf16.msra.mxu0 %v3358
    %3908 = vmatprep.subr.bf16.mxu0 0
    %3909 = vmatpush1.bf16.msra.mxu0 %v3359
    %3910 = vmatprep.mubr.bf16.mxu0 %v2078
    %3911 = vmatmul.mubr.bf16.gmra.mrb[0].mxu0 %v2077
    %v3912 = vpop.f32.mrb[0].mxu0
    %v3913 = vadd.f32 %v3872, %v3912
    %v3914 = vpop.f32.mrb[0].mxu0
    %v3915 = vpop.f32.mrb[0].mxu0
    %v3916 = vadd.f32 %v3875, %v3915
    %v3917 = vpop.f32.mrb[0].mxu0
    %3918 = vdwg.mxu0
    %3919 = vmatprep.subr.bf16.mxu0 0
    %3920 = vmatpush1.bf16.msra.mxu0 %v3360
    %3921 = vmatprep.subr.bf16.mxu0 0
    %3922 = vmatpush1.bf16.msra.mxu0 %v3361
    %3923 = vmatprep.subr.bf16.mxu0 0
    %3924 = vmatpush1.bf16.msra.mxu0 %v3362
    %3925 = vmatprep.subr.bf16.mxu0 0
    %3926 = vmatpush1.bf16.msra.mxu0 %v3363
    %3927 = vmatprep.subr.bf16.mxu0 0
    %3928 = vmatpush1.bf16.msra.mxu0 %v3364
    %3929 = vmatprep.subr.bf16.mxu0 0
    %3930 = vmatpush1.bf16.msra.mxu0 %v3365
    %3931 = vmatprep.subr.bf16.mxu0 0
    %3932 = vmatpush1.bf16.msra.mxu0 %v3366
    %3933 = vmatprep.subr.bf16.mxu0 0
    %3934 = vmatpush1.bf16.msra.mxu0 %v3367
    %3935 = vmatprep.subr.bf16.mxu0 0
    %3936 = vmatpush1.bf16.msra.mxu0 %v3368
    %3937 = vmatprep.subr.bf16.mxu0 0
    %3938 = vmatpush1.bf16.msra.mxu0 %v3369
    %3939 = vmatprep.subr.bf16.mxu0 0
    %3940 = vmatpush1.bf16.msra.mxu0 %v3370
    %3941 = vmatprep.subr.bf16.mxu0 0
    %3942 = vmatpush1.bf16.msra.mxu0 %v3371
    %3943 = vmatprep.subr.bf16.mxu0 0
    %3944 = vmatpush1.bf16.msra.mxu0 %v3372
    %3945 = vmatprep.subr.bf16.mxu0 0
    %3946 = vmatpush1.bf16.msra.mxu0 %v3373
    %3947 = vmatprep.subr.bf16.mxu0 0
    %3948 = vmatpush1.bf16.msra.mxu0 %v3374
    %3949 = vmatprep.subr.bf16.mxu0 0
    %3950 = vmatpush1.bf16.msra.mxu0 %v3375
    %3951 = vmatprep.mubr.bf16.mxu0 %v2080
    %3952 = vmatmul.mubr.bf16.gmra.mrb[0].mxu0 %v2079
    %v3953 = vpop.f32.mrb[0].mxu0
    %v3954 = vadd.f32 %v3913, %v3953
    %v3955 = vpop.f32.mrb[0].mxu0
    %v3956 = vpop.f32.mrb[0].mxu0
    %v3957 = vadd.f32 %v3916, %v3956
    %v3958 = vpop.f32.mrb[0].mxu0
    %3959 = vdwg.mxu0
    %3960 = vmatprep.subr.bf16.mxu0 0
    %3961 = vmatpush1.bf16.msra.mxu0 %v3376
    %3962 = vmatprep.subr.bf16.mxu0 0
    %3963 = vmatpush1.bf16.msra.mxu0 %v3377
    %3964 = vmatprep.subr.bf16.mxu0 0
    %3965 = vmatpush1.bf16.msra.mxu0 %v3378
    %3966 = vmatprep.subr.bf16.mxu0 0
    %3967 = vmatpush1.bf16.msra.mxu0 %v3379
    %3968 = vmatprep.subr.bf16.mxu0 0
    %3969 = vmatpush1.bf16.msra.mxu0 %v3380
    %3970 = vmatprep.subr.bf16.mxu0 0
    %3971 = vmatpush1.bf16.msra.mxu0 %v3381
    %3972 = vmatprep.subr.bf16.mxu0 0
    %3973 = vmatpush1.bf16.msra.mxu0 %v3382
    %3974 = vmatprep.subr.bf16.mxu0 0
    %3975 = vmatpush1.bf16.msra.mxu0 %v3383
    %3976 = vmatprep.subr.bf16.mxu0 0
    %3977 = vmatpush1.bf16.msra.mxu0 %v3384
    %3978 = vmatprep.subr.bf16.mxu0 0
    %3979 = vmatpush1.bf16.msra.mxu0 %v3385
    %3980 = vmatprep.subr.bf16.mxu0 0
    %3981 = vmatpush1.bf16.msra.mxu0 %v3386
    %3982 = vmatprep.subr.bf16.mxu0 0
    %3983 = vmatpush1.bf16.msra.mxu0 %v3387
    %3984 = vmatprep.subr.bf16.mxu0 0
    %3985 = vmatpush1.bf16.msra.mxu0 %v3388
    %3986 = vmatprep.subr.bf16.mxu0 0
    %3987 = vmatpush1.bf16.msra.mxu0 %v3389
    %3988 = vmatprep.subr.bf16.mxu0 0
    %3989 = vmatpush1.bf16.msra.mxu0 %v3390
    %3990 = vmatprep.subr.bf16.mxu0 0
    %3991 = vmatpush1.bf16.msra.mxu0 %v3391
    %3992 = vmatprep.mubr.bf16.mxu0 %v2082
    %3993 = vmatmul.mubr.bf16.gmra.mrb[0].mxu0 %v2081
    %v3994 = vpop.f32.mrb[0].mxu0
    %v3995 = vadd.f32 %v3954, %v3994
    %v3996 = vpop.f32.mrb[0].mxu0
    %v3997 = vpop.f32.mrb[0].mxu0
    %v3998 = vadd.f32 %v3957, %v3997
    %v3999 = vpop.f32.mrb[0].mxu0
    %4000 = vdwg.mxu0
    %4001 = vmatprep.subr.bf16.mxu0 0
    %4002 = vmatpush1.bf16.msra.mxu0 %v3392
    %4003 = vmatprep.subr.bf16.mxu0 0
    %4004 = vmatpush1.bf16.msra.mxu0 %v3393
    %4005 = vmatprep.subr.bf16.mxu0 0
    %4006 = vmatpush1.bf16.msra.mxu0 %v3394
    %4007 = vmatprep.subr.bf16.mxu0 0
    %4008 = vmatpush1.bf16.msra.mxu0 %v3395
    %4009 = vmatprep.subr.bf16.mxu0 0
    %4010 = vmatpush1.bf16.msra.mxu0 %v3396
    %4011 = vmatprep.subr.bf16.mxu0 0
    %4012 = vmatpush1.bf16.msra.mxu0 %v3397
    %4013 = vmatprep.subr.bf16.mxu0 0
    %4014 = vmatpush1.bf16.msra.mxu0 %v3398
    %4015 = vmatprep.subr.bf16.mxu0 0
    %4016 = vmatpush1.bf16.msra.mxu0 %v3399
    %4017 = vmatprep.subr.bf16.mxu0 0
    %4018 = vmatpush1.bf16.msra.mxu0 %v3400
    %4019 = vmatprep.subr.bf16.mxu0 0
    %4020 = vmatpush1.bf16.msra.mxu0 %v3401
    %4021 = vmatprep.subr.bf16.mxu0 0
    %4022 = vmatpush1.bf16.msra.mxu0 %v3402
    %4023 = vmatprep.subr.bf16.mxu0 0
    %4024 = vmatpush1.bf16.msra.mxu0 %v3403
    %4025 = vmatprep.subr.bf16.mxu0 0
    %4026 = vmatpush1.bf16.msra.mxu0 %v3404
    %4027 = vmatprep.subr.bf16.mxu0 0
    %4028 = vmatpush1.bf16.msra.mxu0 %v3405
    %4029 = vmatprep.subr.bf16.mxu0 0
    %4030 = vmatpush1.bf16.msra.mxu0 %v3406
    %4031 = vmatprep.subr.bf16.mxu0 0
    %4032 = vmatpush1.bf16.msra.mxu0 %v3407
    %4033 = vmatprep.mubr.bf16.mxu0 %v2084
    %4034 = vmatmul.mubr.bf16.gmra.mrb[0].mxu0 %v2083
    %v4035 = vpop.f32.mrb[0].mxu0
    %v4036 = vadd.f32 %v3995, %v4035
    %v4037 = vpop.f32.mrb[0].mxu0
    %v4038 = vpop.f32.mrb[0].mxu0
    %v4039 = vadd.f32 %v3998, %v4038
    %v4040 = vpop.f32.mrb[0].mxu0
    %4041 = vdwg.mxu0
    %4042 = vmatprep.subr.bf16.mxu0 0
    %4043 = vmatpush1.bf16.msra.mxu0 %v3408
    %4044 = vmatprep.subr.bf16.mxu0 0
    %4045 = vmatpush1.bf16.msra.mxu0 %v3409
    %4046 = vmatprep.subr.bf16.mxu0 0
    %4047 = vmatpush1.bf16.msra.mxu0 %v3410
    %4048 = vmatprep.subr.bf16.mxu0 0
    %4049 = vmatpush1.bf16.msra.mxu0 %v3411
    %4050 = vmatprep.subr.bf16.mxu0 0
    %4051 = vmatpush1.bf16.msra.mxu0 %v3412
    %4052 = vmatprep.subr.bf16.mxu0 0
    %4053 = vmatpush1.bf16.msra.mxu0 %v3413
    %4054 = vmatprep.subr.bf16.mxu0 0
    %4055 = vmatpush1.bf16.msra.mxu0 %v3414
    %4056 = vmatprep.subr.bf16.mxu0 0
    %4057 = vmatpush1.bf16.msra.mxu0 %v3415
    %4058 = vmatprep.subr.bf16.mxu0 0
    %4059 = vmatpush1.bf16.msra.mxu0 %v3416
    %4060 = vmatprep.subr.bf16.mxu0 0
    %4061 = vmatpush1.bf16.msra.mxu0 %v3417
    %4062 = vmatprep.subr.bf16.mxu0 0
    %4063 = vmatpush1.bf16.msra.mxu0 %v3418
    %4064 = vmatprep.subr.bf16.mxu0 0
    %4065 = vmatpush1.bf16.msra.mxu0 %v3419
    %4066 = vmatprep.subr.bf16.mxu0 0
    %4067 = vmatpush1.bf16.msra.mxu0 %v3420
    %4068 = vmatprep.subr.bf16.mxu0 0
    %4069 = vmatpush1.bf16.msra.mxu0 %v3421
    %4070 = vmatprep.subr.bf16.mxu0 0
    %4071 = vmatpush1.bf16.msra.mxu0 %v3422
    %4072 = vmatprep.subr.bf16.mxu0 0
    %4073 = vmatpush1.bf16.msra.mxu0 %v3423
    %4074 = vmatprep.mubr.bf16.mxu0 %v2086
    %4075 = vmatmul.mubr.bf16.gmra.mrb[0].mxu0 %v2085
    %v4076 = vpop.f32.mrb[0].mxu0
    %v4077 = vadd.f32 %v4036, %v4076
    %v4078 = vpop.f32.mrb[0].mxu0
    %v4079 = vpop.f32.mrb[0].mxu0
    %v4080 = vadd.f32 %v4039, %v4079
    %v4081 = vpop.f32.mrb[0].mxu0
    %4082 = vdwg.mxu0
    %4083 = vmatprep.subr.bf16.mxu0 0
    %4084 = vmatpush1.bf16.msra.mxu0 %v3424
    %4085 = vmatprep.subr.bf16.mxu0 0
    %4086 = vmatpush1.bf16.msra.mxu0 %v3425
    %4087 = vmatprep.subr.bf16.mxu0 0
    %4088 = vmatpush1.bf16.msra.mxu0 %v3426
    %4089 = vmatprep.subr.bf16.mxu0 0
    %4090 = vmatpush1.bf16.msra.mxu0 %v3427
    %4091 = vmatprep.subr.bf16.mxu0 0
    %4092 = vmatpush1.bf16.msra.mxu0 %v3428
    %4093 = vmatprep.subr.bf16.mxu0 0
    %4094 = vmatpush1.bf16.msra.mxu0 %v3429
    %4095 = vmatprep.subr.bf16.mxu0 0
    %4096 = vmatpush1.bf16.msra.mxu0 %v3430
    %4097 = vmatprep.subr.bf16.mxu0 0
    %4098 = vmatpush1.bf16.msra.mxu0 %v3431
    %4099 = vmatprep.subr.bf16.mxu0 0
    %4100 = vmatpush1.bf16.msra.mxu0 %v3432
    %4101 = vmatprep.subr.bf16.mxu0 0
    %4102 = vmatpush1.bf16.msra.mxu0 %v3433
    %4103 = vmatprep.subr.bf16.mxu0 0
    %4104 = vmatpush1.bf16.msra.mxu0 %v3434
    %4105 = vmatprep.subr.bf16.mxu0 0
    %4106 = vmatpush1.bf16.msra.mxu0 %v3435
    %4107 = vmatprep.subr.bf16.mxu0 0
    %4108 = vmatpush1.bf16.msra.mxu0 %v3436
    %4109 = vmatprep.subr.bf16.mxu0 0
    %4110 = vmatpush1.bf16.msra.mxu0 %v3437
    %4111 = vmatprep.subr.bf16.mxu0 0
    %4112 = vmatpush1.bf16.msra.mxu0 %v3438
    %4113 = vmatprep.subr.bf16.mxu0 0
    %4114 = vmatpush1.bf16.msra.mxu0 %v3439
    %4115 = vmatprep.mubr.bf16.mxu0 %v2088
    %4116 = vmatmul.mubr.bf16.gmra.mrb[0].mxu0 %v2087
    %v4117 = vpop.f32.mrb[0].mxu0
    %v4118 = vadd.f32 %v4077, %v4117
    %v4119 = vpop.f32.mrb[0].mxu0
    %v4120 = vpop.f32.mrb[0].mxu0
    %v4121 = vadd.f32 %v4080, %v4120
    %v4122 = vpop.f32.mrb[0].mxu0
    %4123 = vdwg.mxu0
    %4124 = vadd.xlane.f32.xlu0 %v4118
    %v4125 = vpop.xlane.xlu0 %4124
    %4126 = vadd.xlane.f32.xlu0 %v4121
    %v4127 = vpop.xlane.xlu0 %4126
    %v4128 = vmul.f32 %v4125, 0.0078125
    %v4129 = vmul.f32 %v4127, 0.0078125
    %v4130 = vmul.f32 %v4118, %v4118
    %v4131 = vmul.f32 %v4121, %v4121
    %4132 = vadd.xlane.f32.xlu0 %v4130
    %v4133 = vpop.xlane.xlu0 %4132
    %4134 = vadd.xlane.f32.xlu0 %v4131
    %v4135 = vpop.xlane.xlu0 %4134
    %v4136 = vmul.f32 %v4133, 0.0078125
    %v4137 = vmul.f32 %v4135, 0.0078125
    %v4138 = vmul.f32 %v4128, %v4128
    %v4139 = vmul.f32 %v4129, %v4129
    %v4140 = vsub.f32 %v4136, %v4138
    %v4141 = vsub.f32 %v4137, %v4139
    %v4142 = vmax.f32 %v4140, 0.0
    %v4143 = vmax.f32 %v4141, 0.0
    %v4144 = vsub.f32 %v4118, %v4128
    %v4145 = vsub.f32 %v4121, %v4129
    %v4146 = vadd.f32 %v4142, 1e-05
    %v4147 = vadd.f32 %v4143, 1e-05
    %v4148 = vrsqrt.pop %v4146
    %v4149 = vrsqrt.pop %v4147
    %v4150 = vmul.f32 %v4144, %v4148
    %v4151 = vmul.f32 %v4145, %v4149
    %v4152 = vld [vmem:[%s5] sm:$0x1]
    %v4154 = vlaneseq
    %v4155 = vshrl.u32 %v4154, 7
    %v4156 = vsub.s32 0, %v4155
    %v4157 = vrot.slane %v4152, %v4156
    %v4159 = vmul.f32 %v4150, %v4157
    %v4160 = vmul.f32 %v4151, %v4157
    %v4161 = vld [vmem:[%s6] sm:$0x1]
    %v4163 = vlaneseq
    %v4164 = vshrl.u32 %v4163, 7
    %v4165 = vsub.s32 0, %v4164
    %v4166 = vrot.slane %v4161, %v4165
    %v4168 = vadd.f32 %v4159, %v4166
    %v4169 = vadd.f32 %v4160, %v4166
    %4170 = vst [vmem:[#allocation2] sm:$0xff] %v4168
    %4171 = vst [vmem:[#allocation2 + $0x8] sm:$0xff] %v4169
    // Predicated region
    $region30: #{encoder_layer.1} parent=1 // pred_check
      _
    $region31: #{encoder_layer.1} parent=1 // pred_check_branch
      %4173 = sbr.rel (0) target = $region33
    $region32: #{encoder_layer.1} parent=1 // pred_region
      %s4175 = ssub.s32 256, 256
      %4176 = vsyncadd [#allocation3], %s4175
      %s4177 = sshll.u32 [#allocation2], 4
      %s4178 = int_to_ptr.vmem [resolvable:$true] %s4177
      %4183 = dma.vmem_to_hbm [thread:$0]  %s4178, 256, %s7, [#allocation3], 128, 128, 8
    $region33: #{encoder_layer.1} parent=1 // pred_fallthru
      _
    // Predicated region
    $region34: #{encoder_layer.1} parent=1 // pred_check
      _
    $region35: #{encoder_layer.1} parent=1 // pred_check_branch
      %4185 = sbr.rel (0) target = $region37
    $region36: #{encoder_layer.1} parent=1 // pred_region
      %4186 = dma.done [#allocation3], 256
    $region37: #{encoder_layer.1} parent=1 // pred_fallthru
      _
    %4187 = vsyncpa [#allocation3], 1

</llo_original>
